<compile_context>
chip_gen: v7x
topology: tpu7x:2x2x1
jax: 0.10.0
libtpu: 0.0.40
codegen_flags: <defaults>
</compile_context>

<pallas_src>
import math
import functools

import jax
import jax.numpy as jnp
from jax.experimental import pallas as pl
from jax.experimental.pallas import tpu as pltpu


_LANE = 128        # last dims padded to a multiple of this (lane width)
_SUBLANE = 8       # batch tile kept a multiple of this (sublane width)
_MAX_TILE = 1024   # upper bound on the batch tile (review: 512-1024)


def _round_up(x, m):
    return (x + m - 1) // m * m


def _silu_f32(x):
    # silu(x) = x * sigmoid(x) = 0.5 * x * (1 + tanh(x/2)):
    # exactly one EUP push (tanh) + cheap VPU mul/add, and no approximate-
    # reciprocal error compounding across blocks.
    return 0.5 * x * (1.0 + jnp.tanh(0.5 * x))


def _fused_encoder_kernel(num_blocks, temb_slices, *refs):
    """Fused forward of all EncodingBlocks for one batch tile.

    refs = (x_ref, t_ref, wt_all_ref, bt_all_ref,
            w1_0, b1_0, w2_0, b2_0, ..., w1_{n-1}, b1_{n-1}, w2_{n-1}, b2_{n-1},
            out_0, ..., out_{n-1})
    """
    x_ref, t_ref, wt_ref, bt_ref = refs[:4]
    w_refs = refs[4:4 + 4 * num_blocks]
    out_refs = refs[4 + 4 * num_blocks:]

    x = x_ref[...]

    # All blocks' time projections in ONE MXU pass:
    #   t @ [wt_0 | wt_1 | ...]   (bf16 operands, f32 accumulation),
    # then bias + SiLU once. Per-block pieces are 128-aligned column slices.
    t_bf16 = t_ref[...].astype(jnp.bfloat16)
    temb_all = jnp.dot(t_bf16, wt_ref[...], preferred_element_type=jnp.float32)
    temb_all = _silu_f32(temb_all + bt_ref[...].astype(jnp.float32))

    for blk in range(num_blocks):
        w1, b1, w2, b2 = w_refs[4 * blk: 4 * blk + 4]
        lo, hi = temb_slices[blk]

        # layer1: Linear(dim_in -> dim_out) + SiLU   (bf16 MXU, f32 accumulate)
        h = jnp.dot(x.astype(jnp.bfloat16), w1[...],
                    preferred_element_type=jnp.float32)
        h = _silu_f32(h + b1[...].astype(jnp.float32))

        # x += temb_proj(t)  (precomputed above; 128-aligned static slice)
        h = h + temb_all[:, lo:hi]

        # layer2: Linear(dim_out -> dim_out) + SiLU
        y = jnp.dot(h.astype(jnp.bfloat16), w2[...],
                    preferred_element_type=jnp.float32)
        y = _silu_f32(y + b2[...].astype(jnp.float32))

        # Lane-dense store: last dim is a multiple of 128 (host-side padding),
        # so this lowers to unmasked full-width vector stores.
        out_refs[blk][...] = y.astype(out_refs[blk].dtype)
        x = y   # feed the next block; stays on-chip (no HBM round-trip)


def encoder_forward(x, t, block_params, *, max_batch_tile=_MAX_TILE):
    """Encoder.forward: returns (skip_connections, x). One fused pallas_call."""
    B, d0 = x.shape
    tdim = t.shape[1]
    num_blocks = len(block_params)
    out_dims = [p["w1"].shape[1] for p in block_params]
    out_dtype = x.dtype

    # ---- lane padding: every feature dim -> multiple of 128 ----------------
    d0_pad = _round_up(d0, _LANE)
    tdim_pad = _round_up(tdim, _LANE)
    out_pads = [_round_up(d, _LANE) for d in out_dims]
    in_pads = [d0_pad] + out_pads[:-1]

    def pad2(a, rows, cols, dtype):
        r, c = a.shape
        return jnp.pad(a, ((0, rows - r), (0, cols - c))).astype(dtype)

    # Per-block padded weights (bf16 for the MXU) and biases (f32), plus the
    # concatenated time-projection weights for the single fused temb matmul.
    flat_params = []
    wt_cols, bt_cols, temb_slices = [], [], []
    off = 0
    for p, din_p, dout_p in zip(block_params, in_pads, out_pads):
        flat_params.append(pad2(p["w1"], din_p, dout_p, jnp.bfloat16))
        flat_params.append(pad2(p["b1"], 1, dout_p, jnp.float32))
        flat_params.append(pad2(p["w2"], dout_p, dout_p, jnp.bfloat16))
        flat_params.append(pad2(p["b2"], 1, dout_p, jnp.float32))
        wt_cols.append(pad2(p["wt"], tdim_pad, dout_p, jnp.bfloat16))
        bt_cols.append(pad2(p["bt"], 1, dout_p, jnp.float32))
        temb_slices.append((off, off + dout_p))
        off += dout_p
    wt_all = jnp.concatenate(wt_cols, axis=1)
    bt_all = jnp.concatenate(bt_cols, axis=1)
    temb_slices = tuple(temb_slices)

    # ---- batch tile ---------------------------------------------------------
    b8 = _round_up(B, _SUBLANE)
    if b8 > max_batch_tile:
        tb = max_batch_tile
    elif b8 >= 2 * _LANE:
        # Keep >=2 grid steps so the "parallel" batch axis can shard across
        # both TensorCores on v7x (costs one ~0.35us step on 1-TC chips).
        tb = _round_up((b8 + 1) // 2, _SUBLANE)
    else:
        tb = b8   # tiny batch: single resident grid step

    # VMEM budget: double-buffered x/t/output tiles + resident params + slack
    # for live f32 intermediates. Shrink the tile if it would blow the budget
    # (v7x: 64 MiB physical / 32 MiB scoped default; v5e scoped default 16 MiB).
    param_bytes = sum(int(a.size) * a.dtype.itemsize for a in flat_params)
    param_bytes += int(wt_all.size) * 2 + int(bt_all.size) * 4

    def vmem_est(tile):
        io = tile * (d0_pad + tdim_pad) * 4          # x + t tiles (f32)
        outs = tile * sum(out_pads) * 4              # per-block output tiles
        inter = tile * max(out_pads) * 4 * 4         # live f32 intermediates
        return 2 * (io + outs) + param_bytes + inter

    while tb > _SUBLANE and vmem_est(tb) > (24 << 20):
        tb = max(_SUBLANE, _round_up(tb // 2, _SUBLANE))

    padded_b = _round_up(B, tb)
    grid = (padded_b // tb,)

    x_p = jnp.pad(x, ((0, padded_b - B), (0, d0_pad - d0)))
    t_p = jnp.pad(t, ((0, padded_b - B), (0, tdim_pad - tdim)))

    # ---- specs --------------------------------------------------------------
    def batch_spec(dim):
        return pl.BlockSpec((tb, dim), lambda i: (i, 0))

    def resident_spec(shape):
        # Constant index_map -> block stays VMEM-resident across the grid.
        return pl.BlockSpec(shape, lambda i: (0, 0))

    in_specs = [batch_spec(d0_pad), batch_spec(tdim_pad),
                resident_spec(wt_all.shape), resident_spec(bt_all.shape)]
    in_specs += [resident_spec(a.shape) for a in flat_params]

    out_specs = tuple(batch_spec(dp) for dp in out_pads)
    out_shape = tuple(jax.ShapeDtypeStruct((padded_b, dp), out_dtype)
                      for dp in out_pads)

    vmem_limit = int(min(max(2 * vmem_est(tb), 32 << 20), 64 << 20))

    kernel = functools.partial(_fused_encoder_kernel, num_blocks, temb_slices)

    outs = pl.pallas_call(
        kernel,
        out_shape=out_shape,
        grid_spec=pltpu.PrefetchScalarGridSpec(
            num_scalar_prefetch=0,
            grid=grid,
            in_specs=in_specs,
            out_specs=out_specs,
        ),
        compiler_params=pltpu.CompilerParams(
            # Batch tiles are independent -> shard across both TCs on v7x.
            dimension_semantics=("parallel",),
            vmem_limit_bytes=vmem_limit,
        ),
    )(x_p, t_p, wt_all, bt_all, *flat_params)

    # Padded rows/cols are not meaningful; slice them off before returning.
    outs = [o[:B, :d] for o, d in zip(outs, out_dims)]
    skip_connections = list(outs)
    return skip_connections, outs[-1]


# ----------------------------- parameter helpers -----------------------------

def _linear_init(key, fan_in, fan_out, dtype=jnp.float32):
    """PyTorch nn.Linear default init (uniform +-1/sqrt(fan_in)), stored as (in, out)."""
    kw, kb = jax.random.split(key)
    bound = 1.0 / math.sqrt(fan_in)
    w = jax.random.uniform(kw, (fan_in, fan_out), dtype, -bound, bound)
    b = jax.random.uniform(kb, (1, fan_out), dtype, -bound, bound)
    return w, b


def make_encoder_params(key, encoder_dim, tdim, dtype=jnp.float32):
    block_params = []
    for i in range(len(encoder_dim) - 1):
        dim_in, dim_out = encoder_dim[i], encoder_dim[i + 1]
        key, k1, k2, k3 = jax.random.split(key, 4)
        w1, b1 = _linear_init(k1, dim_in, dim_out, dtype)
        wt, bt = _linear_init(k2, tdim, dim_out, dtype)
        w2, b2 = _linear_init(k3, dim_out, dim_out, dtype)
        block_params.append(dict(w1=w1, b1=b1, wt=wt, bt=bt, w2=w2, b2=b2))
    return block_params


def encoder_forward_ref(x, t, block_params):
    """Pure-JAX reference mirroring the kernel's bf16-matmul / f32-accumulate."""
    def silu(v):
        return v * jax.nn.sigmoid(v)

    def bf16_dot(a, w):
        return jnp.dot(a.astype(jnp.bfloat16), w.astype(jnp.bfloat16),
                       preferred_element_type=jnp.float32)

    skips = []
    xx = x.astype(jnp.float32)
    tt = t.astype(jnp.float32)
    for p in block_params:
        h = silu(bf16_dot(xx, p["w1"]) + p["b1"].astype(jnp.float32))
        h = h + silu(bf16_dot(tt, p["wt"]) + p["bt"].astype(jnp.float32))
        xx = silu(bf16_dot(h, p["w2"]) + p["b2"].astype(jnp.float32))
        skips.append(xx)
    return skips, xx


# ---------------------------------- demo -------------------------------------

if __name__ == "__main__":
    encoder_dim = [32, 64, 128]   # -> 2 encoding blocks
    tdim = 32

    key = jax.random.PRNGKey(0)
    kx, kt, kp = jax.random.split(key, 3)
    block_params = make_encoder_params(kp, encoder_dim, tdim)

    # B=1024 exercises the large-tile (2-step, tb=512) batch grid;
    # B=8 exercises the small-batch single-step / padding path.
    for B in (1024, 8):
        kxb = jax.random.fold_in(kx, B)
        ktb = jax.random.fold_in(kt, B)
        x = jax.random.normal(kxb, (B, encoder_dim[0]), jnp.float32)
        t = jax.random.normal(ktb, (B, tdim), jnp.float32)

        skips, out = encoder_forward(x, t, block_params)
        out = jax.block_until_ready(out)
        skips = [jax.block_until_ready(s) for s in skips]

        # Reference uses exact sigmoid and the same bf16 matmul operands, so
        # only tiny tanh-vs-sigmoid / rounding differences remain.
        skips_ref, out_ref = encoder_forward_ref(x, t, block_params)
        assert jnp.allclose(out, out_ref, atol=5e-3, rtol=5e-3), (
            f"B={B}: max abs diff {jnp.max(jnp.abs(out - out_ref))}")
        for s, sr in zip(skips, skips_ref):
            assert jnp.allclose(s, sr, atol=5e-3, rtol=5e-3), (
                f"B={B}: skip max abs diff {jnp.max(jnp.abs(s - sr))}")

    print("KERNEL_OK")
</pallas_src>

<mosaic_0001>
module attributes {stable_mosaic.version = 11 : i64} {
  func.func @_fused_encoder_kernel(%arg0: i32, %arg1: memref<512x128xf32, #tpu.memory_space<vmem>>, %arg2: memref<512x128xf32, #tpu.memory_space<vmem>>, %arg3: memref<128x256xbf16, #tpu.memory_space<vmem>>, %arg4: memref<1x256xf32, #tpu.memory_space<vmem>>, %arg5: memref<128x128xbf16, #tpu.memory_space<vmem>>, %arg6: memref<1x128xf32, #tpu.memory_space<vmem>>, %arg7: memref<128x128xbf16, #tpu.memory_space<vmem>>, %arg8: memref<1x128xf32, #tpu.memory_space<vmem>>, %arg9: memref<128x128xbf16, #tpu.memory_space<vmem>>, %arg10: memref<1x128xf32, #tpu.memory_space<vmem>>, %arg11: memref<128x128xbf16, #tpu.memory_space<vmem>>, %arg12: memref<1x128xf32, #tpu.memory_space<vmem>>, %arg13: memref<512x128xf32, #tpu.memory_space<vmem>>, %arg14: memref<512x128xf32, #tpu.memory_space<vmem>>) attributes {dimension_semantics = [#tpu.dimension_semantics<parallel>], iteration_bounds = array<i64: 2>, scalar_prefetch = 0 : i64, scratch_operands = 0 : i64, tpu.core_type = #tpu.core_type<tc>, window_params = [{transform_indices = @transform_0, window_bounds = array<i64: 512, 128>}, {transform_indices = @transform_1, window_bounds = array<i64: 512, 128>}, {pipeline_mode = #tpu.pipeline_mode<synchronous>, transform_indices = @transform_2, window_bounds = array<i64: 128, 256>}, {pipeline_mode = #tpu.pipeline_mode<synchronous>, transform_indices = @transform_3, window_bounds = array<i64: 1, 256>}, {pipeline_mode = #tpu.pipeline_mode<synchronous>, transform_indices = @transform_4, window_bounds = array<i64: 128, 128>}, {pipeline_mode = #tpu.pipeline_mode<synchronous>, transform_indices = @transform_5, window_bounds = array<i64: 1, 128>}, {pipeline_mode = #tpu.pipeline_mode<synchronous>, transform_indices = @transform_6, window_bounds = array<i64: 128, 128>}, {pipeline_mode = #tpu.pipeline_mode<synchronous>, transform_indices = @transform_7, window_bounds = array<i64: 1, 128>}, {pipeline_mode = #tpu.pipeline_mode<synchronous>, transform_indices = @transform_8, window_bounds = array<i64: 128, 128>}, {pipeline_mode = #tpu.pipeline_mode<synchronous>, transform_indices = @transform_9, window_bounds = array<i64: 1, 128>}, {pipeline_mode = #tpu.pipeline_mode<synchronous>, transform_indices = @transform_10, window_bounds = array<i64: 128, 128>}, {pipeline_mode = #tpu.pipeline_mode<synchronous>, transform_indices = @transform_11, window_bounds = array<i64: 1, 128>}, {transform_indices = @transform_12, window_bounds = array<i64: 512, 128>}, {transform_indices = @transform_13, window_bounds = array<i64: 512, 128>}]} {
    %c0 = arith.constant 0 : index
    %c0_0 = arith.constant 0 : index
    %0 = vector.load %arg1[%c0, %c0_0] : memref<512x128xf32, #tpu.memory_space<vmem>>, vector<512x128xf32>
    %c0_1 = arith.constant 0 : index
    %c0_2 = arith.constant 0 : index
    %1 = vector.load %arg2[%c0_1, %c0_2] : memref<512x128xf32, #tpu.memory_space<vmem>>, vector<512x128xf32>
    %2 = arith.truncf %1 : vector<512x128xf32> to vector<512x128xbf16>
    %c0_3 = arith.constant 0 : index
    %c0_4 = arith.constant 0 : index
    %3 = vector.load %arg3[%c0_3, %c0_4] : memref<128x256xbf16, #tpu.memory_space<vmem>>, vector<128x256xbf16>
    %cst = arith.constant dense<0.000000e+00> : vector<512x256xf32>
    %4 = tpu.matmul %2, %3, %cst {dimension_numbers = #tpu.dot_dimension_numbers<[1], [0], [0], [1], [0, 0, 1, 1], [], []>} : vector<512x128xbf16>, vector<128x256xbf16>, vector<512x256xf32> -> vector<512x256xf32>
    %c0_5 = arith.constant 0 : index
    %c0_6 = arith.constant 0 : index
    %5 = vector.load %arg4[%c0_5, %c0_6] : memref<1x256xf32, #tpu.memory_space<vmem>>, vector<1x256xf32>
    %6 = vector.broadcast %5 : vector<1x256xf32> to vector<512x256xf32>
    %7 = arith.addf %4, %6 : vector<512x256xf32>
    %cst_7 = arith.constant 5.000000e-01 : f32
    %8 = vector.broadcast %cst_7 : f32 to vector<512x256xf32>
    %9 = arith.mulf %8, %7 : vector<512x256xf32>
    %cst_8 = arith.constant 5.000000e-01 : f32
    %10 = vector.broadcast %cst_8 : f32 to vector<512x256xf32>
    %11 = arith.mulf %10, %7 : vector<512x256xf32>
    %12 = math.tanh %11 : vector<512x256xf32>
    %cst_9 = arith.constant 1.000000e+00 : f32
    %13 = vector.broadcast %cst_9 : f32 to vector<512x256xf32>
    %14 = arith.addf %13, %12 : vector<512x256xf32>
    %15 = arith.mulf %9, %14 : vector<512x256xf32>
    %16 = arith.truncf %0 : vector<512x128xf32> to vector<512x128xbf16>
    %c0_10 = arith.constant 0 : index
    %c0_11 = arith.constant 0 : index
    %17 = vector.load %arg5[%c0_10, %c0_11] : memref<128x128xbf16, #tpu.memory_space<vmem>>, vector<128x128xbf16>
    %cst_12 = arith.constant dense<0.000000e+00> : vector<512x128xf32>
    %18 = tpu.matmul %16, %17, %cst_12 {dimension_numbers = #tpu.dot_dimension_numbers<[1], [0], [0], [1], [0, 0, 1, 1], [], []>} : vector<512x128xbf16>, vector<128x128xbf16>, vector<512x128xf32> -> vector<512x128xf32>
    %c0_13 = arith.constant 0 : index
    %c0_14 = arith.constant 0 : index
    %19 = vector.load %arg6[%c0_13, %c0_14] : memref<1x128xf32, #tpu.memory_space<vmem>>, vector<1x128xf32>
    %20 = vector.broadcast %19 : vector<1x128xf32> to vector<512x128xf32>
    %21 = arith.addf %18, %20 : vector<512x128xf32>
    %cst_15 = arith.constant 5.000000e-01 : f32
    %22 = vector.broadcast %cst_15 : f32 to vector<512x128xf32>
    %23 = arith.mulf %22, %21 : vector<512x128xf32>
    %cst_16 = arith.constant 5.000000e-01 : f32
    %24 = vector.broadcast %cst_16 : f32 to vector<512x128xf32>
    %25 = arith.mulf %24, %21 : vector<512x128xf32>
    %26 = math.tanh %25 : vector<512x128xf32>
    %cst_17 = arith.constant 1.000000e+00 : f32
    %27 = vector.broadcast %cst_17 : f32 to vector<512x128xf32>
    %28 = arith.addf %27, %26 : vector<512x128xf32>
    %29 = arith.mulf %23, %28 : vector<512x128xf32>
    %30 = vector.extract_strided_slice %15 {offsets = [0, 0], sizes = [512, 128], strides = [1, 1]} : vector<512x256xf32> to vector<512x128xf32>
    %31 = arith.addf %29, %30 : vector<512x128xf32>
    %32 = arith.truncf %31 : vector<512x128xf32> to vector<512x128xbf16>
    %c0_18 = arith.constant 0 : index
    %c0_19 = arith.constant 0 : index
    %33 = vector.load %arg7[%c0_18, %c0_19] : memref<128x128xbf16, #tpu.memory_space<vmem>>, vector<128x128xbf16>
    %cst_20 = arith.constant dense<0.000000e+00> : vector<512x128xf32>
    %34 = tpu.matmul %32, %33, %cst_20 {dimension_numbers = #tpu.dot_dimension_numbers<[1], [0], [0], [1], [0, 0, 1, 1], [], []>} : vector<512x128xbf16>, vector<128x128xbf16>, vector<512x128xf32> -> vector<512x128xf32>
    %c0_21 = arith.constant 0 : index
    %c0_22 = arith.constant 0 : index
    %35 = vector.load %arg8[%c0_21, %c0_22] : memref<1x128xf32, #tpu.memory_space<vmem>>, vector<1x128xf32>
    %36 = vector.broadcast %35 : vector<1x128xf32> to vector<512x128xf32>
    %37 = arith.addf %34, %36 : vector<512x128xf32>
    %cst_23 = arith.constant 5.000000e-01 : f32
    %38 = vector.broadcast %cst_23 : f32 to vector<512x128xf32>
    %39 = arith.mulf %38, %37 : vector<512x128xf32>
    %cst_24 = arith.constant 5.000000e-01 : f32
    %40 = vector.broadcast %cst_24 : f32 to vector<512x128xf32>
    %41 = arith.mulf %40, %37 : vector<512x128xf32>
    %42 = math.tanh %41 : vector<512x128xf32>
    %cst_25 = arith.constant 1.000000e+00 : f32
    %43 = vector.broadcast %cst_25 : f32 to vector<512x128xf32>
    %44 = arith.addf %43, %42 : vector<512x128xf32>
    %45 = arith.mulf %39, %44 : vector<512x128xf32>
    %c0_26 = arith.constant 0 : index
    %c0_27 = arith.constant 0 : index
    %46 = vector.load %arg13[%c0_26, %c0_27] : memref<512x128xf32, #tpu.memory_space<vmem>>, vector<512x128xf32>
    tpu.vector_store %arg13[%c0_26, %c0_27], %45 {strides = array<i32>} : memref<512x128xf32, #tpu.memory_space<vmem>>, vector<512x128xf32>,
    %47 = arith.truncf %45 : vector<512x128xf32> to vector<512x128xbf16>
    %c0_28 = arith.constant 0 : index
    %c0_29 = arith.constant 0 : index
    %48 = vector.load %arg9[%c0_28, %c0_29] : memref<128x128xbf16, #tpu.memory_space<vmem>>, vector<128x128xbf16>
    %cst_30 = arith.constant dense<0.000000e+00> : vector<512x128xf32>
    %49 = tpu.matmul %47, %48, %cst_30 {dimension_numbers = #tpu.dot_dimension_numbers<[1], [0], [0], [1], [0, 0, 1, 1], [], []>} : vector<512x128xbf16>, vector<128x128xbf16>, vector<512x128xf32> -> vector<512x128xf32>
    %c0_31 = arith.constant 0 : index
    %c0_32 = arith.constant 0 : index
    %50 = vector.load %arg10[%c0_31, %c0_32] : memref<1x128xf32, #tpu.memory_space<vmem>>, vector<1x128xf32>
    %51 = vector.broadcast %50 : vector<1x128xf32> to vector<512x128xf32>
    %52 = arith.addf %49, %51 : vector<512x128xf32>
    %cst_33 = arith.constant 5.000000e-01 : f32
    %53 = vector.broadcast %cst_33 : f32 to vector<512x128xf32>
    %54 = arith.mulf %53, %52 : vector<512x128xf32>
    %cst_34 = arith.constant 5.000000e-01 : f32
    %55 = vector.broadcast %cst_34 : f32 to vector<512x128xf32>
    %56 = arith.mulf %55, %52 : vector<512x128xf32>
    %57 = math.tanh %56 : vector<512x128xf32>
    %cst_35 = arith.constant 1.000000e+00 : f32
    %58 = vector.broadcast %cst_35 : f32 to vector<512x128xf32>
    %59 = arith.addf %58, %57 : vector<512x128xf32>
    %60 = arith.mulf %54, %59 : vector<512x128xf32>
    %61 = vector.extract_strided_slice %15 {offsets = [0, 128], sizes = [512, 128], strides = [1, 1]} : vector<512x256xf32> to vector<512x128xf32>
    %62 = arith.addf %60, %61 : vector<512x128xf32>
    %63 = arith.truncf %62 : vector<512x128xf32> to vector<512x128xbf16>
    %c0_36 = arith.constant 0 : index
    %c0_37 = arith.constant 0 : index
    %64 = vector.load %arg11[%c0_36, %c0_37] : memref<128x128xbf16, #tpu.memory_space<vmem>>, vector<128x128xbf16>
    %cst_38 = arith.constant dense<0.000000e+00> : vector<512x128xf32>
    %65 = tpu.matmul %63, %64, %cst_38 {dimension_numbers = #tpu.dot_dimension_numbers<[1], [0], [0], [1], [0, 0, 1, 1], [], []>} : vector<512x128xbf16>, vector<128x128xbf16>, vector<512x128xf32> -> vector<512x128xf32>
    %c0_39 = arith.constant 0 : index
    %c0_40 = arith.constant 0 : index
    %66 = vector.load %arg12[%c0_39, %c0_40] : memref<1x128xf32, #tpu.memory_space<vmem>>, vector<1x128xf32>
    %67 = vector.broadcast %66 : vector<1x128xf32> to vector<512x128xf32>
    %68 = arith.addf %65, %67 : vector<512x128xf32>
    %cst_41 = arith.constant 5.000000e-01 : f32
    %69 = vector.broadcast %cst_41 : f32 to vector<512x128xf32>
    %70 = arith.mulf %69, %68 : vector<512x128xf32>
    %cst_42 = arith.constant 5.000000e-01 : f32
    %71 = vector.broadcast %cst_42 : f32 to vector<512x128xf32>
    %72 = arith.mulf %71, %68 : vector<512x128xf32>
    %73 = math.tanh %72 : vector<512x128xf32>
    %cst_43 = arith.constant 1.000000e+00 : f32
    %74 = vector.broadcast %cst_43 : f32 to vector<512x128xf32>
    %75 = arith.addf %74, %73 : vector<512x128xf32>
    %76 = arith.mulf %70, %75 : vector<512x128xf32>
    %c0_44 = arith.constant 0 : index
    %c0_45 = arith.constant 0 : index
    %77 = vector.load %arg14[%c0_44, %c0_45] : memref<512x128xf32, #tpu.memory_space<vmem>>, vector<512x128xf32>
    tpu.vector_store %arg14[%c0_44, %c0_45], %76 {strides = array<i32>} : memref<512x128xf32, #tpu.memory_space<vmem>>, vector<512x128xf32>,
    return
  }
  func.func @transform_0(%arg0: i32) -> (i32, i32) {
    %c0_i32 = arith.constant 0 : i32
    %c0_i32_0 = arith.constant 0 : i32
    return %arg0, %c0_i32 : i32, i32
  }
  func.func @transform_1(%arg0: i32) -> (i32, i32) {
    %c0_i32 = arith.constant 0 : i32
    %c0_i32_0 = arith.constant 0 : i32
    return %arg0, %c0_i32 : i32, i32
  }
  func.func @transform_2(%arg0: i32) -> (i32, i32) {
    %c0_i32 = arith.constant 0 : i32
    %c0_i32_0 = arith.constant 0 : i32
    %c0_i32_1 = arith.constant 0 : i32
    return %c0_i32, %c0_i32_0 : i32, i32
  }
  func.func @transform_3(%arg0: i32) -> (i32, i32) {
    %c0_i32 = arith.constant 0 : i32
    %c0_i32_0 = arith.constant 0 : i32
    %c0_i32_1 = arith.constant 0 : i32
    return %c0_i32, %c0_i32_0 : i32, i32
  }
  func.func @transform_4(%arg0: i32) -> (i32, i32) {
    %c0_i32 = arith.constant 0 : i32
    %c0_i32_0 = arith.constant 0 : i32
    %c0_i32_1 = arith.constant 0 : i32
    return %c0_i32, %c0_i32_0 : i32, i32
  }
  func.func @transform_5(%arg0: i32) -> (i32, i32) {
    %c0_i32 = arith.constant 0 : i32
    %c0_i32_0 = arith.constant 0 : i32
    %c0_i32_1 = arith.constant 0 : i32
    return %c0_i32, %c0_i32_0 : i32, i32
  }
  func.func @transform_6(%arg0: i32) -> (i32, i32) {
    %c0_i32 = arith.constant 0 : i32
    %c0_i32_0 = arith.constant 0 : i32
    %c0_i32_1 = arith.constant 0 : i32
    return %c0_i32, %c0_i32_0 : i32, i32
  }
  func.func @transform_7(%arg0: i32) -> (i32, i32) {
    %c0_i32 = arith.constant 0 : i32
    %c0_i32_0 = arith.constant 0 : i32
    %c0_i32_1 = arith.constant 0 : i32
    return %c0_i32, %c0_i32_0 : i32, i32
  }
  func.func @transform_8(%arg0: i32) -> (i32, i32) {
    %c0_i32 = arith.constant 0 : i32
    %c0_i32_0 = arith.constant 0 : i32
    %c0_i32_1 = arith.constant 0 : i32
    return %c0_i32, %c0_i32_0 : i32, i32
  }
  func.func @transform_9(%arg0: i32) -> (i32, i32) {
    %c0_i32 = arith.constant 0 : i32
    %c0_i32_0 = arith.constant 0 : i32
    %c0_i32_1 = arith.constant 0 : i32
    return %c0_i32, %c0_i32_0 : i32, i32
  }
  func.func @transform_10(%arg0: i32) -> (i32, i32) {
    %c0_i32 = arith.constant 0 : i32
    %c0_i32_0 = arith.constant 0 : i32
    %c0_i32_1 = arith.constant 0 : i32
    return %c0_i32, %c0_i32_0 : i32, i32
  }
  func.func @transform_11(%arg0: i32) -> (i32, i32) {
    %c0_i32 = arith.constant 0 : i32
    %c0_i32_0 = arith.constant 0 : i32
    %c0_i32_1 = arith.constant 0 : i32
    return %c0_i32, %c0_i32_0 : i32, i32
  }
  func.func @transform_12(%arg0: i32) -> (i32, i32) {
    %c0_i32 = arith.constant 0 : i32
    %c0_i32_0 = arith.constant 0 : i32
    return %arg0, %c0_i32 : i32, i32
  }
  func.func @transform_13(%arg0: i32) -> (i32, i32) {
    %c0_i32 = arith.constant 0 : i32
    %c0_i32_0 = arith.constant 0 : i32
    return %arg0, %c0_i32 : i32, i32
  }
}

</mosaic_0001>

<llo_original>
// kernel: tpu_custom_call.1
$region0: #{tpu_custom_call.1}
  #allocation0 [shape = 'u32[]', space=smem, size = 0x4, offset = 0x4, fixed_abs, tag = 'smem constant byte address 0x4 - core index']
  #allocation1 [shape = 'u32[144,128]{1,0:T(1,128)}', space=vmem, size = 0x12000, scoped, tag = 'internal scratch']
  %s0 = inlined_call_operand.hbm [shape: f32[1024,128], index: 0, kind: input, shape index: {}]
  %s1 = inlined_call_operand.hbm [shape: f32[1024,128], index: 1, kind: input, shape index: {}]
  %s2 = inlined_call_operand.hbm [shape: bf16[128,256], index: 2, kind: input, shape index: {}]
  %s3 = inlined_call_operand.vmem [shape: f32[1,256], index: 3, kind: input, shape index: {}]
  %s4 = inlined_call_operand.hbm [shape: bf16[128,128], index: 4, kind: input, shape index: {}]
  %s5 = inlined_call_operand.vmem [shape: f32[1,128], index: 5, kind: input, shape index: {}]
  %s6 = inlined_call_operand.hbm [shape: bf16[128,128], index: 6, kind: input, shape index: {}]
  %s7 = inlined_call_operand.vmem [shape: f32[1,128], index: 7, kind: input, shape index: {}]
  %s8 = inlined_call_operand.hbm [shape: bf16[128,128], index: 8, kind: input, shape index: {}]
  %s9 = inlined_call_operand.vmem [shape: f32[1,128], index: 9, kind: input, shape index: {}]
  %s10 = inlined_call_operand.hbm [shape: bf16[128,128], index: 10, kind: input, shape index: {}]
  %s11 = inlined_call_operand.vmem [shape: f32[1,128], index: 11, kind: input, shape index: {}]
  %s12 = inlined_call_operand.hbm [shape: f32[1024,128], index: 12, kind: output, shape index: {0}]
  %s13 = inlined_call_operand.hbm [shape: f32[1024,128], index: 13, kind: output, shape index: {1}]
  %14 = xla_tuple %s12, %s13
  %s15 = sld [smem:[#allocation0]]
  $region117: #{tpu_custom_call.1} parent=0
    _
  %s17 = ssub.s32 1, %s15
  %s18 = scalar_select 0, %s17, %s15
  $region1: #{tpu_custom_call.1} parent=0
    #allocation2 [shape = 'u8[524288]{0}', space=vmem, size = 0x80000, scoped, tag = 'input window, operand 0']
    #allocation3 [shape = 's32[2]{0}', space=sflag, size = 0x8, scoped, tag = 'scoped memory for tpu_custom_call.1']
    #allocation4 [shape = 's32[2]{0}', space=sflag, size = 0x8, scoped, tag = 'scoped memory for tpu_custom_call.1']
    #allocation5 [shape = 'u8[524288]{0}', space=vmem, size = 0x80000, scoped, tag = 'input window, operand 1']
    #allocation6 [shape = 's32[2]{0}', space=sflag, size = 0x8, scoped, tag = 'scoped memory for tpu_custom_call.1']
    #allocation7 [shape = 'u8[65536]{0}', space=vmem, size = 0x10000, scoped, tag = 'input window, operand 2, single buffered']
    #allocation8 [shape = 'u8[32768]{0}', space=vmem, size = 0x8000, scoped, tag = 'input window, operand 4, single buffered']
    #allocation9 [shape = 's32[1]{0}', space=sflag, size = 0x4, scoped, tag = 'scoped memory for tpu_custom_call.1']
    #allocation10 [shape = 'u8[32768]{0}', space=vmem, size = 0x8000, scoped, tag = 'input window, operand 6, single buffered']
    #allocation11 [shape = 'u8[32768]{0}', space=vmem, size = 0x8000, scoped, tag = 'input window, operand 8, single buffered']
    #allocation12 [shape = 's32[1]{0}', space=sflag, size = 0x4, scoped, tag = 'scoped memory for tpu_custom_call.1']
    #allocation13 [shape = 'u8[32768]{0}', space=vmem, size = 0x8000, scoped, tag = 'input window, operand 10, single buffered']
    #allocation14 [shape = 'u8[524288]{0}', space=vmem, size = 0x80000, scoped, tag = 'output window, operand 0']
    #allocation15 [shape = 'u8[524288]{0}', space=vmem, size = 0x80000, scoped, tag = 'output window, operand 1']
    #allocation16 [shape = 's32[2]{0}', space=sflag, size = 0x8, scoped, tag = 'scoped memory for tpu_custom_call.1']
    %19 = vsyncpa [#allocation3], 0
    %s20 = scalar_lea.sflag [#allocation3], 1
    %21 = vsyncpa %s20, 0
    %22 = vsyncpa [#allocation6], 0
    %s23 = scalar_lea.sflag [#allocation6], 1
    %24 = vsyncpa %s23, 0
    %25 = vsyncpa [#allocation9], 0
    %26 = vsyncpa [#allocation12], 0
    %27 = vsyncpa [#allocation4], 0
    %s28 = scalar_lea.sflag [#allocation4], 1
    %29 = vsyncpa %s28, 0
    %30 = vsyncpa [#allocation16], 0
    %s31 = scalar_lea.sflag [#allocation16], 1
    %32 = vsyncpa %s31, 0
    loop: start=0, step=1, limit=4
    $region2: #{tpu_custom_call.1} parent=1 // loop_pre_header
      _
    $region3: #{tpu_custom_call.1} parent=1 // loop_header
      %s34 = sphi 0, %s38
      %p35 = scmp.ge.s32.totalorder %s34, 4
      %s44 = sphi 0, %s46
      %s47 = sphi 0, %s44
      %s48 = sphi 0, %s47
      %s64 = sphi 0, %s48
      %s70 = sphi 0, %s72
      %s73 = sphi 0, %s70
      %s74 = sphi 0, %s73
      %s90 = sphi 0, %s74
      %s94 = sphi 0, %s94
      %s96 = sphi 0, %s94
      %s97 = sphi 0, %s96
      %s111 = sphi 0, %s97
      %s115 = sphi 0, %s115
      %s117 = sphi 0, %s115
      %s118 = sphi 0, %s117
      %s132 = sphi 0, %s118
      %s136 = sphi 0, %s136
      %s138 = sphi 0, %s136
      %s139 = sphi 0, %s138
      %s153 = sphi 0, %s139
      %s157 = sphi 0, %s157
      %s159 = sphi 0, %s157
      %s160 = sphi 0, %s159
      %s174 = sphi 0, %s160
      %s178 = sphi 0, %s178
      %s180 = sphi 0, %s178
      %s181 = sphi 0, %s180
      %s195 = sphi 0, %s181
      %s199 = sphi 0, %s199
      %s201 = sphi 0, %s199
      %s202 = sphi 0, %s201
      %s216 = sphi 0, %s202
      %s220 = sphi 0, %s220
      %s222 = sphi 0, %s220
      %s223 = sphi 0, %s222
      %s237 = sphi 0, %s223
      %s241 = sphi 0, %s241
      %s243 = sphi 0, %s241
      %s244 = sphi 0, %s243
      %s258 = sphi 0, %s244
      %s262 = sphi 0, %s262
      %s264 = sphi 0, %s262
      %s265 = sphi 0, %s264
      %s279 = sphi 0, %s265
      %s283 = sphi 0, %s283
      %s285 = sphi 0, %s283
      %s286 = sphi 0, %s285
      %s300 = sphi 0, %s286
      %s306 = sphi 0, %s308
      %s309 = sphi 0, %s306
      %s310 = sphi 0, %s309
      %s326 = sphi 0, %s310
      %s332 = sphi 0, %s334
      %s335 = sphi 0, %s332
      %s336 = sphi 0, %s335
      %s352 = sphi 0, %s336
    $region4: #{tpu_custom_call.1} parent=1 // loop_header_branch
      %37 = sbr.rel (%p35) target = $region8
    $region5: #{tpu_custom_call.1} parent=1 // loop_body
      %s39 = ssub.s32 %s34, 1
      %s40 = ssub.s32 %s34, 2
      %s41 = sadd.s32 %s34, 1
      %s42 = ssub.s32 %s34, %s41
      %p43 = scmp.eq.s32.totalorder %s42, 0
      %s45 = sadd.s32 %s44, 1
      %s46 = scalar_select %p43, %s44, %s45
      %p49 = pneg %p43
      %p50 = scmp.eq.s32.totalorder %s34, 1
      %p51 = por %p49, %p50
      %p52 = scmp.ne.s32.totalorder %s44, %s47
      %p53 = scmp.eq.s32.totalorder %s34, 0
      %p54 = por %p52, %p53
      %p55 = scmp.ne.s32.totalorder %s44, %s47
      %p56 = scmp.eq.s32.totalorder %s39, 1
      %p57 = por %p55, %p56
      %p58 = scmp.ne.s32.totalorder %s47, %s48
      %p59 = scmp.eq.s32.totalorder %s39, 0
      %p60 = por %p58, %p59
      %p61 = scmp.ne.s32.totalorder %s47, %s48
      %p62 = scmp.eq.s32.totalorder %s40, 1
      %p63 = por %p61, %p62
      %p65 = scmp.ne.s32.totalorder %s48, %s64
      %p66 = scmp.eq.s32.totalorder %s40, 0
      %p67 = por %p65, %p66
      %s68 = ssub.s32 %s34, %s41
      %p69 = scmp.eq.s32.totalorder %s68, 0
      %s71 = sadd.s32 %s70, 1
      %s72 = scalar_select %p69, %s70, %s71
      %p75 = pneg %p69
      %p76 = scmp.eq.s32.totalorder %s34, 1
      %p77 = por %p75, %p76
      %p78 = scmp.ne.s32.totalorder %s70, %s73
      %p79 = scmp.eq.s32.totalorder %s34, 0
      %p80 = por %p78, %p79
      %p81 = scmp.ne.s32.totalorder %s70, %s73
      %p82 = scmp.eq.s32.totalorder %s39, 1
      %p83 = por %p81, %p82
      %p84 = scmp.ne.s32.totalorder %s73, %s74
      %p85 = scmp.eq.s32.totalorder %s39, 0
      %p86 = por %p84, %p85
      %p87 = scmp.ne.s32.totalorder %s73, %s74
      %p88 = scmp.eq.s32.totalorder %s40, 1
      %p89 = por %p87, %p88
      %p91 = scmp.ne.s32.totalorder %s74, %s90
      %p92 = scmp.eq.s32.totalorder %s40, 0
      %p93 = por %p91, %p92
      %s95 = sadd.s32 %s94, 1
      %p98 = scmp.eq.s32.totalorder %s34, 1
      %p99 = scmp.ne.s32.totalorder %s94, %s96
      %p100 = scmp.eq.s32.totalorder %s34, 0
      %p101 = por %p99, %p100
      %p102 = scmp.ne.s32.totalorder %s94, %s96
      %p103 = scmp.eq.s32.totalorder %s39, 1
      %p104 = por %p102, %p103
      %p105 = scmp.ne.s32.totalorder %s96, %s97
      %p106 = scmp.eq.s32.totalorder %s39, 0
      %p107 = por %p105, %p106
      %p108 = scmp.ne.s32.totalorder %s96, %s97
      %p109 = scmp.eq.s32.totalorder %s40, 1
      %p110 = por %p108, %p109
      %p112 = scmp.ne.s32.totalorder %s97, %s111
      %p113 = scmp.eq.s32.totalorder %s40, 0
      %p114 = por %p112, %p113
      %s116 = sadd.s32 %s115, 1
      %p119 = scmp.eq.s32.totalorder %s34, 1
      %p120 = scmp.ne.s32.totalorder %s115, %s117
      %p121 = scmp.eq.s32.totalorder %s34, 0
      %p122 = por %p120, %p121
      %p123 = scmp.ne.s32.totalorder %s115, %s117
      %p124 = scmp.eq.s32.totalorder %s39, 1
      %p125 = por %p123, %p124
      %p126 = scmp.ne.s32.totalorder %s117, %s118
      %p127 = scmp.eq.s32.totalorder %s39, 0
      %p128 = por %p126, %p127
      %p129 = scmp.ne.s32.totalorder %s117, %s118
      %p130 = scmp.eq.s32.totalorder %s40, 1
      %p131 = por %p129, %p130
      %p133 = scmp.ne.s32.totalorder %s118, %s132
      %p134 = scmp.eq.s32.totalorder %s40, 0
      %p135 = por %p133, %p134
      %s137 = sadd.s32 %s136, 1
      %p140 = scmp.eq.s32.totalorder %s34, 1
      %p141 = scmp.ne.s32.totalorder %s136, %s138
      %p142 = scmp.eq.s32.totalorder %s34, 0
      %p143 = por %p141, %p142
      %p144 = scmp.ne.s32.totalorder %s136, %s138
      %p145 = scmp.eq.s32.totalorder %s39, 1
      %p146 = por %p144, %p145
      %p147 = scmp.ne.s32.totalorder %s138, %s139
      %p148 = scmp.eq.s32.totalorder %s39, 0
      %p149 = por %p147, %p148
      %p150 = scmp.ne.s32.totalorder %s138, %s139
      %p151 = scmp.eq.s32.totalorder %s40, 1
      %p152 = por %p150, %p151
      %p154 = scmp.ne.s32.totalorder %s139, %s153
      %p155 = scmp.eq.s32.totalorder %s40, 0
      %p156 = por %p154, %p155
      %s158 = sadd.s32 %s157, 1
      %p161 = scmp.eq.s32.totalorder %s34, 1
      %p162 = scmp.ne.s32.totalorder %s157, %s159
      %p163 = scmp.eq.s32.totalorder %s34, 0
      %p164 = por %p162, %p163
      %p165 = scmp.ne.s32.totalorder %s157, %s159
      %p166 = scmp.eq.s32.totalorder %s39, 1
      %p167 = por %p165, %p166
      %p168 = scmp.ne.s32.totalorder %s159, %s160
      %p169 = scmp.eq.s32.totalorder %s39, 0
      %p170 = por %p168, %p169
      %p171 = scmp.ne.s32.totalorder %s159, %s160
      %p172 = scmp.eq.s32.totalorder %s40, 1
      %p173 = por %p171, %p172
      %p175 = scmp.ne.s32.totalorder %s160, %s174
      %p176 = scmp.eq.s32.totalorder %s40, 0
      %p177 = por %p175, %p176
      %s179 = sadd.s32 %s178, 1
      %p182 = scmp.eq.s32.totalorder %s34, 1
      %p183 = scmp.ne.s32.totalorder %s178, %s180
      %p184 = scmp.eq.s32.totalorder %s34, 0
      %p185 = por %p183, %p184
      %p186 = scmp.ne.s32.totalorder %s178, %s180
      %p187 = scmp.eq.s32.totalorder %s39, 1
      %p188 = por %p186, %p187
      %p189 = scmp.ne.s32.totalorder %s180, %s181
      %p190 = scmp.eq.s32.totalorder %s39, 0
      %p191 = por %p189, %p190
      %p192 = scmp.ne.s32.totalorder %s180, %s181
      %p193 = scmp.eq.s32.totalorder %s40, 1
      %p194 = por %p192, %p193
      %p196 = scmp.ne.s32.totalorder %s181, %s195
      %p197 = scmp.eq.s32.totalorder %s40, 0
      %p198 = por %p196, %p197
      %s200 = sadd.s32 %s199, 1
      %p203 = scmp.eq.s32.totalorder %s34, 1
      %p204 = scmp.ne.s32.totalorder %s199, %s201
      %p205 = scmp.eq.s32.totalorder %s34, 0
      %p206 = por %p204, %p205
      %p207 = scmp.ne.s32.totalorder %s199, %s201
      %p208 = scmp.eq.s32.totalorder %s39, 1
      %p209 = por %p207, %p208
      %p210 = scmp.ne.s32.totalorder %s201, %s202
      %p211 = scmp.eq.s32.totalorder %s39, 0
      %p212 = por %p210, %p211
      %p213 = scmp.ne.s32.totalorder %s201, %s202
      %p214 = scmp.eq.s32.totalorder %s40, 1
      %p215 = por %p213, %p214
      %p217 = scmp.ne.s32.totalorder %s202, %s216
      %p218 = scmp.eq.s32.totalorder %s40, 0
      %p219 = por %p217, %p218
      %s221 = sadd.s32 %s220, 1
      %p224 = scmp.eq.s32.totalorder %s34, 1
      %p225 = scmp.ne.s32.totalorder %s220, %s222
      %p226 = scmp.eq.s32.totalorder %s34, 0
      %p227 = por %p225, %p226
      %p228 = scmp.ne.s32.totalorder %s220, %s222
      %p229 = scmp.eq.s32.totalorder %s39, 1
      %p230 = por %p228, %p229
      %p231 = scmp.ne.s32.totalorder %s222, %s223
      %p232 = scmp.eq.s32.totalorder %s39, 0
      %p233 = por %p231, %p232
      %p234 = scmp.ne.s32.totalorder %s222, %s223
      %p235 = scmp.eq.s32.totalorder %s40, 1
      %p236 = por %p234, %p235
      %p238 = scmp.ne.s32.totalorder %s223, %s237
      %p239 = scmp.eq.s32.totalorder %s40, 0
      %p240 = por %p238, %p239
      %s242 = sadd.s32 %s241, 1
      %p245 = scmp.eq.s32.totalorder %s34, 1
      %p246 = scmp.ne.s32.totalorder %s241, %s243
      %p247 = scmp.eq.s32.totalorder %s34, 0
      %p248 = por %p246, %p247
      %p249 = scmp.ne.s32.totalorder %s241, %s243
      %p250 = scmp.eq.s32.totalorder %s39, 1
      %p251 = por %p249, %p250
      %p252 = scmp.ne.s32.totalorder %s243, %s244
      %p253 = scmp.eq.s32.totalorder %s39, 0
      %p254 = por %p252, %p253
      %p255 = scmp.ne.s32.totalorder %s243, %s244
      %p256 = scmp.eq.s32.totalorder %s40, 1
      %p257 = por %p255, %p256
      %p259 = scmp.ne.s32.totalorder %s244, %s258
      %p260 = scmp.eq.s32.totalorder %s40, 0
      %p261 = por %p259, %p260
      %s263 = sadd.s32 %s262, 1
      %p266 = scmp.eq.s32.totalorder %s34, 1
      %p267 = scmp.ne.s32.totalorder %s262, %s264
      %p268 = scmp.eq.s32.totalorder %s34, 0
      %p269 = por %p267, %p268
      %p270 = scmp.ne.s32.totalorder %s262, %s264
      %p271 = scmp.eq.s32.totalorder %s39, 1
      %p272 = por %p270, %p271
      %p273 = scmp.ne.s32.totalorder %s264, %s265
      %p274 = scmp.eq.s32.totalorder %s39, 0
      %p275 = por %p273, %p274
      %p276 = scmp.ne.s32.totalorder %s264, %s265
      %p277 = scmp.eq.s32.totalorder %s40, 1
      %p278 = por %p276, %p277
      %p280 = scmp.ne.s32.totalorder %s265, %s279
      %p281 = scmp.eq.s32.totalorder %s40, 0
      %p282 = por %p280, %p281
      %s284 = sadd.s32 %s283, 1
      %p287 = scmp.eq.s32.totalorder %s34, 1
      %p288 = scmp.ne.s32.totalorder %s283, %s285
      %p289 = scmp.eq.s32.totalorder %s34, 0
      %p290 = por %p288, %p289
      %p291 = scmp.ne.s32.totalorder %s283, %s285
      %p292 = scmp.eq.s32.totalorder %s39, 1
      %p293 = por %p291, %p292
      %p294 = scmp.ne.s32.totalorder %s285, %s286
      %p295 = scmp.eq.s32.totalorder %s39, 0
      %p296 = por %p294, %p295
      %p297 = scmp.ne.s32.totalorder %s285, %s286
      %p298 = scmp.eq.s32.totalorder %s40, 1
      %p299 = por %p297, %p298
      %p301 = scmp.ne.s32.totalorder %s286, %s300
      %p302 = scmp.eq.s32.totalorder %s40, 0
      %p303 = por %p301, %p302
      %s304 = ssub.s32 %s34, %s41
      %p305 = scmp.eq.s32.totalorder %s304, 0
      %s307 = sadd.s32 %s306, 1
      %s308 = scalar_select %p305, %s306, %s307
      %p311 = pneg %p305
      %p312 = scmp.eq.s32.totalorder %s34, 1
      %p313 = por %p311, %p312
      %p314 = scmp.ne.s32.totalorder %s306, %s309
      %p315 = scmp.eq.s32.totalorder %s34, 0
      %p316 = por %p314, %p315
      %p317 = scmp.ne.s32.totalorder %s306, %s309
      %p318 = scmp.eq.s32.totalorder %s39, 1
      %p319 = por %p317, %p318
      %p320 = scmp.ne.s32.totalorder %s309, %s310
      %p321 = scmp.eq.s32.totalorder %s39, 0
      %p322 = por %p320, %p321
      %p323 = scmp.ne.s32.totalorder %s309, %s310
      %p324 = scmp.eq.s32.totalorder %s40, 1
      %p325 = por %p323, %p324
      %p327 = scmp.ne.s32.totalorder %s310, %s326
      %p328 = scmp.eq.s32.totalorder %s40, 0
      %p329 = por %p327, %p328
      %s330 = ssub.s32 %s34, %s41
      %p331 = scmp.eq.s32.totalorder %s330, 0
      %s333 = sadd.s32 %s332, 1
      %s334 = scalar_select %p331, %s332, %s333
      %p337 = pneg %p331
      %p338 = scmp.eq.s32.totalorder %s34, 1
      %p339 = por %p337, %p338
      %p340 = scmp.ne.s32.totalorder %s332, %s335
      %p341 = scmp.eq.s32.totalorder %s34, 0
      %p342 = por %p340, %p341
      %p343 = scmp.ne.s32.totalorder %s332, %s335
      %p344 = scmp.eq.s32.totalorder %s39, 1
      %p345 = por %p343, %p344
      %p346 = scmp.ne.s32.totalorder %s335, %s336
      %p347 = scmp.eq.s32.totalorder %s39, 0
      %p348 = por %p346, %p347
      %p349 = scmp.ne.s32.totalorder %s335, %s336
      %p350 = scmp.eq.s32.totalorder %s40, 1
      %p351 = por %p349, %p350
      %p353 = scmp.ne.s32.totalorder %s336, %s352
      %p354 = scmp.eq.s32.totalorder %s40, 0
      %p355 = por %p353, %p354
      %p356 = scmp.le.s32.totalorder 1, %s34
      %p357 = scmp.lt.s32.totalorder %s34, 3
      %p358 = pnand %p356, %p357
      %p359 = pneg %p358
      // Predicated region
      $region9: #{tpu_custom_call.1} parent=5 // pred_check
        _
      $region10: #{tpu_custom_call.1} parent=5 // pred_check_branch
        %361 = sbr.rel (%p358) target = $region12
      $region11: #{tpu_custom_call.1} parent=5 // pred_region
        %s362 = ssub.s32 %s34, 1
        // Predicated region
        $region13: #{tpu_custom_call.1} parent=11 // pred_check
          %p363 = pneg %p107
        $region14: #{tpu_custom_call.1} parent=11 // pred_check_branch
          %365 = sbr.rel (%p363) target = $region16
        $region15: #{tpu_custom_call.1} parent=11 // pred_region
          %s367 = ssub.s32 2048, 2048
          %368 = vsyncadd [#allocation6], %s367
          %s369 = sshll.u32 [#allocation7], 4
          %s370 = int_to_ptr.vmem [resolvable:$true] %s369
          %375 = dma.hbm_to_vmem [thread:$0]  %s2, 2048, %s370, [#allocation6], 128, 128, 8
        $region16: #{tpu_custom_call.1} parent=11 // pred_fallthru
          _
        // Predicated region
        $region17: #{tpu_custom_call.1} parent=11 // pred_check
          %p376 = pneg %p128
        $region18: #{tpu_custom_call.1} parent=11 // pred_check_branch
          %378 = sbr.rel (%p376) target = $region20
        $region19: #{tpu_custom_call.1} parent=11 // pred_region
          _
        $region20: #{tpu_custom_call.1} parent=11 // pred_fallthru
          _
        // Predicated region
        $region21: #{tpu_custom_call.1} parent=11 // pred_check
          %p379 = pneg %p149
        $region22: #{tpu_custom_call.1} parent=11 // pred_check_branch
          %381 = sbr.rel (%p379) target = $region24
        $region23: #{tpu_custom_call.1} parent=11 // pred_region
          %s383 = ssub.s32 1024, 1024
          %384 = vsyncadd [#allocation9], %s383
          %s385 = sshll.u32 [#allocation8], 4
          %s386 = int_to_ptr.vmem [resolvable:$true] %s385
          %391 = dma.hbm_to_vmem [thread:$0]  %s4, 1024, %s386, [#allocation9], 64, 64, 4
        $region24: #{tpu_custom_call.1} parent=11 // pred_fallthru
          _
        // Predicated region
        $region25: #{tpu_custom_call.1} parent=11 // pred_check
          %p392 = pneg %p170
        $region26: #{tpu_custom_call.1} parent=11 // pred_check_branch
          %394 = sbr.rel (%p392) target = $region28
        $region27: #{tpu_custom_call.1} parent=11 // pred_region
          _
        $region28: #{tpu_custom_call.1} parent=11 // pred_fallthru
          _
        // Predicated region
        $region29: #{tpu_custom_call.1} parent=11 // pred_check
          %p395 = pneg %p191
        $region30: #{tpu_custom_call.1} parent=11 // pred_check_branch
          %397 = sbr.rel (%p395) target = $region32
        $region31: #{tpu_custom_call.1} parent=11 // pred_region
          %s399 = ssub.s32 1024, 1024
          %400 = vsyncadd [#allocation9], %s399
          %s401 = sshll.u32 [#allocation10], 4
          %s402 = int_to_ptr.vmem [resolvable:$true] %s401
          %407 = dma.hbm_to_vmem [thread:$0]  %s6, 1024, %s402, [#allocation9], 64, 64, 4
        $region32: #{tpu_custom_call.1} parent=11 // pred_fallthru
          _
        // Predicated region
        $region33: #{tpu_custom_call.1} parent=11 // pred_check
          %p408 = pneg %p212
        $region34: #{tpu_custom_call.1} parent=11 // pred_check_branch
          %410 = sbr.rel (%p408) target = $region36
        $region35: #{tpu_custom_call.1} parent=11 // pred_region
          _
        $region36: #{tpu_custom_call.1} parent=11 // pred_fallthru
          _
        // Predicated region
        $region37: #{tpu_custom_call.1} parent=11 // pred_check
          %p411 = pneg %p233
        $region38: #{tpu_custom_call.1} parent=11 // pred_check_branch
          %413 = sbr.rel (%p411) target = $region40
        $region39: #{tpu_custom_call.1} parent=11 // pred_region
          %s415 = ssub.s32 1024, 1024
          %416 = vsyncadd [#allocation12], %s415
          %s417 = sshll.u32 [#allocation11], 4
          %s418 = int_to_ptr.vmem [resolvable:$true] %s417
          %423 = dma.hbm_to_vmem [thread:$0]  %s8, 1024, %s418, [#allocation12], 64, 64, 4
        $region40: #{tpu_custom_call.1} parent=11 // pred_fallthru
          _
        // Predicated region
        $region41: #{tpu_custom_call.1} parent=11 // pred_check
          %p424 = pneg %p254
        $region42: #{tpu_custom_call.1} parent=11 // pred_check_branch
          %426 = sbr.rel (%p424) target = $region44
        $region43: #{tpu_custom_call.1} parent=11 // pred_region
          _
        $region44: #{tpu_custom_call.1} parent=11 // pred_fallthru
          _
        // Predicated region
        $region45: #{tpu_custom_call.1} parent=11 // pred_check
          %p427 = pneg %p275
        $region46: #{tpu_custom_call.1} parent=11 // pred_check_branch
          %429 = sbr.rel (%p427) target = $region48
        $region47: #{tpu_custom_call.1} parent=11 // pred_region
          %s431 = ssub.s32 1024, 1024
          %432 = vsyncadd [#allocation12], %s431
          %s433 = sshll.u32 [#allocation13], 4
          %s434 = int_to_ptr.vmem [resolvable:$true] %s433
          %439 = dma.hbm_to_vmem [thread:$0]  %s10, 1024, %s434, [#allocation12], 64, 64, 4
        $region48: #{tpu_custom_call.1} parent=11 // pred_fallthru
          _
        // Predicated region
        $region49: #{tpu_custom_call.1} parent=11 // pred_check
          %p440 = pneg %p296
        $region50: #{tpu_custom_call.1} parent=11 // pred_check_branch
          %442 = sbr.rel (%p440) target = $region52
        $region51: #{tpu_custom_call.1} parent=11 // pred_region
          _
        $region52: #{tpu_custom_call.1} parent=11 // pred_fallthru
          _
      $region12: #{tpu_custom_call.1} parent=5 // pred_fallthru
        _
      %p443 = scmp.lt.s32.totalorder %s34, 2
      // Predicated region
      $region53: #{tpu_custom_call.1} parent=5 // pred_check
        %p444 = pneg %p443
      $region54: #{tpu_custom_call.1} parent=5 // pred_check_branch
        %446 = sbr.rel (%p444) target = $region56
      $region55: #{tpu_custom_call.1} parent=5 // pred_region
        // Predicated region
        $region57: #{tpu_custom_call.1} parent=55 // pred_check
          %p447 = pneg %p54
        $region58: #{tpu_custom_call.1} parent=55 // pred_check_branch
          %449 = sbr.rel (%p447) target = $region60
        $region59: #{tpu_custom_call.1} parent=55 // pred_region
          %s450 = sand.u32 %s44, 1
          %s451 = scalar_lea.sflag [#allocation3], %s450
          %s452 = sand.u32 %s44, 1
          %s453 = smul.addr %s452, 512
          %s454 = scalar_lea.vmem [#allocation2], %s453
          %s455 = smul.u32 64, %s34
          %s457 = ssub.s32 8192, 8192
          %458 = vsyncadd %s451, %s457
          %s459 = smul.addr %s455, 128
          %s460 = scalar_lea.hbm %s0, %s459
          %s461 = sshll.u32 %s454, 4
          %s462 = int_to_ptr.vmem [resolvable:$true] %s461
          %467 = dma.hbm_to_vmem [thread:$0]  %s460, 8192, %s462, %s451, 128, 128, 8
        $region60: #{tpu_custom_call.1} parent=55 // pred_fallthru
          _
        // Predicated region
        $region61: #{tpu_custom_call.1} parent=55 // pred_check
          %p468 = pneg %p80
        $region62: #{tpu_custom_call.1} parent=55 // pred_check_branch
          %470 = sbr.rel (%p468) target = $region64
        $region63: #{tpu_custom_call.1} parent=55 // pred_region
          %s471 = sand.u32 %s34, 1
          %s472 = scalar_lea.sflag [#allocation6], %s471
          %s473 = sand.u32 %s70, 1
          %s474 = smul.addr %s473, 512
          %s475 = scalar_lea.vmem [#allocation5], %s474
          %s476 = smul.u32 64, %s34
          %s478 = ssub.s32 8192, 8192
          %479 = vsyncadd %s472, %s478
          %s480 = smul.addr %s476, 128
          %s481 = scalar_lea.hbm %s1, %s480
          %s482 = sshll.u32 %s475, 4
          %s483 = int_to_ptr.vmem [resolvable:$true] %s482
          %488 = dma.hbm_to_vmem [thread:$0]  %s481, 8192, %s483, %s472, 128, 128, 8
        $region64: #{tpu_custom_call.1} parent=55 // pred_fallthru
          _
      $region56: #{tpu_custom_call.1} parent=5 // pred_fallthru
        _
      %p489 = scmp.le.s32.totalorder 1, %s34
      %p490 = scmp.lt.s32.totalorder %s34, 3
      %p491 = pnand %p489, %p490
      %p492 = pneg %p491
      // Predicated region
      $region65: #{tpu_custom_call.1} parent=5 // pred_check
        _
      $region66: #{tpu_custom_call.1} parent=5 // pred_check_branch
        %494 = sbr.rel (%p491) target = $region68
      $region67: #{tpu_custom_call.1} parent=5 // pred_region
        %s495 = ssub.s32 %s34, 1
        %s496 = sand.u32 %s47, 1
        %s497 = scalar_lea.sflag [#allocation3], %s496
        %s498 = sand.u32 %s47, 1
        %s499 = smul.addr %s498, 512
        %s500 = scalar_lea.vmem [#allocation2], %s499
        // Predicated region
        $region69: #{tpu_custom_call.1} parent=67 // pred_check
          %p501 = pneg %p60
        $region70: #{tpu_custom_call.1} parent=67 // pred_check_branch
          %503 = sbr.rel (%p501) target = $region72
        $region71: #{tpu_custom_call.1} parent=67 // pred_region
          %504 = dma.done %s497, 8192
        $region72: #{tpu_custom_call.1} parent=67 // pred_fallthru
          _
        %s505 = sand.u32 %s39, 1
        %s506 = scalar_lea.sflag [#allocation6], %s505
        %s507 = sand.u32 %s73, 1
        %s508 = smul.addr %s507, 512
        %s509 = scalar_lea.vmem [#allocation5], %s508
        // Predicated region
        $region73: #{tpu_custom_call.1} parent=67 // pred_check
          %p510 = pneg %p86
        $region74: #{tpu_custom_call.1} parent=67 // pred_check_branch
          %512 = sbr.rel (%p510) target = $region76
        $region75: #{tpu_custom_call.1} parent=67 // pred_region
          %513 = dma.done %s506, 8192
        $region76: #{tpu_custom_call.1} parent=67 // pred_fallthru
          _
        // Predicated region
        $region77: #{tpu_custom_call.1} parent=67 // pred_check
          %p514 = pneg %p107
        $region78: #{tpu_custom_call.1} parent=67 // pred_check_branch
          %516 = sbr.rel (%p514) target = $region80
        $region79: #{tpu_custom_call.1} parent=67 // pred_region
          %517 = dma.done [#allocation6], 2048
        $region80: #{tpu_custom_call.1} parent=67 // pred_fallthru
          _
        // Predicated region
        $region81: #{tpu_custom_call.1} parent=67 // pred_check
          %p518 = pneg %p149
        $region82: #{tpu_custom_call.1} parent=67 // pred_check_branch
          %520 = sbr.rel (%p518) target = $region84
        $region83: #{tpu_custom_call.1} parent=67 // pred_region
          %521 = dma.done [#allocation9], 1024
        $region84: #{tpu_custom_call.1} parent=67 // pred_fallthru
          _
        // Predicated region
        $region85: #{tpu_custom_call.1} parent=67 // pred_check
          %p522 = pneg %p191
        $region86: #{tpu_custom_call.1} parent=67 // pred_check_branch
          %524 = sbr.rel (%p522) target = $region88
        $region87: #{tpu_custom_call.1} parent=67 // pred_region
          %525 = dma.done [#allocation9], 1024
        $region88: #{tpu_custom_call.1} parent=67 // pred_fallthru
          _
        // Predicated region
        $region89: #{tpu_custom_call.1} parent=67 // pred_check
          %p526 = pneg %p233
        $region90: #{tpu_custom_call.1} parent=67 // pred_check_branch
          %528 = sbr.rel (%p526) target = $region92
        $region91: #{tpu_custom_call.1} parent=67 // pred_region
          %529 = dma.done [#allocation12], 1024
        $region92: #{tpu_custom_call.1} parent=67 // pred_fallthru
          _
        // Predicated region
        $region93: #{tpu_custom_call.1} parent=67 // pred_check
          %p530 = pneg %p275
        $region94: #{tpu_custom_call.1} parent=67 // pred_check_branch
          %532 = sbr.rel (%p530) target = $region96
        $region95: #{tpu_custom_call.1} parent=67 // pred_region
          %533 = dma.done [#allocation12], 1024
        $region96: #{tpu_custom_call.1} parent=67 // pred_fallthru
          _
        %s534 = sand.u32 %s47, 1
        %s535 = scalar_lea.sflag [#allocation3], %s534
        %s536 = sand.u32 %s47, 1
        %s537 = smul.addr %s536, 512
        %s538 = scalar_lea.vmem [#allocation2], %s537
        %p539 = pneg %p60
        %p540 = pneg %p57
        %s541 = sand.u32 %s39, 1
        %s542 = scalar_lea.sflag [#allocation6], %s541
        %s543 = sand.u32 %s73, 1
        %s544 = smul.addr %s543, 512
        %s545 = scalar_lea.vmem [#allocation5], %s544
        %p546 = pneg %p86
        %p547 = pneg %p83
        %p548 = pneg %p107
        %p549 = pneg %p104
        %p550 = pneg %p128
        %p551 = pneg %p125
        %p552 = pneg %p149
        %p553 = pneg %p146
        %p554 = pneg %p170
        %p555 = pneg %p167
        %p556 = pneg %p191
        %p557 = pneg %p188
        %p558 = pneg %p212
        %p559 = pneg %p209
        %p560 = pneg %p233
        %p561 = pneg %p230
        %p562 = pneg %p254
        %p563 = pneg %p251
        %p564 = pneg %p275
        %p565 = pneg %p272
        %p566 = pneg %p296
        %p567 = pneg %p293
        %p568 = pneg %p322
        %p569 = pneg %p319
        %s570 = sand.u32 %s309, 1
        %s571 = scalar_lea.sflag [#allocation4], %s570
        %s572 = sand.u32 %s309, 1
        %s573 = smul.addr %s572, 512
        %s574 = scalar_lea.vmem [#allocation14], %s573
        %p575 = pneg %p348
        %p576 = pneg %p345
        %s577 = sand.u32 %s335, 1
        %s578 = scalar_lea.sflag [#allocation16], %s577
        %s579 = sand.u32 %s335, 1
        %s580 = smul.addr %s579, 512
        %s581 = scalar_lea.vmem [#allocation15], %s580
        %s582 = smul.u32 64, %s39
        %s583 = smul.u32 64, %s39
        %s584 = smul.u32 64, %s39
        %s585 = smul.u32 64, %s39
        %v587 = vld [vmem:[%s500] sm:$0xff]
        %v588 = vld [vmem:[%s500 + $0x8] sm:$0xff]
        %v589 = vld [vmem:[%s500 + $0x10] sm:$0xff]
        %v590 = vld [vmem:[%s500 + $0x18] sm:$0xff]
        %v591 = vld [vmem:[%s500 + $0x20] sm:$0xff]
        %v592 = vld [vmem:[%s500 + $0x28] sm:$0xff]
        %v593 = vld [vmem:[%s500 + $0x30] sm:$0xff]
        %v594 = vld [vmem:[%s500 + $0x38] sm:$0xff]
        %v595 = vld [vmem:[%s500 + $0x40] sm:$0xff]
        %v596 = vld [vmem:[%s500 + $0x48] sm:$0xff]
        %v597 = vld [vmem:[%s500 + $0x50] sm:$0xff]
        %v598 = vld [vmem:[%s500 + $0x58] sm:$0xff]
        %v599 = vld [vmem:[%s500 + $0x60] sm:$0xff]
        %v600 = vld [vmem:[%s500 + $0x68] sm:$0xff]
        %v601 = vld [vmem:[%s500 + $0x70] sm:$0xff]
        %v602 = vld [vmem:[%s500 + $0x78] sm:$0xff]
        %v603 = vld [vmem:[%s500 + $0x80] sm:$0xff]
        %v604 = vld [vmem:[%s500 + $0x88] sm:$0xff]
        %v605 = vld [vmem:[%s500 + $0x90] sm:$0xff]
        %v606 = vld [vmem:[%s500 + $0x98] sm:$0xff]
        %v607 = vld [vmem:[%s500 + $0xa0] sm:$0xff]
        %v608 = vld [vmem:[%s500 + $0xa8] sm:$0xff]
        %v609 = vld [vmem:[%s500 + $0xb0] sm:$0xff]
        %v610 = vld [vmem:[%s500 + $0xb8] sm:$0xff]
        %v611 = vld [vmem:[%s500 + $0xc0] sm:$0xff]
        %v612 = vld [vmem:[%s500 + $0xc8] sm:$0xff]
        %v613 = vld [vmem:[%s500 + $0xd0] sm:$0xff]
        %v614 = vld [vmem:[%s500 + $0xd8] sm:$0xff]
        %v615 = vld [vmem:[%s500 + $0xe0] sm:$0xff]
        %v616 = vld [vmem:[%s500 + $0xe8] sm:$0xff]
        %v617 = vld [vmem:[%s500 + $0xf0] sm:$0xff]
        %v618 = vld [vmem:[%s500 + $0xf8] sm:$0xff]
        %v619 = vld [vmem:[%s500 + $0x100] sm:$0xff]
        %v620 = vld [vmem:[%s500 + $0x108] sm:$0xff]
        %v621 = vld [vmem:[%s500 + $0x110] sm:$0xff]
        %v622 = vld [vmem:[%s500 + $0x118] sm:$0xff]
        %v623 = vld [vmem:[%s500 + $0x120] sm:$0xff]
        %v624 = vld [vmem:[%s500 + $0x128] sm:$0xff]
        %v625 = vld [vmem:[%s500 + $0x130] sm:$0xff]
        %v626 = vld [vmem:[%s500 + $0x138] sm:$0xff]
        %v627 = vld [vmem:[%s500 + $0x140] sm:$0xff]
        %v628 = vld [vmem:[%s500 + $0x148] sm:$0xff]
        %v629 = vld [vmem:[%s500 + $0x150] sm:$0xff]
        %v630 = vld [vmem:[%s500 + $0x158] sm:$0xff]
        %v631 = vld [vmem:[%s500 + $0x160] sm:$0xff]
        %v632 = vld [vmem:[%s500 + $0x168] sm:$0xff]
        %v633 = vld [vmem:[%s500 + $0x170] sm:$0xff]
        %v634 = vld [vmem:[%s500 + $0x178] sm:$0xff]
        %v635 = vld [vmem:[%s500 + $0x180] sm:$0xff]
        %v636 = vld [vmem:[%s500 + $0x188] sm:$0xff]
        %v637 = vld [vmem:[%s500 + $0x190] sm:$0xff]
        %v638 = vld [vmem:[%s500 + $0x198] sm:$0xff]
        %v639 = vld [vmem:[%s500 + $0x1a0] sm:$0xff]
        %v640 = vld [vmem:[%s500 + $0x1a8] sm:$0xff]
        %v641 = vld [vmem:[%s500 + $0x1b0] sm:$0xff]
        %v642 = vld [vmem:[%s500 + $0x1b8] sm:$0xff]
        %v643 = vld [vmem:[%s500 + $0x1c0] sm:$0xff]
        %v644 = vld [vmem:[%s500 + $0x1c8] sm:$0xff]
        %v645 = vld [vmem:[%s500 + $0x1d0] sm:$0xff]
        %v646 = vld [vmem:[%s500 + $0x1d8] sm:$0xff]
        %v647 = vld [vmem:[%s500 + $0x1e0] sm:$0xff]
        %v648 = vld [vmem:[%s500 + $0x1e8] sm:$0xff]
        %v649 = vld [vmem:[%s500 + $0x1f0] sm:$0xff]
        %v650 = vld [vmem:[%s500 + $0x1f8] sm:$0xff]
        %v651 = vld [vmem:[%s509] sm:$0xff]
        %v652 = vld [vmem:[%s509 + $0x8] sm:$0xff]
        %v653 = vld [vmem:[%s509 + $0x10] sm:$0xff]
        %v654 = vld [vmem:[%s509 + $0x18] sm:$0xff]
        %v655 = vld [vmem:[%s509 + $0x20] sm:$0xff]
        %v656 = vld [vmem:[%s509 + $0x28] sm:$0xff]
        %v657 = vld [vmem:[%s509 + $0x30] sm:$0xff]
        %v658 = vld [vmem:[%s509 + $0x38] sm:$0xff]
        %v659 = vld [vmem:[%s509 + $0x40] sm:$0xff]
        %v660 = vld [vmem:[%s509 + $0x48] sm:$0xff]
        %v661 = vld [vmem:[%s509 + $0x50] sm:$0xff]
        %v662 = vld [vmem:[%s509 + $0x58] sm:$0xff]
        %v663 = vld [vmem:[%s509 + $0x60] sm:$0xff]
        %v664 = vld [vmem:[%s509 + $0x68] sm:$0xff]
        %v665 = vld [vmem:[%s509 + $0x70] sm:$0xff]
        %v666 = vld [vmem:[%s509 + $0x78] sm:$0xff]
        %v667 = vld [vmem:[%s509 + $0x80] sm:$0xff]
        %v668 = vld [vmem:[%s509 + $0x88] sm:$0xff]
        %v669 = vld [vmem:[%s509 + $0x90] sm:$0xff]
        %v670 = vld [vmem:[%s509 + $0x98] sm:$0xff]
        %v671 = vld [vmem:[%s509 + $0xa0] sm:$0xff]
        %v672 = vld [vmem:[%s509 + $0xa8] sm:$0xff]
        %v673 = vld [vmem:[%s509 + $0xb0] sm:$0xff]
        %v674 = vld [vmem:[%s509 + $0xb8] sm:$0xff]
        %v675 = vld [vmem:[%s509 + $0xc0] sm:$0xff]
        %v676 = vld [vmem:[%s509 + $0xc8] sm:$0xff]
        %v677 = vld [vmem:[%s509 + $0xd0] sm:$0xff]
        %v678 = vld [vmem:[%s509 + $0xd8] sm:$0xff]
        %v679 = vld [vmem:[%s509 + $0xe0] sm:$0xff]
        %v680 = vld [vmem:[%s509 + $0xe8] sm:$0xff]
        %v681 = vld [vmem:[%s509 + $0xf0] sm:$0xff]
        %v682 = vld [vmem:[%s509 + $0xf8] sm:$0xff]
        %v683 = vld [vmem:[%s509 + $0x100] sm:$0xff]
        %v684 = vld [vmem:[%s509 + $0x108] sm:$0xff]
        %v685 = vld [vmem:[%s509 + $0x110] sm:$0xff]
        %v686 = vld [vmem:[%s509 + $0x118] sm:$0xff]
        %v687 = vld [vmem:[%s509 + $0x120] sm:$0xff]
        %v688 = vld [vmem:[%s509 + $0x128] sm:$0xff]
        %v689 = vld [vmem:[%s509 + $0x130] sm:$0xff]
        %v690 = vld [vmem:[%s509 + $0x138] sm:$0xff]
        %v691 = vld [vmem:[%s509 + $0x140] sm:$0xff]
        %v692 = vld [vmem:[%s509 + $0x148] sm:$0xff]
        %v693 = vld [vmem:[%s509 + $0x150] sm:$0xff]
        %v694 = vld [vmem:[%s509 + $0x158] sm:$0xff]
        %v695 = vld [vmem:[%s509 + $0x160] sm:$0xff]
        %v696 = vld [vmem:[%s509 + $0x168] sm:$0xff]
        %v697 = vld [vmem:[%s509 + $0x170] sm:$0xff]
        %v698 = vld [vmem:[%s509 + $0x178] sm:$0xff]
        %v699 = vld [vmem:[%s509 + $0x180] sm:$0xff]
        %v700 = vld [vmem:[%s509 + $0x188] sm:$0xff]
        %v701 = vld [vmem:[%s509 + $0x190] sm:$0xff]
        %v702 = vld [vmem:[%s509 + $0x198] sm:$0xff]
        %v703 = vld [vmem:[%s509 + $0x1a0] sm:$0xff]
        %v704 = vld [vmem:[%s509 + $0x1a8] sm:$0xff]
        %v705 = vld [vmem:[%s509 + $0x1b0] sm:$0xff]
        %v706 = vld [vmem:[%s509 + $0x1b8] sm:$0xff]
        %v707 = vld [vmem:[%s509 + $0x1c0] sm:$0xff]
        %v708 = vld [vmem:[%s509 + $0x1c8] sm:$0xff]
        %v709 = vld [vmem:[%s509 + $0x1d0] sm:$0xff]
        %v710 = vld [vmem:[%s509 + $0x1d8] sm:$0xff]
        %v711 = vld [vmem:[%s509 + $0x1e0] sm:$0xff]
        %v712 = vld [vmem:[%s509 + $0x1e8] sm:$0xff]
        %v713 = vld [vmem:[%s509 + $0x1f0] sm:$0xff]
        %v714 = vld [vmem:[%s509 + $0x1f8] sm:$0xff]
        %v715 = vpack.c.bf16 %v652, %v651
        %v716 = vpack.c.bf16 %v654, %v653
        %v717 = vpack.c.bf16 %v656, %v655
        %v718 = vpack.c.bf16 %v658, %v657
        %v719 = vpack.c.bf16 %v660, %v659
        %v720 = vpack.c.bf16 %v662, %v661
        %v721 = vpack.c.bf16 %v664, %v663
        %v722 = vpack.c.bf16 %v666, %v665
        %v723 = vpack.c.bf16 %v668, %v667
        %v724 = vpack.c.bf16 %v670, %v669
        %v725 = vpack.c.bf16 %v672, %v671
        %v726 = vpack.c.bf16 %v674, %v673
        %v727 = vpack.c.bf16 %v676, %v675
        %v728 = vpack.c.bf16 %v678, %v677
        %v729 = vpack.c.bf16 %v680, %v679
        %v730 = vpack.c.bf16 %v682, %v681
        %v731 = vpack.c.bf16 %v684, %v683
        %v732 = vpack.c.bf16 %v686, %v685
        %v733 = vpack.c.bf16 %v688, %v687
        %v734 = vpack.c.bf16 %v690, %v689
        %v735 = vpack.c.bf16 %v692, %v691
        %v736 = vpack.c.bf16 %v694, %v693
        %v737 = vpack.c.bf16 %v696, %v695
        %v738 = vpack.c.bf16 %v698, %v697
        %v739 = vpack.c.bf16 %v700, %v699
        %v740 = vpack.c.bf16 %v702, %v701
        %v741 = vpack.c.bf16 %v704, %v703
        %v742 = vpack.c.bf16 %v706, %v705
        %v743 = vpack.c.bf16 %v708, %v707
        %v744 = vpack.c.bf16 %v710, %v709
        %v745 = vpack.c.bf16 %v712, %v711
        %v746 = vpack.c.bf16 %v714, %v713
        %v747 = vld [vmem:[#allocation7] sm:$0xff]
        %v748 = vld [vmem:[#allocation7 + $0x8] sm:$0xff]
        %v749 = vld [vmem:[#allocation7 + $0x10] sm:$0xff]
        %v750 = vld [vmem:[#allocation7 + $0x18] sm:$0xff]
        %v751 = vld [vmem:[#allocation7 + $0x20] sm:$0xff]
        %v752 = vld [vmem:[#allocation7 + $0x28] sm:$0xff]
        %v753 = vld [vmem:[#allocation7 + $0x30] sm:$0xff]
        %v754 = vld [vmem:[#allocation7 + $0x38] sm:$0xff]
        %v755 = vld [vmem:[#allocation7 + $0x40] sm:$0xff]
        %v756 = vld [vmem:[#allocation7 + $0x48] sm:$0xff]
        %v757 = vld [vmem:[#allocation7 + $0x50] sm:$0xff]
        %v758 = vld [vmem:[#allocation7 + $0x58] sm:$0xff]
        %v759 = vld [vmem:[#allocation7 + $0x60] sm:$0xff]
        %v760 = vld [vmem:[#allocation7 + $0x68] sm:$0xff]
        %v761 = vld [vmem:[#allocation7 + $0x70] sm:$0xff]
        %v762 = vld [vmem:[#allocation7 + $0x78] sm:$0xff]
        %v763 = vld [vmem:[%s3] sm:$0x3]
        %v765 = vlaneseq
        %v766 = vshrl.u32 %v765, 7
        %v767 = vsub.s32 0, %v766
        %v768 = vrot.slane %v763, %v767
        %v769 = vlaneseq
        %v770 = vshrl.u32 %v769, 7
        %v771 = vsub.s32 1, %v770
        %v772 = vrot.slane %v763, %v771
        %v791 = vunpack.c.l.b16 %v747
        %v792 = vunpack.c.h.b16 %v747
        %v793 = vunpack.c.l.b16 %v748
        %v794 = vunpack.c.h.b16 %v748
        %v795 = vunpack.c.l.b16 %v749
        %v796 = vunpack.c.h.b16 %v749
        %v797 = vunpack.c.l.b16 %v750
        %v798 = vunpack.c.h.b16 %v750
        %v799 = vunpack.c.l.b16 %v751
        %v800 = vunpack.c.h.b16 %v751
        %v801 = vunpack.c.l.b16 %v752
        %v802 = vunpack.c.h.b16 %v752
        %v803 = vunpack.c.l.b16 %v753
        %v804 = vunpack.c.h.b16 %v753
        %v805 = vunpack.c.l.b16 %v754
        %v806 = vunpack.c.h.b16 %v754
        %v807 = vunpack.c.l.b16 %v755
        %v808 = vunpack.c.h.b16 %v755
        %v809 = vunpack.c.l.b16 %v756
        %v810 = vunpack.c.h.b16 %v756
        %v811 = vunpack.c.l.b16 %v757
        %v812 = vunpack.c.h.b16 %v757
        %v813 = vunpack.c.l.b16 %v758
        %v814 = vunpack.c.h.b16 %v758
        %v815 = vunpack.c.l.b16 %v759
        %v816 = vunpack.c.h.b16 %v759
        %v817 = vunpack.c.l.b16 %v760
        %v818 = vunpack.c.h.b16 %v760
        %v819 = vunpack.c.l.b16 %v761
        %v820 = vunpack.c.h.b16 %v761
        %v821 = vunpack.c.l.b16 %v762
        %v822 = vunpack.c.h.b16 %v762
        %v823 = vpack.c.b16 %v793, %v791
        %v824 = vpack.c.b16 %v794, %v792
        %v825 = vpack.c.b16 %v797, %v795
        %v826 = vpack.c.b16 %v798, %v796
        %v827 = vpack.c.b16 %v801, %v799
        %v828 = vpack.c.b16 %v802, %v800
        %v829 = vpack.c.b16 %v805, %v803
        %v830 = vpack.c.b16 %v806, %v804
        %v831 = vpack.c.b16 %v809, %v807
        %v832 = vpack.c.b16 %v810, %v808
        %v833 = vpack.c.b16 %v813, %v811
        %v834 = vpack.c.b16 %v814, %v812
        %v835 = vpack.c.b16 %v817, %v815
        %v836 = vpack.c.b16 %v818, %v816
        %v837 = vpack.c.b16 %v821, %v819
        %v838 = vpack.c.b16 %v822, %v820
        %855 = vmatprep.subr.bf16.mxu0 %v824
        %856 = vmatpush1.bf16.msra.mxu0 %v823
        %857 = vmatprep.subr.bf16.mxu0 %v826
        %858 = vmatpush1.bf16.msra.mxu0 %v825
        %859 = vmatprep.subr.bf16.mxu0 %v828
        %860 = vmatpush1.bf16.msra.mxu0 %v827
        %861 = vmatprep.subr.bf16.mxu0 %v830
        %862 = vmatpush1.bf16.msra.mxu0 %v829
        %863 = vmatprep.subr.bf16.mxu0 %v832
        %864 = vmatpush1.bf16.msra.mxu0 %v831
        %865 = vmatprep.subr.bf16.mxu0 %v834
        %866 = vmatpush1.bf16.msra.mxu0 %v833
        %867 = vmatprep.subr.bf16.mxu0 %v836
        %868 = vmatpush1.bf16.msra.mxu0 %v835
        %869 = vmatprep.subr.bf16.mxu0 %v838
        %870 = vmatpush1.bf16.msra.mxu0 %v837
        %871 = vmatprep.subr.bf16.mxu0 0
        %872 = vmatpush1.bf16.msra.mxu0 0
        %873 = vmatprep.subr.bf16.mxu0 0
        %874 = vmatpush1.bf16.msra.mxu0 0
        %875 = vmatprep.subr.bf16.mxu0 0
        %876 = vmatpush1.bf16.msra.mxu0 0
        %877 = vmatprep.subr.bf16.mxu0 0
        %878 = vmatpush1.bf16.msra.mxu0 0
        %879 = vmatprep.subr.bf16.mxu0 0
        %880 = vmatpush1.bf16.msra.mxu0 0
        %881 = vmatprep.subr.bf16.mxu0 0
        %882 = vmatpush1.bf16.msra.mxu0 0
        %883 = vmatprep.subr.bf16.mxu0 0
        %884 = vmatpush1.bf16.msra.mxu0 0
        %885 = vmatprep.subr.bf16.mxu0 0
        %886 = vmatpush1.bf16.msra.mxu0 0
        %887 = vmatprep.mubr.bf16.mxu0 0
        %888 = vmatmul.mubr.bf16.gmra.mrb[0].mxu0 %v715
        %v889 = vpop.f32.mrb[0].mxu0
        %v890 = vadd.f32 %v768, %v889
        %v891 = vpop.f32.mrb[0].mxu0
        %v892 = vadd.f32 %v772, %v891
        %v893 = vpop.f32.mrb[0].mxu0
        %v894 = vadd.f32 %v768, %v893
        %v895 = vpop.f32.mrb[0].mxu0
        %v896 = vadd.f32 %v772, %v895
        %897 = vmatprep.mubr.bf16.mxu0 0
        %898 = vmatmul.mubr.bf16.gmra.mrb[0].mxu0 %v716
        %v899 = vpop.f32.mrb[0].mxu0
        %v900 = vadd.f32 %v768, %v899
        %v901 = vpop.f32.mrb[0].mxu0
        %v902 = vadd.f32 %v772, %v901
        %v903 = vpop.f32.mrb[0].mxu0
        %v904 = vadd.f32 %v768, %v903
        %v905 = vpop.f32.mrb[0].mxu0
        %v906 = vadd.f32 %v772, %v905
        %907 = vmatprep.mubr.bf16.mxu0 0
        %908 = vmatmul.mubr.bf16.gmra.mrb[0].mxu0 %v717
        %v909 = vpop.f32.mrb[0].mxu0
        %v910 = vadd.f32 %v768, %v909
        %v911 = vpop.f32.mrb[0].mxu0
        %v912 = vadd.f32 %v772, %v911
        %v913 = vpop.f32.mrb[0].mxu0
        %v914 = vadd.f32 %v768, %v913
        %v915 = vpop.f32.mrb[0].mxu0
        %v916 = vadd.f32 %v772, %v915
        %917 = vmatprep.mubr.bf16.mxu0 0
        %918 = vmatmul.mubr.bf16.gmra.mrb[0].mxu0 %v718
        %v919 = vpop.f32.mrb[0].mxu0
        %v920 = vadd.f32 %v768, %v919
        %v921 = vpop.f32.mrb[0].mxu0
        %v922 = vadd.f32 %v772, %v921
        %v923 = vpop.f32.mrb[0].mxu0
        %v924 = vadd.f32 %v768, %v923
        %v925 = vpop.f32.mrb[0].mxu0
        %v926 = vadd.f32 %v772, %v925
        %927 = vmatprep.mubr.bf16.mxu0 0
        %928 = vmatmul.mubr.bf16.gmra.mrb[0].mxu0 %v719
        %v929 = vpop.f32.mrb[0].mxu0
        %v930 = vadd.f32 %v768, %v929
        %v931 = vpop.f32.mrb[0].mxu0
        %v932 = vadd.f32 %v772, %v931
        %v933 = vpop.f32.mrb[0].mxu0
        %v934 = vadd.f32 %v768, %v933
        %v935 = vpop.f32.mrb[0].mxu0
        %v936 = vadd.f32 %v772, %v935
        %937 = vmatprep.mubr.bf16.mxu0 0
        %938 = vmatmul.mubr.bf16.gmra.mrb[0].mxu0 %v720
        %v939 = vpop.f32.mrb[0].mxu0
        %v940 = vadd.f32 %v768, %v939
        %v941 = vpop.f32.mrb[0].mxu0
        %v942 = vadd.f32 %v772, %v941
        %v943 = vpop.f32.mrb[0].mxu0
        %v944 = vadd.f32 %v768, %v943
        %v945 = vpop.f32.mrb[0].mxu0
        %v946 = vadd.f32 %v772, %v945
        %947 = vmatprep.mubr.bf16.mxu0 0
        %948 = vmatmul.mubr.bf16.gmra.mrb[0].mxu0 %v721
        %v949 = vpop.f32.mrb[0].mxu0
        %v950 = vadd.f32 %v768, %v949
        %v951 = vpop.f32.mrb[0].mxu0
        %v952 = vadd.f32 %v772, %v951
        %v953 = vpop.f32.mrb[0].mxu0
        %v954 = vadd.f32 %v768, %v953
        %v955 = vpop.f32.mrb[0].mxu0
        %v956 = vadd.f32 %v772, %v955
        %957 = vmatprep.mubr.bf16.mxu0 0
        %958 = vmatmul.mubr.bf16.gmra.mrb[0].mxu0 %v722
        %v959 = vpop.f32.mrb[0].mxu0
        %v960 = vadd.f32 %v768, %v959
        %v961 = vpop.f32.mrb[0].mxu0
        %v962 = vadd.f32 %v772, %v961
        %v963 = vpop.f32.mrb[0].mxu0
        %v964 = vadd.f32 %v768, %v963
        %v965 = vpop.f32.mrb[0].mxu0
        %v966 = vadd.f32 %v772, %v965
        %967 = vmatprep.mubr.bf16.mxu0 0
        %968 = vmatmul.mubr.bf16.gmra.mrb[0].mxu0 %v723
        %v969 = vpop.f32.mrb[0].mxu0
        %v970 = vadd.f32 %v768, %v969
        %v971 = vpop.f32.mrb[0].mxu0
        %v972 = vadd.f32 %v772, %v971
        %v973 = vpop.f32.mrb[0].mxu0
        %v974 = vadd.f32 %v768, %v973
        %v975 = vpop.f32.mrb[0].mxu0
        %v976 = vadd.f32 %v772, %v975
        %977 = vmatprep.mubr.bf16.mxu0 0
        %978 = vmatmul.mubr.bf16.gmra.mrb[0].mxu0 %v724
        %v979 = vpop.f32.mrb[0].mxu0
        %v980 = vadd.f32 %v768, %v979
        %v981 = vpop.f32.mrb[0].mxu0
        %v982 = vadd.f32 %v772, %v981
        %v983 = vpop.f32.mrb[0].mxu0
        %v984 = vadd.f32 %v768, %v983
        %v985 = vpop.f32.mrb[0].mxu0
        %v986 = vadd.f32 %v772, %v985
        %987 = vmatprep.mubr.bf16.mxu0 0
        %988 = vmatmul.mubr.bf16.gmra.mrb[0].mxu0 %v725
        %v989 = vpop.f32.mrb[0].mxu0
        %v990 = vadd.f32 %v768, %v989
        %v991 = vpop.f32.mrb[0].mxu0
        %v992 = vadd.f32 %v772, %v991
        %v993 = vpop.f32.mrb[0].mxu0
        %v994 = vadd.f32 %v768, %v993
        %v995 = vpop.f32.mrb[0].mxu0
        %v996 = vadd.f32 %v772, %v995
        %997 = vmatprep.mubr.bf16.mxu0 0
        %998 = vmatmul.mubr.bf16.gmra.mrb[0].mxu0 %v726
        %v999 = vpop.f32.mrb[0].mxu0
        %v1000 = vadd.f32 %v768, %v999
        %v1001 = vpop.f32.mrb[0].mxu0
        %v1002 = vadd.f32 %v772, %v1001
        %v1003 = vpop.f32.mrb[0].mxu0
        %v1004 = vadd.f32 %v768, %v1003
        %v1005 = vpop.f32.mrb[0].mxu0
        %v1006 = vadd.f32 %v772, %v1005
        %1007 = vmatprep.mubr.bf16.mxu0 0
        %1008 = vmatmul.mubr.bf16.gmra.mrb[0].mxu0 %v727
        %v1009 = vpop.f32.mrb[0].mxu0
        %v1010 = vadd.f32 %v768, %v1009
        %v1011 = vpop.f32.mrb[0].mxu0
        %v1012 = vadd.f32 %v772, %v1011
        %v1013 = vpop.f32.mrb[0].mxu0
        %v1014 = vadd.f32 %v768, %v1013
        %v1015 = vpop.f32.mrb[0].mxu0
        %v1016 = vadd.f32 %v772, %v1015
        %1017 = vmatprep.mubr.bf16.mxu0 0
        %1018 = vmatmul.mubr.bf16.gmra.mrb[0].mxu0 %v728
        %v1019 = vpop.f32.mrb[0].mxu0
        %v1020 = vadd.f32 %v768, %v1019
        %v1021 = vpop.f32.mrb[0].mxu0
        %v1022 = vadd.f32 %v772, %v1021
        %v1023 = vpop.f32.mrb[0].mxu0
        %v1024 = vadd.f32 %v768, %v1023
        %v1025 = vpop.f32.mrb[0].mxu0
        %v1026 = vadd.f32 %v772, %v1025
        %1027 = vmatprep.mubr.bf16.mxu0 0
        %1028 = vmatmul.mubr.bf16.gmra.mrb[0].mxu0 %v729
        %v1029 = vpop.f32.mrb[0].mxu0
        %v1030 = vadd.f32 %v768, %v1029
        %v1031 = vpop.f32.mrb[0].mxu0
        %v1032 = vadd.f32 %v772, %v1031
        %v1033 = vpop.f32.mrb[0].mxu0
        %v1034 = vadd.f32 %v768, %v1033
        %v1035 = vpop.f32.mrb[0].mxu0
        %v1036 = vadd.f32 %v772, %v1035
        %1037 = vmatprep.mubr.bf16.mxu0 0
        %1038 = vmatmul.mubr.bf16.gmra.mrb[0].mxu0 %v730
        %v1039 = vpop.f32.mrb[0].mxu0
        %v1040 = vadd.f32 %v768, %v1039
        %v1041 = vpop.f32.mrb[0].mxu0
        %v1042 = vadd.f32 %v772, %v1041
        %v1043 = vpop.f32.mrb[0].mxu0
        %v1044 = vadd.f32 %v768, %v1043
        %v1045 = vpop.f32.mrb[0].mxu0
        %v1046 = vadd.f32 %v772, %v1045
        %1047 = vmatprep.mubr.bf16.mxu0 0
        %1048 = vmatmul.mubr.bf16.gmra.mrb[0].mxu0 %v731
        %v1049 = vpop.f32.mrb[0].mxu0
        %v1050 = vadd.f32 %v768, %v1049
        %v1051 = vpop.f32.mrb[0].mxu0
        %v1052 = vadd.f32 %v772, %v1051
        %v1053 = vpop.f32.mrb[0].mxu0
        %v1054 = vadd.f32 %v768, %v1053
        %v1055 = vpop.f32.mrb[0].mxu0
        %v1056 = vadd.f32 %v772, %v1055
        %1057 = vmatprep.mubr.bf16.mxu0 0
        %1058 = vmatmul.mubr.bf16.gmra.mrb[0].mxu0 %v732
        %v1059 = vpop.f32.mrb[0].mxu0
        %v1060 = vadd.f32 %v768, %v1059
        %v1061 = vpop.f32.mrb[0].mxu0
        %v1062 = vadd.f32 %v772, %v1061
        %v1063 = vpop.f32.mrb[0].mxu0
        %v1064 = vadd.f32 %v768, %v1063
        %v1065 = vpop.f32.mrb[0].mxu0
        %v1066 = vadd.f32 %v772, %v1065
        %1067 = vmatprep.mubr.bf16.mxu0 0
        %1068 = vmatmul.mubr.bf16.gmra.mrb[0].mxu0 %v733
        %v1069 = vpop.f32.mrb[0].mxu0
        %v1070 = vadd.f32 %v768, %v1069
        %v1071 = vpop.f32.mrb[0].mxu0
        %v1072 = vadd.f32 %v772, %v1071
        %v1073 = vpop.f32.mrb[0].mxu0
        %v1074 = vadd.f32 %v768, %v1073
        %v1075 = vpop.f32.mrb[0].mxu0
        %v1076 = vadd.f32 %v772, %v1075
        %1077 = vmatprep.mubr.bf16.mxu0 0
        %1078 = vmatmul.mubr.bf16.gmra.mrb[0].mxu0 %v734
        %v1079 = vpop.f32.mrb[0].mxu0
        %v1080 = vadd.f32 %v768, %v1079
        %v1081 = vpop.f32.mrb[0].mxu0
        %v1082 = vadd.f32 %v772, %v1081
        %v1083 = vpop.f32.mrb[0].mxu0
        %v1084 = vadd.f32 %v768, %v1083
        %v1085 = vpop.f32.mrb[0].mxu0
        %v1086 = vadd.f32 %v772, %v1085
        %1087 = vmatprep.mubr.bf16.mxu0 0
        %1088 = vmatmul.mubr.bf16.gmra.mrb[0].mxu0 %v735
        %v1089 = vpop.f32.mrb[0].mxu0
        %v1090 = vadd.f32 %v768, %v1089
        %v1091 = vpop.f32.mrb[0].mxu0
        %v1092 = vadd.f32 %v772, %v1091
        %v1093 = vpop.f32.mrb[0].mxu0
        %v1094 = vadd.f32 %v768, %v1093
        %v1095 = vpop.f32.mrb[0].mxu0
        %v1096 = vadd.f32 %v772, %v1095
        %1097 = vmatprep.mubr.bf16.mxu0 0
        %1098 = vmatmul.mubr.bf16.gmra.mrb[0].mxu0 %v736
        %v1099 = vpop.f32.mrb[0].mxu0
        %v1100 = vadd.f32 %v768, %v1099
        %v1101 = vpop.f32.mrb[0].mxu0
        %v1102 = vadd.f32 %v772, %v1101
        %v1103 = vpop.f32.mrb[0].mxu0
        %v1104 = vadd.f32 %v768, %v1103
        %v1105 = vpop.f32.mrb[0].mxu0
        %v1106 = vadd.f32 %v772, %v1105
        %1107 = vmatprep.mubr.bf16.mxu0 0
        %1108 = vmatmul.mubr.bf16.gmra.mrb[0].mxu0 %v737
        %v1109 = vpop.f32.mrb[0].mxu0
        %v1110 = vadd.f32 %v768, %v1109
        %v1111 = vpop.f32.mrb[0].mxu0
        %v1112 = vadd.f32 %v772, %v1111
        %v1113 = vpop.f32.mrb[0].mxu0
        %v1114 = vadd.f32 %v768, %v1113
        %v1115 = vpop.f32.mrb[0].mxu0
        %v1116 = vadd.f32 %v772, %v1115
        %1117 = vmatprep.mubr.bf16.mxu0 0
        %1118 = vmatmul.mubr.bf16.gmra.mrb[0].mxu0 %v738
        %v1119 = vpop.f32.mrb[0].mxu0
        %v1120 = vadd.f32 %v768, %v1119
        %v1121 = vpop.f32.mrb[0].mxu0
        %v1122 = vadd.f32 %v772, %v1121
        %v1123 = vpop.f32.mrb[0].mxu0
        %v1124 = vadd.f32 %v768, %v1123
        %v1125 = vpop.f32.mrb[0].mxu0
        %v1126 = vadd.f32 %v772, %v1125
        %1127 = vmatprep.mubr.bf16.mxu0 0
        %1128 = vmatmul.mubr.bf16.gmra.mrb[0].mxu0 %v739
        %v1129 = vpop.f32.mrb[0].mxu0
        %v1130 = vadd.f32 %v768, %v1129
        %v1131 = vpop.f32.mrb[0].mxu0
        %v1132 = vadd.f32 %v772, %v1131
        %v1133 = vpop.f32.mrb[0].mxu0
        %v1134 = vadd.f32 %v768, %v1133
        %v1135 = vpop.f32.mrb[0].mxu0
        %v1136 = vadd.f32 %v772, %v1135
        %1137 = vmatprep.mubr.bf16.mxu0 0
        %1138 = vmatmul.mubr.bf16.gmra.mrb[0].mxu0 %v740
        %v1139 = vpop.f32.mrb[0].mxu0
        %v1140 = vadd.f32 %v768, %v1139
        %v1141 = vpop.f32.mrb[0].mxu0
        %v1142 = vadd.f32 %v772, %v1141
        %v1143 = vpop.f32.mrb[0].mxu0
        %v1144 = vadd.f32 %v768, %v1143
        %v1145 = vpop.f32.mrb[0].mxu0
        %v1146 = vadd.f32 %v772, %v1145
        %1147 = vmatprep.mubr.bf16.mxu0 0
        %1148 = vmatmul.mubr.bf16.gmra.mrb[0].mxu0 %v741
        %v1149 = vpop.f32.mrb[0].mxu0
        %v1150 = vadd.f32 %v768, %v1149
        %v1151 = vpop.f32.mrb[0].mxu0
        %v1152 = vadd.f32 %v772, %v1151
        %v1153 = vpop.f32.mrb[0].mxu0
        %v1154 = vadd.f32 %v768, %v1153
        %v1155 = vpop.f32.mrb[0].mxu0
        %v1156 = vadd.f32 %v772, %v1155
        %1157 = vmatprep.mubr.bf16.mxu0 0
        %1158 = vmatmul.mubr.bf16.gmra.mrb[0].mxu0 %v742
        %v1159 = vpop.f32.mrb[0].mxu0
        %v1160 = vadd.f32 %v768, %v1159
        %v1161 = vpop.f32.mrb[0].mxu0
        %v1162 = vadd.f32 %v772, %v1161
        %v1163 = vpop.f32.mrb[0].mxu0
        %v1164 = vadd.f32 %v768, %v1163
        %v1165 = vpop.f32.mrb[0].mxu0
        %v1166 = vadd.f32 %v772, %v1165
        %1167 = vmatprep.mubr.bf16.mxu0 0
        %1168 = vmatmul.mubr.bf16.gmra.mrb[0].mxu0 %v743
        %v1169 = vpop.f32.mrb[0].mxu0
        %v1170 = vadd.f32 %v768, %v1169
        %v1171 = vpop.f32.mrb[0].mxu0
        %v1172 = vadd.f32 %v772, %v1171
        %v1173 = vpop.f32.mrb[0].mxu0
        %v1174 = vadd.f32 %v768, %v1173
        %v1175 = vpop.f32.mrb[0].mxu0
        %v1176 = vadd.f32 %v772, %v1175
        %1177 = vmatprep.mubr.bf16.mxu0 0
        %1178 = vmatmul.mubr.bf16.gmra.mrb[0].mxu0 %v744
        %v1179 = vpop.f32.mrb[0].mxu0
        %v1180 = vadd.f32 %v768, %v1179
        %v1181 = vpop.f32.mrb[0].mxu0
        %v1182 = vadd.f32 %v772, %v1181
        %v1183 = vpop.f32.mrb[0].mxu0
        %v1184 = vadd.f32 %v768, %v1183
        %v1185 = vpop.f32.mrb[0].mxu0
        %v1186 = vadd.f32 %v772, %v1185
        %1187 = vmatprep.mubr.bf16.mxu0 0
        %1188 = vmatmul.mubr.bf16.gmra.mrb[0].mxu0 %v745
        %v1189 = vpop.f32.mrb[0].mxu0
        %v1190 = vadd.f32 %v768, %v1189
        %v1191 = vpop.f32.mrb[0].mxu0
        %v1192 = vadd.f32 %v772, %v1191
        %v1193 = vpop.f32.mrb[0].mxu0
        %v1194 = vadd.f32 %v768, %v1193
        %v1195 = vpop.f32.mrb[0].mxu0
        %v1196 = vadd.f32 %v772, %v1195
        %1197 = vmatprep.mubr.bf16.mxu0 0
        %1198 = vmatmul.mubr.bf16.gmra.mrb[0].mxu0 %v746
        %v1199 = vpop.f32.mrb[0].mxu0
        %v1200 = vadd.f32 %v768, %v1199
        %v1201 = vpop.f32.mrb[0].mxu0
        %v1202 = vadd.f32 %v772, %v1201
        %v1203 = vpop.f32.mrb[0].mxu0
        %v1204 = vadd.f32 %v768, %v1203
        %v1205 = vpop.f32.mrb[0].mxu0
        %v1206 = vadd.f32 %v772, %v1205
        %1207 = vdwg.mxu0
        %v1208 = vmul.f32 %v890, 0.5
        %v1209 = vmul.f32 %v892, 0.5
        %v1210 = vmul.f32 %v894, 0.5
        %v1211 = vmul.f32 %v896, 0.5
        %v1212 = vmul.f32 %v900, 0.5
        %v1213 = vmul.f32 %v902, 0.5
        %v1214 = vmul.f32 %v904, 0.5
        %v1215 = vmul.f32 %v906, 0.5
        %v1216 = vmul.f32 %v910, 0.5
        %v1217 = vmul.f32 %v912, 0.5
        %v1218 = vmul.f32 %v914, 0.5
        %v1219 = vmul.f32 %v916, 0.5
        %v1220 = vmul.f32 %v920, 0.5
        %v1221 = vmul.f32 %v922, 0.5
        %v1222 = vmul.f32 %v924, 0.5
        %v1223 = vmul.f32 %v926, 0.5
        %v1224 = vmul.f32 %v930, 0.5
        %v1225 = vmul.f32 %v932, 0.5
        %v1226 = vmul.f32 %v934, 0.5
        %v1227 = vmul.f32 %v936, 0.5
        %v1228 = vmul.f32 %v940, 0.5
        %v1229 = vmul.f32 %v942, 0.5
        %v1230 = vmul.f32 %v944, 0.5
        %v1231 = vmul.f32 %v946, 0.5
        %v1232 = vmul.f32 %v950, 0.5
        %v1233 = vmul.f32 %v952, 0.5
        %v1234 = vmul.f32 %v954, 0.5
        %v1235 = vmul.f32 %v956, 0.5
        %v1236 = vmul.f32 %v960, 0.5
        %v1237 = vmul.f32 %v962, 0.5
        %v1238 = vmul.f32 %v964, 0.5
        %v1239 = vmul.f32 %v966, 0.5
        %v1240 = vmul.f32 %v970, 0.5
        %v1241 = vmul.f32 %v972, 0.5
        %v1242 = vmul.f32 %v974, 0.5
        %v1243 = vmul.f32 %v976, 0.5
        %v1244 = vmul.f32 %v980, 0.5
        %v1245 = vmul.f32 %v982, 0.5
        %v1246 = vmul.f32 %v984, 0.5
        %v1247 = vmul.f32 %v986, 0.5
        %v1248 = vmul.f32 %v990, 0.5
        %v1249 = vmul.f32 %v992, 0.5
        %v1250 = vmul.f32 %v994, 0.5
        %v1251 = vmul.f32 %v996, 0.5
        %v1252 = vmul.f32 %v1000, 0.5
        %v1253 = vmul.f32 %v1002, 0.5
        %v1254 = vmul.f32 %v1004, 0.5
        %v1255 = vmul.f32 %v1006, 0.5
        %v1256 = vmul.f32 %v1010, 0.5
        %v1257 = vmul.f32 %v1012, 0.5
        %v1258 = vmul.f32 %v1014, 0.5
        %v1259 = vmul.f32 %v1016, 0.5
        %v1260 = vmul.f32 %v1020, 0.5
        %v1261 = vmul.f32 %v1022, 0.5
        %v1262 = vmul.f32 %v1024, 0.5
        %v1263 = vmul.f32 %v1026, 0.5
        %v1264 = vmul.f32 %v1030, 0.5
        %v1265 = vmul.f32 %v1032, 0.5
        %v1266 = vmul.f32 %v1034, 0.5
        %v1267 = vmul.f32 %v1036, 0.5
        %v1268 = vmul.f32 %v1040, 0.5
        %v1269 = vmul.f32 %v1042, 0.5
        %v1270 = vmul.f32 %v1044, 0.5
        %v1271 = vmul.f32 %v1046, 0.5
        %v1272 = vmul.f32 %v1050, 0.5
        %v1273 = vmul.f32 %v1052, 0.5
        %v1274 = vmul.f32 %v1054, 0.5
        %v1275 = vmul.f32 %v1056, 0.5
        %v1276 = vmul.f32 %v1060, 0.5
        %v1277 = vmul.f32 %v1062, 0.5
        %v1278 = vmul.f32 %v1064, 0.5
        %v1279 = vmul.f32 %v1066, 0.5
        %v1280 = vmul.f32 %v1070, 0.5
        %v1281 = vmul.f32 %v1072, 0.5
        %v1282 = vmul.f32 %v1074, 0.5
        %v1283 = vmul.f32 %v1076, 0.5
        %v1284 = vmul.f32 %v1080, 0.5
        %v1285 = vmul.f32 %v1082, 0.5
        %v1286 = vmul.f32 %v1084, 0.5
        %v1287 = vmul.f32 %v1086, 0.5
        %v1288 = vmul.f32 %v1090, 0.5
        %v1289 = vmul.f32 %v1092, 0.5
        %v1290 = vmul.f32 %v1094, 0.5
        %v1291 = vmul.f32 %v1096, 0.5
        %v1292 = vmul.f32 %v1100, 0.5
        %v1293 = vmul.f32 %v1102, 0.5
        %v1294 = vmul.f32 %v1104, 0.5
        %v1295 = vmul.f32 %v1106, 0.5
        %v1296 = vmul.f32 %v1110, 0.5
        %v1297 = vmul.f32 %v1112, 0.5
        %v1298 = vmul.f32 %v1114, 0.5
        %v1299 = vmul.f32 %v1116, 0.5
        %v1300 = vmul.f32 %v1120, 0.5
        %v1301 = vmul.f32 %v1122, 0.5
        %v1302 = vmul.f32 %v1124, 0.5
        %v1303 = vmul.f32 %v1126, 0.5
        %v1304 = vmul.f32 %v1130, 0.5
        %v1305 = vmul.f32 %v1132, 0.5
        %v1306 = vmul.f32 %v1134, 0.5
        %v1307 = vmul.f32 %v1136, 0.5
        %v1308 = vmul.f32 %v1140, 0.5
        %v1309 = vmul.f32 %v1142, 0.5
        %v1310 = vmul.f32 %v1144, 0.5
        %v1311 = vmul.f32 %v1146, 0.5
        %v1312 = vmul.f32 %v1150, 0.5
        %v1313 = vmul.f32 %v1152, 0.5
        %v1314 = vmul.f32 %v1154, 0.5
        %v1315 = vmul.f32 %v1156, 0.5
        %v1316 = vmul.f32 %v1160, 0.5
        %v1317 = vmul.f32 %v1162, 0.5
        %v1318 = vmul.f32 %v1164, 0.5
        %v1319 = vmul.f32 %v1166, 0.5
        %v1320 = vmul.f32 %v1170, 0.5
        %v1321 = vmul.f32 %v1172, 0.5
        %v1322 = vmul.f32 %v1174, 0.5
        %v1323 = vmul.f32 %v1176, 0.5
        %v1324 = vmul.f32 %v1180, 0.5
        %v1325 = vmul.f32 %v1182, 0.5
        %v1326 = vmul.f32 %v1184, 0.5
        %v1327 = vmul.f32 %v1186, 0.5
        %v1328 = vmul.f32 %v1190, 0.5
        %v1329 = vmul.f32 %v1192, 0.5
        %v1330 = vmul.f32 %v1194, 0.5
        %v1331 = vmul.f32 %v1196, 0.5
        %v1332 = vmul.f32 %v1200, 0.5
        %v1333 = vmul.f32 %v1202, 0.5
        %v1334 = vmul.f32 %v1204, 0.5
        %v1335 = vmul.f32 %v1206, 0.5
        %v1336 = vtanh.pop %v1208
        %v1337 = vtanh.pop %v1209
        %v1338 = vtanh.pop %v1210
        %v1339 = vtanh.pop %v1211
        %v1340 = vtanh.pop %v1212
        %v1341 = vtanh.pop %v1213
        %v1342 = vtanh.pop %v1214
        %v1343 = vtanh.pop %v1215
        %v1344 = vtanh.pop %v1216
        %v1345 = vtanh.pop %v1217
        %v1346 = vtanh.pop %v1218
        %v1347 = vtanh.pop %v1219
        %v1348 = vtanh.pop %v1220
        %v1349 = vtanh.pop %v1221
        %v1350 = vtanh.pop %v1222
        %v1351 = vtanh.pop %v1223
        %v1352 = vtanh.pop %v1224
        %v1353 = vtanh.pop %v1225
        %v1354 = vtanh.pop %v1226
        %v1355 = vtanh.pop %v1227
        %v1356 = vtanh.pop %v1228
        %v1357 = vtanh.pop %v1229
        %v1358 = vtanh.pop %v1230
        %v1359 = vtanh.pop %v1231
        %v1360 = vtanh.pop %v1232
        %v1361 = vtanh.pop %v1233
        %v1362 = vtanh.pop %v1234
        %v1363 = vtanh.pop %v1235
        %v1364 = vtanh.pop %v1236
        %v1365 = vtanh.pop %v1237
        %v1366 = vtanh.pop %v1238
        %v1367 = vtanh.pop %v1239
        %v1368 = vtanh.pop %v1240
        %v1369 = vtanh.pop %v1241
        %v1370 = vtanh.pop %v1242
        %v1371 = vtanh.pop %v1243
        %v1372 = vtanh.pop %v1244
        %v1373 = vtanh.pop %v1245
        %v1374 = vtanh.pop %v1246
        %v1375 = vtanh.pop %v1247
        %v1376 = vtanh.pop %v1248
        %v1377 = vtanh.pop %v1249
        %v1378 = vtanh.pop %v1250
        %v1379 = vtanh.pop %v1251
        %v1380 = vtanh.pop %v1252
        %v1381 = vtanh.pop %v1253
        %v1382 = vtanh.pop %v1254
        %v1383 = vtanh.pop %v1255
        %v1384 = vtanh.pop %v1256
        %v1385 = vtanh.pop %v1257
        %v1386 = vtanh.pop %v1258
        %v1387 = vtanh.pop %v1259
        %v1388 = vtanh.pop %v1260
        %v1389 = vtanh.pop %v1261
        %v1390 = vtanh.pop %v1262
        %v1391 = vtanh.pop %v1263
        %v1392 = vtanh.pop %v1264
        %v1393 = vtanh.pop %v1265
        %v1394 = vtanh.pop %v1266
        %v1395 = vtanh.pop %v1267
        %v1396 = vtanh.pop %v1268
        %v1397 = vtanh.pop %v1269
        %v1398 = vtanh.pop %v1270
        %v1399 = vtanh.pop %v1271
        %v1400 = vtanh.pop %v1272
        %v1401 = vtanh.pop %v1273
        %v1402 = vtanh.pop %v1274
        %v1403 = vtanh.pop %v1275
        %v1404 = vtanh.pop %v1276
        %v1405 = vtanh.pop %v1277
        %v1406 = vtanh.pop %v1278
        %v1407 = vtanh.pop %v1279
        %v1408 = vtanh.pop %v1280
        %v1409 = vtanh.pop %v1281
        %v1410 = vtanh.pop %v1282
        %v1411 = vtanh.pop %v1283
        %v1412 = vtanh.pop %v1284
        %v1413 = vtanh.pop %v1285
        %v1414 = vtanh.pop %v1286
        %v1415 = vtanh.pop %v1287
        %v1416 = vtanh.pop %v1288
        %v1417 = vtanh.pop %v1289
        %v1418 = vtanh.pop %v1290
        %v1419 = vtanh.pop %v1291
        %v1420 = vtanh.pop %v1292
        %v1421 = vtanh.pop %v1293
        %v1422 = vtanh.pop %v1294
        %v1423 = vtanh.pop %v1295
        %v1424 = vtanh.pop %v1296
        %v1425 = vtanh.pop %v1297
        %v1426 = vtanh.pop %v1298
        %v1427 = vtanh.pop %v1299
        %v1428 = vtanh.pop %v1300
        %v1429 = vtanh.pop %v1301
        %v1430 = vtanh.pop %v1302
        %v1431 = vtanh.pop %v1303
        %v1432 = vtanh.pop %v1304
        %v1433 = vtanh.pop %v1305
        %v1434 = vtanh.pop %v1306
        %v1435 = vtanh.pop %v1307
        %v1436 = vtanh.pop %v1308
        %v1437 = vtanh.pop %v1309
        %v1438 = vtanh.pop %v1310
        %v1439 = vtanh.pop %v1311
        %v1440 = vtanh.pop %v1312
        %v1441 = vtanh.pop %v1313
        %v1442 = vtanh.pop %v1314
        %v1443 = vtanh.pop %v1315
        %v1444 = vtanh.pop %v1316
        %v1445 = vtanh.pop %v1317
        %v1446 = vtanh.pop %v1318
        %v1447 = vtanh.pop %v1319
        %v1448 = vtanh.pop %v1320
        %v1449 = vtanh.pop %v1321
        %v1450 = vtanh.pop %v1322
        %v1451 = vtanh.pop %v1323
        %v1452 = vtanh.pop %v1324
        %v1453 = vtanh.pop %v1325
        %v1454 = vtanh.pop %v1326
        %v1455 = vtanh.pop %v1327
        %v1456 = vtanh.pop %v1328
        %v1457 = vtanh.pop %v1329
        %v1458 = vtanh.pop %v1330
        %v1459 = vtanh.pop %v1331
        %v1460 = vtanh.pop %v1332
        %v1461 = vtanh.pop %v1333
        %v1462 = vtanh.pop %v1334
        %v1463 = vtanh.pop %v1335
        %v1464 = vadd.f32 %v1336, 1.0
        %v1465 = vadd.f32 %v1337, 1.0
        %v1466 = vadd.f32 %v1338, 1.0
        %v1467 = vadd.f32 %v1339, 1.0
        %v1468 = vadd.f32 %v1340, 1.0
        %v1469 = vadd.f32 %v1341, 1.0
        %v1470 = vadd.f32 %v1342, 1.0
        %v1471 = vadd.f32 %v1343, 1.0
        %v1472 = vadd.f32 %v1344, 1.0
        %v1473 = vadd.f32 %v1345, 1.0
        %v1474 = vadd.f32 %v1346, 1.0
        %v1475 = vadd.f32 %v1347, 1.0
        %v1476 = vadd.f32 %v1348, 1.0
        %v1477 = vadd.f32 %v1349, 1.0
        %v1478 = vadd.f32 %v1350, 1.0
        %v1479 = vadd.f32 %v1351, 1.0
        %v1480 = vadd.f32 %v1352, 1.0
        %v1481 = vadd.f32 %v1353, 1.0
        %v1482 = vadd.f32 %v1354, 1.0
        %v1483 = vadd.f32 %v1355, 1.0
        %v1484 = vadd.f32 %v1356, 1.0
        %v1485 = vadd.f32 %v1357, 1.0
        %v1486 = vadd.f32 %v1358, 1.0
        %v1487 = vadd.f32 %v1359, 1.0
        %v1488 = vadd.f32 %v1360, 1.0
        %v1489 = vadd.f32 %v1361, 1.0
        %v1490 = vadd.f32 %v1362, 1.0
        %v1491 = vadd.f32 %v1363, 1.0
        %v1492 = vadd.f32 %v1364, 1.0
        %v1493 = vadd.f32 %v1365, 1.0
        %v1494 = vadd.f32 %v1366, 1.0
        %v1495 = vadd.f32 %v1367, 1.0
        %v1496 = vadd.f32 %v1368, 1.0
        %v1497 = vadd.f32 %v1369, 1.0
        %v1498 = vadd.f32 %v1370, 1.0
        %v1499 = vadd.f32 %v1371, 1.0
        %v1500 = vadd.f32 %v1372, 1.0
        %v1501 = vadd.f32 %v1373, 1.0
        %v1502 = vadd.f32 %v1374, 1.0
        %v1503 = vadd.f32 %v1375, 1.0
        %v1504 = vadd.f32 %v1376, 1.0
        %v1505 = vadd.f32 %v1377, 1.0
        %v1506 = vadd.f32 %v1378, 1.0
        %v1507 = vadd.f32 %v1379, 1.0
        %v1508 = vadd.f32 %v1380, 1.0
        %v1509 = vadd.f32 %v1381, 1.0
        %v1510 = vadd.f32 %v1382, 1.0
        %v1511 = vadd.f32 %v1383, 1.0
        %v1512 = vadd.f32 %v1384, 1.0
        %v1513 = vadd.f32 %v1385, 1.0
        %v1514 = vadd.f32 %v1386, 1.0
        %v1515 = vadd.f32 %v1387, 1.0
        %v1516 = vadd.f32 %v1388, 1.0
        %v1517 = vadd.f32 %v1389, 1.0
        %v1518 = vadd.f32 %v1390, 1.0
        %v1519 = vadd.f32 %v1391, 1.0
        %v1520 = vadd.f32 %v1392, 1.0
        %v1521 = vadd.f32 %v1393, 1.0
        %v1522 = vadd.f32 %v1394, 1.0
        %v1523 = vadd.f32 %v1395, 1.0
        %v1524 = vadd.f32 %v1396, 1.0
        %v1525 = vadd.f32 %v1397, 1.0
        %v1526 = vadd.f32 %v1398, 1.0
        %v1527 = vadd.f32 %v1399, 1.0
        %v1528 = vadd.f32 %v1400, 1.0
        %v1529 = vadd.f32 %v1401, 1.0
        %v1530 = vadd.f32 %v1402, 1.0
        %v1531 = vadd.f32 %v1403, 1.0
        %v1532 = vadd.f32 %v1404, 1.0
        %v1533 = vadd.f32 %v1405, 1.0
        %v1534 = vadd.f32 %v1406, 1.0
        %v1535 = vadd.f32 %v1407, 1.0
        %v1536 = vadd.f32 %v1408, 1.0
        %v1537 = vadd.f32 %v1409, 1.0
        %v1538 = vadd.f32 %v1410, 1.0
        %v1539 = vadd.f32 %v1411, 1.0
        %v1540 = vadd.f32 %v1412, 1.0
        %v1541 = vadd.f32 %v1413, 1.0
        %v1542 = vadd.f32 %v1414, 1.0
        %v1543 = vadd.f32 %v1415, 1.0
        %v1544 = vadd.f32 %v1416, 1.0
        %v1545 = vadd.f32 %v1417, 1.0
        %v1546 = vadd.f32 %v1418, 1.0
        %v1547 = vadd.f32 %v1419, 1.0
        %v1548 = vadd.f32 %v1420, 1.0
        %v1549 = vadd.f32 %v1421, 1.0
        %v1550 = vadd.f32 %v1422, 1.0
        %v1551 = vadd.f32 %v1423, 1.0
        %v1552 = vadd.f32 %v1424, 1.0
        %v1553 = vadd.f32 %v1425, 1.0
        %v1554 = vadd.f32 %v1426, 1.0
        %v1555 = vadd.f32 %v1427, 1.0
        %v1556 = vadd.f32 %v1428, 1.0
        %v1557 = vadd.f32 %v1429, 1.0
        %v1558 = vadd.f32 %v1430, 1.0
        %v1559 = vadd.f32 %v1431, 1.0
        %v1560 = vadd.f32 %v1432, 1.0
        %v1561 = vadd.f32 %v1433, 1.0
        %v1562 = vadd.f32 %v1434, 1.0
        %v1563 = vadd.f32 %v1435, 1.0
        %v1564 = vadd.f32 %v1436, 1.0
        %v1565 = vadd.f32 %v1437, 1.0
        %v1566 = vadd.f32 %v1438, 1.0
        %v1567 = vadd.f32 %v1439, 1.0
        %v1568 = vadd.f32 %v1440, 1.0
        %v1569 = vadd.f32 %v1441, 1.0
        %v1570 = vadd.f32 %v1442, 1.0
        %v1571 = vadd.f32 %v1443, 1.0
        %v1572 = vadd.f32 %v1444, 1.0
        %v1573 = vadd.f32 %v1445, 1.0
        %v1574 = vadd.f32 %v1446, 1.0
        %v1575 = vadd.f32 %v1447, 1.0
        %v1576 = vadd.f32 %v1448, 1.0
        %v1577 = vadd.f32 %v1449, 1.0
        %v1578 = vadd.f32 %v1450, 1.0
        %v1579 = vadd.f32 %v1451, 1.0
        %v1580 = vadd.f32 %v1452, 1.0
        %v1581 = vadd.f32 %v1453, 1.0
        %v1582 = vadd.f32 %v1454, 1.0
        %v1583 = vadd.f32 %v1455, 1.0
        %v1584 = vadd.f32 %v1456, 1.0
        %v1585 = vadd.f32 %v1457, 1.0
        %v1586 = vadd.f32 %v1458, 1.0
        %v1587 = vadd.f32 %v1459, 1.0
        %v1588 = vadd.f32 %v1460, 1.0
        %v1589 = vadd.f32 %v1461, 1.0
        %v1590 = vadd.f32 %v1462, 1.0
        %v1591 = vadd.f32 %v1463, 1.0
        %v1592 = vmul.f32 %v1208, %v1464
        %v1593 = vmul.f32 %v1209, %v1465
        %v1594 = vmul.f32 %v1210, %v1466
        %v1595 = vmul.f32 %v1211, %v1467
        %v1596 = vmul.f32 %v1212, %v1468
        %v1597 = vmul.f32 %v1213, %v1469
        %v1598 = vmul.f32 %v1214, %v1470
        %v1599 = vmul.f32 %v1215, %v1471
        %v1600 = vmul.f32 %v1216, %v1472
        %v1601 = vmul.f32 %v1217, %v1473
        %v1602 = vmul.f32 %v1218, %v1474
        %v1603 = vmul.f32 %v1219, %v1475
        %v1604 = vmul.f32 %v1220, %v1476
        %v1605 = vmul.f32 %v1221, %v1477
        %v1606 = vmul.f32 %v1222, %v1478
        %v1607 = vmul.f32 %v1223, %v1479
        %v1608 = vmul.f32 %v1224, %v1480
        %v1609 = vmul.f32 %v1225, %v1481
        %v1610 = vmul.f32 %v1226, %v1482
        %v1611 = vmul.f32 %v1227, %v1483
        %v1612 = vmul.f32 %v1228, %v1484
        %v1613 = vmul.f32 %v1229, %v1485
        %v1614 = vmul.f32 %v1230, %v1486
        %v1615 = vmul.f32 %v1231, %v1487
        %v1616 = vmul.f32 %v1232, %v1488
        %v1617 = vmul.f32 %v1233, %v1489
        %v1618 = vmul.f32 %v1234, %v1490
        %v1619 = vmul.f32 %v1235, %v1491
        %v1620 = vmul.f32 %v1236, %v1492
        %v1621 = vmul.f32 %v1237, %v1493
        %v1622 = vmul.f32 %v1238, %v1494
        %v1623 = vmul.f32 %v1239, %v1495
        %v1624 = vmul.f32 %v1240, %v1496
        %v1625 = vmul.f32 %v1241, %v1497
        %v1626 = vmul.f32 %v1242, %v1498
        %v1627 = vmul.f32 %v1243, %v1499
        %v1628 = vmul.f32 %v1244, %v1500
        %v1629 = vmul.f32 %v1245, %v1501
        %v1630 = vmul.f32 %v1246, %v1502
        %v1631 = vmul.f32 %v1247, %v1503
        %v1632 = vmul.f32 %v1248, %v1504
        %v1633 = vmul.f32 %v1249, %v1505
        %v1634 = vmul.f32 %v1250, %v1506
        %v1635 = vmul.f32 %v1251, %v1507
        %v1636 = vmul.f32 %v1252, %v1508
        %v1637 = vmul.f32 %v1253, %v1509
        %v1638 = vmul.f32 %v1254, %v1510
        %v1639 = vmul.f32 %v1255, %v1511
        %v1640 = vmul.f32 %v1256, %v1512
        %v1641 = vmul.f32 %v1257, %v1513
        %v1642 = vmul.f32 %v1258, %v1514
        %v1643 = vmul.f32 %v1259, %v1515
        %v1644 = vmul.f32 %v1260, %v1516
        %v1645 = vmul.f32 %v1261, %v1517
        %v1646 = vmul.f32 %v1262, %v1518
        %v1647 = vmul.f32 %v1263, %v1519
        %v1648 = vmul.f32 %v1264, %v1520
        %v1649 = vmul.f32 %v1265, %v1521
        %v1650 = vmul.f32 %v1266, %v1522
        %v1651 = vmul.f32 %v1267, %v1523
        %v1652 = vmul.f32 %v1268, %v1524
        %v1653 = vmul.f32 %v1269, %v1525
        %v1654 = vmul.f32 %v1270, %v1526
        %v1655 = vmul.f32 %v1271, %v1527
        %v1656 = vmul.f32 %v1272, %v1528
        %v1657 = vmul.f32 %v1273, %v1529
        %v1658 = vmul.f32 %v1274, %v1530
        %v1659 = vmul.f32 %v1275, %v1531
        %v1660 = vmul.f32 %v1276, %v1532
        %v1661 = vmul.f32 %v1277, %v1533
        %v1662 = vmul.f32 %v1278, %v1534
        %v1663 = vmul.f32 %v1279, %v1535
        %v1664 = vmul.f32 %v1280, %v1536
        %v1665 = vmul.f32 %v1281, %v1537
        %v1666 = vmul.f32 %v1282, %v1538
        %v1667 = vmul.f32 %v1283, %v1539
        %v1668 = vmul.f32 %v1284, %v1540
        %v1669 = vmul.f32 %v1285, %v1541
        %v1670 = vmul.f32 %v1286, %v1542
        %v1671 = vmul.f32 %v1287, %v1543
        %v1672 = vmul.f32 %v1288, %v1544
        %v1673 = vmul.f32 %v1289, %v1545
        %v1674 = vmul.f32 %v1290, %v1546
        %v1675 = vmul.f32 %v1291, %v1547
        %v1676 = vmul.f32 %v1292, %v1548
        %v1677 = vmul.f32 %v1293, %v1549
        %v1678 = vmul.f32 %v1294, %v1550
        %v1679 = vmul.f32 %v1295, %v1551
        %v1680 = vmul.f32 %v1296, %v1552
        %v1681 = vmul.f32 %v1297, %v1553
        %v1682 = vmul.f32 %v1298, %v1554
        %v1683 = vmul.f32 %v1299, %v1555
        %v1684 = vmul.f32 %v1300, %v1556
        %v1685 = vmul.f32 %v1301, %v1557
        %v1686 = vmul.f32 %v1302, %v1558
        %v1687 = vmul.f32 %v1303, %v1559
        %v1688 = vmul.f32 %v1304, %v1560
        %v1689 = vmul.f32 %v1305, %v1561
        %v1690 = vmul.f32 %v1306, %v1562
        %v1691 = vmul.f32 %v1307, %v1563
        %v1692 = vmul.f32 %v1308, %v1564
        %v1693 = vmul.f32 %v1309, %v1565
        %v1694 = vmul.f32 %v1310, %v1566
        %v1695 = vmul.f32 %v1311, %v1567
        %v1696 = vmul.f32 %v1312, %v1568
        %v1697 = vmul.f32 %v1313, %v1569
        %v1698 = vmul.f32 %v1314, %v1570
        %v1699 = vmul.f32 %v1315, %v1571
        %v1700 = vmul.f32 %v1316, %v1572
        %v1701 = vmul.f32 %v1317, %v1573
        %v1702 = vmul.f32 %v1318, %v1574
        %v1703 = vmul.f32 %v1319, %v1575
        %v1704 = vmul.f32 %v1320, %v1576
        %v1705 = vmul.f32 %v1321, %v1577
        %v1706 = vmul.f32 %v1322, %v1578
        %v1707 = vmul.f32 %v1323, %v1579
        %v1708 = vmul.f32 %v1324, %v1580
        %v1709 = vmul.f32 %v1325, %v1581
        %v1710 = vmul.f32 %v1326, %v1582
        %v1711 = vmul.f32 %v1327, %v1583
        %v1712 = vmul.f32 %v1328, %v1584
        %v1713 = vmul.f32 %v1329, %v1585
        %v1714 = vmul.f32 %v1330, %v1586
        %v1715 = vmul.f32 %v1331, %v1587
        %v1716 = vmul.f32 %v1332, %v1588
        %v1717 = vmul.f32 %v1333, %v1589
        %v1718 = vmul.f32 %v1334, %v1590
        %v1719 = vmul.f32 %v1335, %v1591
        %v1720 = vpack.c.bf16 %v588, %v587
        %v1721 = vpack.c.bf16 %v590, %v589
        %v1722 = vpack.c.bf16 %v592, %v591
        %v1723 = vpack.c.bf16 %v594, %v593
        %v1724 = vpack.c.bf16 %v596, %v595
        %v1725 = vpack.c.bf16 %v598, %v597
        %v1726 = vpack.c.bf16 %v600, %v599
        %v1727 = vpack.c.bf16 %v602, %v601
        %v1728 = vpack.c.bf16 %v604, %v603
        %v1729 = vpack.c.bf16 %v606, %v605
        %v1730 = vpack.c.bf16 %v608, %v607
        %v1731 = vpack.c.bf16 %v610, %v609
        %v1732 = vpack.c.bf16 %v612, %v611
        %v1733 = vpack.c.bf16 %v614, %v613
        %v1734 = vpack.c.bf16 %v616, %v615
        %v1735 = vpack.c.bf16 %v618, %v617
        %v1736 = vpack.c.bf16 %v620, %v619
        %v1737 = vpack.c.bf16 %v622, %v621
        %v1738 = vpack.c.bf16 %v624, %v623
        %v1739 = vpack.c.bf16 %v626, %v625
        %v1740 = vpack.c.bf16 %v628, %v627
        %v1741 = vpack.c.bf16 %v630, %v629
        %v1742 = vpack.c.bf16 %v632, %v631
        %v1743 = vpack.c.bf16 %v634, %v633
        %v1744 = vpack.c.bf16 %v636, %v635
        %v1745 = vpack.c.bf16 %v638, %v637
        %v1746 = vpack.c.bf16 %v640, %v639
        %v1747 = vpack.c.bf16 %v642, %v641
        %v1748 = vpack.c.bf16 %v644, %v643
        %v1749 = vpack.c.bf16 %v646, %v645
        %v1750 = vpack.c.bf16 %v648, %v647
        %v1751 = vpack.c.bf16 %v650, %v649
        %v1752 = vld [vmem:[#allocation8] sm:$0xf]
        %v1753 = vld [vmem:[#allocation8 + $0x4] sm:$0xf]
        %v1754 = vld [vmem:[#allocation8 + $0x8] sm:$0xf]
        %v1755 = vld [vmem:[#allocation8 + $0xc] sm:$0xf]
        %v1756 = vld [vmem:[#allocation8 + $0x10] sm:$0xf]
        %v1757 = vld [vmem:[#allocation8 + $0x14] sm:$0xf]
        %v1758 = vld [vmem:[#allocation8 + $0x18] sm:$0xf]
        %v1759 = vld [vmem:[#allocation8 + $0x1c] sm:$0xf]
        %v1760 = vld [vmem:[#allocation8 + $0x20] sm:$0xf]
        %v1761 = vld [vmem:[#allocation8 + $0x24] sm:$0xf]
        %v1762 = vld [vmem:[#allocation8 + $0x28] sm:$0xf]
        %v1763 = vld [vmem:[#allocation8 + $0x2c] sm:$0xf]
        %v1764 = vld [vmem:[#allocation8 + $0x30] sm:$0xf]
        %v1765 = vld [vmem:[#allocation8 + $0x34] sm:$0xf]
        %v1766 = vld [vmem:[#allocation8 + $0x38] sm:$0xf]
        %v1767 = vld [vmem:[#allocation8 + $0x3c] sm:$0xf]
        %v1768 = vld [vmem:[%s5] sm:$0x1]
        %v1770 = vlaneseq
        %v1771 = vshrl.u32 %v1770, 7
        %v1772 = vsub.s32 0, %v1771
        %v1773 = vrot.slane %v1768, %v1772
        %v1791 = vunpack.c.l.b16 %v1752
        %v1792 = vunpack.c.l.b16 %v1753
        %v1793 = vunpack.c.l.b16 %v1754
        %v1794 = vunpack.c.l.b16 %v1755
        %v1795 = vunpack.c.l.b16 %v1756
        %v1796 = vunpack.c.l.b16 %v1757
        %v1797 = vunpack.c.l.b16 %v1758
        %v1798 = vunpack.c.l.b16 %v1759
        %v1799 = vunpack.c.l.b16 %v1760
        %v1800 = vunpack.c.l.b16 %v1761
        %v1801 = vunpack.c.l.b16 %v1762
        %v1802 = vunpack.c.l.b16 %v1763
        %v1803 = vunpack.c.l.b16 %v1764
        %v1804 = vunpack.c.l.b16 %v1765
        %v1805 = vunpack.c.l.b16 %v1766
        %v1806 = vunpack.c.l.b16 %v1767
        %v1807 = vpack.c.b16 %v1792, %v1791
        %v1808 = vpack.c.b16 %v1794, %v1793
        %v1809 = vpack.c.b16 %v1796, %v1795
        %v1810 = vpack.c.b16 %v1798, %v1797
        %v1811 = vpack.c.b16 %v1800, %v1799
        %v1812 = vpack.c.b16 %v1802, %v1801
        %v1813 = vpack.c.b16 %v1804, %v1803
        %v1814 = vpack.c.b16 %v1806, %v1805
        %1823 = vmatprep.subr.bf16.mxu0 0
        %1824 = vmatpush1.bf16.msra.mxu0 %v1807
        %1825 = vmatprep.subr.bf16.mxu0 0
        %1826 = vmatpush1.bf16.msra.mxu0 %v1808
        %1827 = vmatprep.subr.bf16.mxu0 0
        %1828 = vmatpush1.bf16.msra.mxu0 %v1809
        %1829 = vmatprep.subr.bf16.mxu0 0
        %1830 = vmatpush1.bf16.msra.mxu0 %v1810
        %1831 = vmatprep.subr.bf16.mxu0 0
        %1832 = vmatpush1.bf16.msra.mxu0 %v1811
        %1833 = vmatprep.subr.bf16.mxu0 0
        %1834 = vmatpush1.bf16.msra.mxu0 %v1812
        %1835 = vmatprep.subr.bf16.mxu0 0
        %1836 = vmatpush1.bf16.msra.mxu0 %v1813
        %1837 = vmatprep.subr.bf16.mxu0 0
        %1838 = vmatpush1.bf16.msra.mxu0 %v1814
        %1839 = vmatprep.subr.bf16.mxu0 0
        %1840 = vmatpush1.bf16.msra.mxu0 0
        %1841 = vmatprep.subr.bf16.mxu0 0
        %1842 = vmatpush1.bf16.msra.mxu0 0
        %1843 = vmatprep.subr.bf16.mxu0 0
        %1844 = vmatpush1.bf16.msra.mxu0 0
        %1845 = vmatprep.subr.bf16.mxu0 0
        %1846 = vmatpush1.bf16.msra.mxu0 0
        %1847 = vmatprep.subr.bf16.mxu0 0
        %1848 = vmatpush1.bf16.msra.mxu0 0
        %1849 = vmatprep.subr.bf16.mxu0 0
        %1850 = vmatpush1.bf16.msra.mxu0 0
        %1851 = vmatprep.subr.bf16.mxu0 0
        %1852 = vmatpush1.bf16.msra.mxu0 0
        %1853 = vmatprep.subr.bf16.mxu0 0
        %1854 = vmatpush1.bf16.msra.mxu0 0
        %1855 = vmatprep.mubr.bf16.mxu0 0
        %1856 = vmatmul.mubr.bf16.gmra.mrb[0].mxu0 %v1720
        %v1857 = vpop.f32.mrb[0].mxu0
        %v1858 = vadd.f32 %v1773, %v1857
        %v1859 = vpop.f32.mrb[0].mxu0
        %v1860 = vpop.f32.mrb[0].mxu0
        %v1861 = vadd.f32 %v1773, %v1860
        %v1862 = vpop.f32.mrb[0].mxu0
        %1863 = vmatprep.mubr.bf16.mxu0 0
        %1864 = vmatmul.mubr.bf16.gmra.mrb[0].mxu0 %v1721
        %v1865 = vpop.f32.mrb[0].mxu0
        %v1866 = vadd.f32 %v1773, %v1865
        %v1867 = vpop.f32.mrb[0].mxu0
        %v1868 = vpop.f32.mrb[0].mxu0
        %v1869 = vadd.f32 %v1773, %v1868
        %v1870 = vpop.f32.mrb[0].mxu0
        %1871 = vmatprep.mubr.bf16.mxu0 0
        %1872 = vmatmul.mubr.bf16.gmra.mrb[0].mxu0 %v1722
        %v1873 = vpop.f32.mrb[0].mxu0
        %v1874 = vadd.f32 %v1773, %v1873
        %v1875 = vpop.f32.mrb[0].mxu0
        %v1876 = vpop.f32.mrb[0].mxu0
        %v1877 = vadd.f32 %v1773, %v1876
        %v1878 = vpop.f32.mrb[0].mxu0
        %1879 = vmatprep.mubr.bf16.mxu0 0
        %1880 = vmatmul.mubr.bf16.gmra.mrb[0].mxu0 %v1723
        %v1881 = vpop.f32.mrb[0].mxu0
        %v1882 = vadd.f32 %v1773, %v1881
        %v1883 = vpop.f32.mrb[0].mxu0
        %v1884 = vpop.f32.mrb[0].mxu0
        %v1885 = vadd.f32 %v1773, %v1884
        %v1886 = vpop.f32.mrb[0].mxu0
        %1887 = vmatprep.mubr.bf16.mxu0 0
        %1888 = vmatmul.mubr.bf16.gmra.mrb[0].mxu0 %v1724
        %v1889 = vpop.f32.mrb[0].mxu0
        %v1890 = vadd.f32 %v1773, %v1889
        %v1891 = vpop.f32.mrb[0].mxu0
        %v1892 = vpop.f32.mrb[0].mxu0
        %v1893 = vadd.f32 %v1773, %v1892
        %v1894 = vpop.f32.mrb[0].mxu0
        %1895 = vmatprep.mubr.bf16.mxu0 0
        %1896 = vmatmul.mubr.bf16.gmra.mrb[0].mxu0 %v1725
        %v1897 = vpop.f32.mrb[0].mxu0
        %v1898 = vadd.f32 %v1773, %v1897
        %v1899 = vpop.f32.mrb[0].mxu0
        %v1900 = vpop.f32.mrb[0].mxu0
        %v1901 = vadd.f32 %v1773, %v1900
        %v1902 = vpop.f32.mrb[0].mxu0
        %1903 = vmatprep.mubr.bf16.mxu0 0
        %1904 = vmatmul.mubr.bf16.gmra.mrb[0].mxu0 %v1726
        %v1905 = vpop.f32.mrb[0].mxu0
        %v1906 = vadd.f32 %v1773, %v1905
        %v1907 = vpop.f32.mrb[0].mxu0
        %v1908 = vpop.f32.mrb[0].mxu0
        %v1909 = vadd.f32 %v1773, %v1908
        %v1910 = vpop.f32.mrb[0].mxu0
        %1911 = vmatprep.mubr.bf16.mxu0 0
        %1912 = vmatmul.mubr.bf16.gmra.mrb[0].mxu0 %v1727
        %v1913 = vpop.f32.mrb[0].mxu0
        %v1914 = vadd.f32 %v1773, %v1913
        %v1915 = vpop.f32.mrb[0].mxu0
        %v1916 = vpop.f32.mrb[0].mxu0
        %v1917 = vadd.f32 %v1773, %v1916
        %v1918 = vpop.f32.mrb[0].mxu0
        %1919 = vmatprep.mubr.bf16.mxu0 0
        %1920 = vmatmul.mubr.bf16.gmra.mrb[0].mxu0 %v1728
        %v1921 = vpop.f32.mrb[0].mxu0
        %v1922 = vadd.f32 %v1773, %v1921
        %v1923 = vpop.f32.mrb[0].mxu0
        %v1924 = vpop.f32.mrb[0].mxu0
        %v1925 = vadd.f32 %v1773, %v1924
        %v1926 = vpop.f32.mrb[0].mxu0
        %1927 = vmatprep.mubr.bf16.mxu0 0
        %1928 = vmatmul.mubr.bf16.gmra.mrb[0].mxu0 %v1729
        %v1929 = vpop.f32.mrb[0].mxu0
        %v1930 = vadd.f32 %v1773, %v1929
        %v1931 = vpop.f32.mrb[0].mxu0
        %v1932 = vpop.f32.mrb[0].mxu0
        %v1933 = vadd.f32 %v1773, %v1932
        %v1934 = vpop.f32.mrb[0].mxu0
        %1935 = vmatprep.mubr.bf16.mxu0 0
        %1936 = vmatmul.mubr.bf16.gmra.mrb[0].mxu0 %v1730
        %v1937 = vpop.f32.mrb[0].mxu0
        %v1938 = vadd.f32 %v1773, %v1937
        %v1939 = vpop.f32.mrb[0].mxu0
        %v1940 = vpop.f32.mrb[0].mxu0
        %v1941 = vadd.f32 %v1773, %v1940
        %v1942 = vpop.f32.mrb[0].mxu0
        %1943 = vmatprep.mubr.bf16.mxu0 0
        %1944 = vmatmul.mubr.bf16.gmra.mrb[0].mxu0 %v1731
        %v1945 = vpop.f32.mrb[0].mxu0
        %v1946 = vadd.f32 %v1773, %v1945
        %v1947 = vpop.f32.mrb[0].mxu0
        %v1948 = vpop.f32.mrb[0].mxu0
        %v1949 = vadd.f32 %v1773, %v1948
        %v1950 = vpop.f32.mrb[0].mxu0
        %1951 = vmatprep.mubr.bf16.mxu0 0
        %1952 = vmatmul.mubr.bf16.gmra.mrb[0].mxu0 %v1732
        %v1953 = vpop.f32.mrb[0].mxu0
        %v1954 = vadd.f32 %v1773, %v1953
        %v1955 = vpop.f32.mrb[0].mxu0
        %v1956 = vpop.f32.mrb[0].mxu0
        %v1957 = vadd.f32 %v1773, %v1956
        %v1958 = vpop.f32.mrb[0].mxu0
        %1959 = vmatprep.mubr.bf16.mxu0 0
        %1960 = vmatmul.mubr.bf16.gmra.mrb[0].mxu0 %v1733
        %v1961 = vpop.f32.mrb[0].mxu0
        %v1962 = vadd.f32 %v1773, %v1961
        %v1963 = vpop.f32.mrb[0].mxu0
        %v1964 = vpop.f32.mrb[0].mxu0
        %v1965 = vadd.f32 %v1773, %v1964
        %v1966 = vpop.f32.mrb[0].mxu0
        %1967 = vmatprep.mubr.bf16.mxu0 0
        %1968 = vmatmul.mubr.bf16.gmra.mrb[0].mxu0 %v1734
        %v1969 = vpop.f32.mrb[0].mxu0
        %v1970 = vadd.f32 %v1773, %v1969
        %v1971 = vpop.f32.mrb[0].mxu0
        %v1972 = vpop.f32.mrb[0].mxu0
        %v1973 = vadd.f32 %v1773, %v1972
        %v1974 = vpop.f32.mrb[0].mxu0
        %1975 = vmatprep.mubr.bf16.mxu0 0
        %1976 = vmatmul.mubr.bf16.gmra.mrb[0].mxu0 %v1735
        %v1977 = vpop.f32.mrb[0].mxu0
        %v1978 = vadd.f32 %v1773, %v1977
        %v1979 = vpop.f32.mrb[0].mxu0
        %v1980 = vpop.f32.mrb[0].mxu0
        %v1981 = vadd.f32 %v1773, %v1980
        %v1982 = vpop.f32.mrb[0].mxu0
        %1983 = vmatprep.mubr.bf16.mxu0 0
        %1984 = vmatmul.mubr.bf16.gmra.mrb[0].mxu0 %v1736
        %v1985 = vpop.f32.mrb[0].mxu0
        %v1986 = vadd.f32 %v1773, %v1985
        %v1987 = vpop.f32.mrb[0].mxu0
        %v1988 = vpop.f32.mrb[0].mxu0
        %v1989 = vadd.f32 %v1773, %v1988
        %v1990 = vpop.f32.mrb[0].mxu0
        %1991 = vmatprep.mubr.bf16.mxu0 0
        %1992 = vmatmul.mubr.bf16.gmra.mrb[0].mxu0 %v1737
        %v1993 = vpop.f32.mrb[0].mxu0
        %v1994 = vadd.f32 %v1773, %v1993
        %v1995 = vpop.f32.mrb[0].mxu0
        %v1996 = vpop.f32.mrb[0].mxu0
        %v1997 = vadd.f32 %v1773, %v1996
        %v1998 = vpop.f32.mrb[0].mxu0
        %1999 = vmatprep.mubr.bf16.mxu0 0
        %2000 = vmatmul.mubr.bf16.gmra.mrb[0].mxu0 %v1738
        %v2001 = vpop.f32.mrb[0].mxu0
        %v2002 = vadd.f32 %v1773, %v2001
        %v2003 = vpop.f32.mrb[0].mxu0
        %v2004 = vpop.f32.mrb[0].mxu0
        %v2005 = vadd.f32 %v1773, %v2004
        %v2006 = vpop.f32.mrb[0].mxu0
        %2007 = vmatprep.mubr.bf16.mxu0 0
        %2008 = vmatmul.mubr.bf16.gmra.mrb[0].mxu0 %v1739
        %v2009 = vpop.f32.mrb[0].mxu0
        %v2010 = vadd.f32 %v1773, %v2009
        %v2011 = vpop.f32.mrb[0].mxu0
        %v2012 = vpop.f32.mrb[0].mxu0
        %v2013 = vadd.f32 %v1773, %v2012
        %v2014 = vpop.f32.mrb[0].mxu0
        %2015 = vmatprep.mubr.bf16.mxu0 0
        %2016 = vmatmul.mubr.bf16.gmra.mrb[0].mxu0 %v1740
        %v2017 = vpop.f32.mrb[0].mxu0
        %v2018 = vadd.f32 %v1773, %v2017
        %v2019 = vpop.f32.mrb[0].mxu0
        %v2020 = vpop.f32.mrb[0].mxu0
        %v2021 = vadd.f32 %v1773, %v2020
        %v2022 = vpop.f32.mrb[0].mxu0
        %2023 = vmatprep.mubr.bf16.mxu0 0
        %2024 = vmatmul.mubr.bf16.gmra.mrb[0].mxu0 %v1741
        %v2025 = vpop.f32.mrb[0].mxu0
        %v2026 = vadd.f32 %v1773, %v2025
        %v2027 = vpop.f32.mrb[0].mxu0
        %v2028 = vpop.f32.mrb[0].mxu0
        %v2029 = vadd.f32 %v1773, %v2028
        %v2030 = vpop.f32.mrb[0].mxu0
        %2031 = vmatprep.mubr.bf16.mxu0 0
        %2032 = vmatmul.mubr.bf16.gmra.mrb[0].mxu0 %v1742
        %v2033 = vpop.f32.mrb[0].mxu0
        %v2034 = vadd.f32 %v1773, %v2033
        %v2035 = vpop.f32.mrb[0].mxu0
        %v2036 = vpop.f32.mrb[0].mxu0
        %v2037 = vadd.f32 %v1773, %v2036
        %v2038 = vpop.f32.mrb[0].mxu0
        %2039 = vmatprep.mubr.bf16.mxu0 0
        %2040 = vmatmul.mubr.bf16.gmra.mrb[0].mxu0 %v1743
        %v2041 = vpop.f32.mrb[0].mxu0
        %v2042 = vadd.f32 %v1773, %v2041
        %v2043 = vpop.f32.mrb[0].mxu0
        %v2044 = vpop.f32.mrb[0].mxu0
        %v2045 = vadd.f32 %v1773, %v2044
        %v2046 = vpop.f32.mrb[0].mxu0
        %2047 = vmatprep.mubr.bf16.mxu0 0
        %2048 = vmatmul.mubr.bf16.gmra.mrb[0].mxu0 %v1744
        %v2049 = vpop.f32.mrb[0].mxu0
        %v2050 = vadd.f32 %v1773, %v2049
        %v2051 = vpop.f32.mrb[0].mxu0
        %v2052 = vpop.f32.mrb[0].mxu0
        %v2053 = vadd.f32 %v1773, %v2052
        %v2054 = vpop.f32.mrb[0].mxu0
        %2055 = vmatprep.mubr.bf16.mxu0 0
        %2056 = vmatmul.mubr.bf16.gmra.mrb[0].mxu0 %v1745
        %v2057 = vpop.f32.mrb[0].mxu0
        %v2058 = vadd.f32 %v1773, %v2057
        %v2059 = vpop.f32.mrb[0].mxu0
        %v2060 = vpop.f32.mrb[0].mxu0
        %v2061 = vadd.f32 %v1773, %v2060
        %v2062 = vpop.f32.mrb[0].mxu0
        %2063 = vmatprep.mubr.bf16.mxu0 0
        %2064 = vmatmul.mubr.bf16.gmra.mrb[0].mxu0 %v1746
        %v2065 = vpop.f32.mrb[0].mxu0
        %v2066 = vadd.f32 %v1773, %v2065
        %v2067 = vpop.f32.mrb[0].mxu0
        %v2068 = vpop.f32.mrb[0].mxu0
        %v2069 = vadd.f32 %v1773, %v2068
        %v2070 = vpop.f32.mrb[0].mxu0
        %2071 = vmatprep.mubr.bf16.mxu0 0
        %2072 = vmatmul.mubr.bf16.gmra.mrb[0].mxu0 %v1747
        %v2073 = vpop.f32.mrb[0].mxu0
        %v2074 = vadd.f32 %v1773, %v2073
        %v2075 = vpop.f32.mrb[0].mxu0
        %v2076 = vpop.f32.mrb[0].mxu0
        %v2077 = vadd.f32 %v1773, %v2076
        %v2078 = vpop.f32.mrb[0].mxu0
        %2079 = vmatprep.mubr.bf16.mxu0 0
        %2080 = vmatmul.mubr.bf16.gmra.mrb[0].mxu0 %v1748
        %v2081 = vpop.f32.mrb[0].mxu0
        %v2082 = vadd.f32 %v1773, %v2081
        %v2083 = vpop.f32.mrb[0].mxu0
        %v2084 = vpop.f32.mrb[0].mxu0
        %v2085 = vadd.f32 %v1773, %v2084
        %v2086 = vpop.f32.mrb[0].mxu0
        %2087 = vmatprep.mubr.bf16.mxu0 0
        %2088 = vmatmul.mubr.bf16.gmra.mrb[0].mxu0 %v1749
        %v2089 = vpop.f32.mrb[0].mxu0
        %v2090 = vadd.f32 %v1773, %v2089
        %v2091 = vpop.f32.mrb[0].mxu0
        %v2092 = vpop.f32.mrb[0].mxu0
        %v2093 = vadd.f32 %v1773, %v2092
        %v2094 = vpop.f32.mrb[0].mxu0
        %2095 = vmatprep.mubr.bf16.mxu0 0
        %2096 = vmatmul.mubr.bf16.gmra.mrb[0].mxu0 %v1750
        %v2097 = vpop.f32.mrb[0].mxu0
        %v2098 = vadd.f32 %v1773, %v2097
        %v2099 = vpop.f32.mrb[0].mxu0
        %v2100 = vpop.f32.mrb[0].mxu0
        %v2101 = vadd.f32 %v1773, %v2100
        %v2102 = vpop.f32.mrb[0].mxu0
        %2103 = vmatprep.mubr.bf16.mxu0 0
        %2104 = vmatmul.mubr.bf16.gmra.mrb[0].mxu0 %v1751
        %v2105 = vpop.f32.mrb[0].mxu0
        %v2106 = vadd.f32 %v1773, %v2105
        %v2107 = vpop.f32.mrb[0].mxu0
        %v2108 = vpop.f32.mrb[0].mxu0
        %v2109 = vadd.f32 %v1773, %v2108
        %v2110 = vpop.f32.mrb[0].mxu0
        %2111 = vdwg.mxu0
        %v2112 = vmul.f32 %v1858, 0.5
        %v2113 = vmul.f32 %v1861, 0.5
        %v2114 = vmul.f32 %v1866, 0.5
        %v2115 = vmul.f32 %v1869, 0.5
        %v2116 = vmul.f32 %v1874, 0.5
        %v2117 = vmul.f32 %v1877, 0.5
        %v2118 = vmul.f32 %v1882, 0.5
        %v2119 = vmul.f32 %v1885, 0.5
        %v2120 = vmul.f32 %v1890, 0.5
        %v2121 = vmul.f32 %v1893, 0.5
        %v2122 = vmul.f32 %v1898, 0.5
        %v2123 = vmul.f32 %v1901, 0.5
        %v2124 = vmul.f32 %v1906, 0.5
        %v2125 = vmul.f32 %v1909, 0.5
        %v2126 = vmul.f32 %v1914, 0.5
        %v2127 = vmul.f32 %v1917, 0.5
        %v2128 = vmul.f32 %v1922, 0.5
        %v2129 = vmul.f32 %v1925, 0.5
        %v2130 = vmul.f32 %v1930, 0.5
        %v2131 = vmul.f32 %v1933, 0.5
        %v2132 = vmul.f32 %v1938, 0.5
        %v2133 = vmul.f32 %v1941, 0.5
        %v2134 = vmul.f32 %v1946, 0.5
        %v2135 = vmul.f32 %v1949, 0.5
        %v2136 = vmul.f32 %v1954, 0.5
        %v2137 = vmul.f32 %v1957, 0.5
        %v2138 = vmul.f32 %v1962, 0.5
        %v2139 = vmul.f32 %v1965, 0.5
        %v2140 = vmul.f32 %v1970, 0.5
        %v2141 = vmul.f32 %v1973, 0.5
        %v2142 = vmul.f32 %v1978, 0.5
        %v2143 = vmul.f32 %v1981, 0.5
        %v2144 = vmul.f32 %v1986, 0.5
        %v2145 = vmul.f32 %v1989, 0.5
        %v2146 = vmul.f32 %v1994, 0.5
        %v2147 = vmul.f32 %v1997, 0.5
        %v2148 = vmul.f32 %v2002, 0.5
        %v2149 = vmul.f32 %v2005, 0.5
        %v2150 = vmul.f32 %v2010, 0.5
        %v2151 = vmul.f32 %v2013, 0.5
        %v2152 = vmul.f32 %v2018, 0.5
        %v2153 = vmul.f32 %v2021, 0.5
        %v2154 = vmul.f32 %v2026, 0.5
        %v2155 = vmul.f32 %v2029, 0.5
        %v2156 = vmul.f32 %v2034, 0.5
        %v2157 = vmul.f32 %v2037, 0.5
        %v2158 = vmul.f32 %v2042, 0.5
        %v2159 = vmul.f32 %v2045, 0.5
        %v2160 = vmul.f32 %v2050, 0.5
        %v2161 = vmul.f32 %v2053, 0.5
        %v2162 = vmul.f32 %v2058, 0.5
        %v2163 = vmul.f32 %v2061, 0.5
        %v2164 = vmul.f32 %v2066, 0.5
        %v2165 = vmul.f32 %v2069, 0.5
        %v2166 = vmul.f32 %v2074, 0.5
        %v2167 = vmul.f32 %v2077, 0.5
        %v2168 = vmul.f32 %v2082, 0.5
        %v2169 = vmul.f32 %v2085, 0.5
        %v2170 = vmul.f32 %v2090, 0.5
        %v2171 = vmul.f32 %v2093, 0.5
        %v2172 = vmul.f32 %v2098, 0.5
        %v2173 = vmul.f32 %v2101, 0.5
        %v2174 = vmul.f32 %v2106, 0.5
        %v2175 = vmul.f32 %v2109, 0.5
        %v2176 = vtanh.pop %v2112
        %v2177 = vtanh.pop %v2113
        %v2178 = vtanh.pop %v2114
        %v2179 = vtanh.pop %v2115
        %v2180 = vtanh.pop %v2116
        %v2181 = vtanh.pop %v2117
        %v2182 = vtanh.pop %v2118
        %v2183 = vtanh.pop %v2119
        %v2184 = vtanh.pop %v2120
        %v2185 = vtanh.pop %v2121
        %v2186 = vtanh.pop %v2122
        %v2187 = vtanh.pop %v2123
        %v2188 = vtanh.pop %v2124
        %v2189 = vtanh.pop %v2125
        %v2190 = vtanh.pop %v2126
        %v2191 = vtanh.pop %v2127
        %v2192 = vtanh.pop %v2128
        %v2193 = vtanh.pop %v2129
        %v2194 = vtanh.pop %v2130
        %v2195 = vtanh.pop %v2131
        %v2196 = vtanh.pop %v2132
        %v2197 = vtanh.pop %v2133
        %v2198 = vtanh.pop %v2134
        %v2199 = vtanh.pop %v2135
        %v2200 = vtanh.pop %v2136
        %v2201 = vtanh.pop %v2137
        %v2202 = vtanh.pop %v2138
        %v2203 = vtanh.pop %v2139
        %v2204 = vtanh.pop %v2140
        %v2205 = vtanh.pop %v2141
        %v2206 = vtanh.pop %v2142
        %v2207 = vtanh.pop %v2143
        %v2208 = vtanh.pop %v2144
        %v2209 = vtanh.pop %v2145
        %v2210 = vtanh.pop %v2146
        %v2211 = vtanh.pop %v2147
        %v2212 = vtanh.pop %v2148
        %v2213 = vtanh.pop %v2149
        %v2214 = vtanh.pop %v2150
        %v2215 = vtanh.pop %v2151
        %v2216 = vtanh.pop %v2152
        %v2217 = vtanh.pop %v2153
        %v2218 = vtanh.pop %v2154
        %v2219 = vtanh.pop %v2155
        %v2220 = vtanh.pop %v2156
        %v2221 = vtanh.pop %v2157
        %v2222 = vtanh.pop %v2158
        %v2223 = vtanh.pop %v2159
        %v2224 = vtanh.pop %v2160
        %v2225 = vtanh.pop %v2161
        %v2226 = vtanh.pop %v2162
        %v2227 = vtanh.pop %v2163
        %v2228 = vtanh.pop %v2164
        %v2229 = vtanh.pop %v2165
        %v2230 = vtanh.pop %v2166
        %v2231 = vtanh.pop %v2167
        %v2232 = vtanh.pop %v2168
        %v2233 = vtanh.pop %v2169
        %v2234 = vtanh.pop %v2170
        %v2235 = vtanh.pop %v2171
        %v2236 = vtanh.pop %v2172
        %v2237 = vtanh.pop %v2173
        %v2238 = vtanh.pop %v2174
        %v2239 = vtanh.pop %v2175
        %v2240 = vadd.f32 %v2176, 1.0
        %v2241 = vadd.f32 %v2177, 1.0
        %v2242 = vadd.f32 %v2178, 1.0
        %v2243 = vadd.f32 %v2179, 1.0
        %v2244 = vadd.f32 %v2180, 1.0
        %v2245 = vadd.f32 %v2181, 1.0
        %v2246 = vadd.f32 %v2182, 1.0
        %v2247 = vadd.f32 %v2183, 1.0
        %v2248 = vadd.f32 %v2184, 1.0
        %v2249 = vadd.f32 %v2185, 1.0
        %v2250 = vadd.f32 %v2186, 1.0
        %v2251 = vadd.f32 %v2187, 1.0
        %v2252 = vadd.f32 %v2188, 1.0
        %v2253 = vadd.f32 %v2189, 1.0
        %v2254 = vadd.f32 %v2190, 1.0
        %v2255 = vadd.f32 %v2191, 1.0
        %v2256 = vadd.f32 %v2192, 1.0
        %v2257 = vadd.f32 %v2193, 1.0
        %v2258 = vadd.f32 %v2194, 1.0
        %v2259 = vadd.f32 %v2195, 1.0
        %v2260 = vadd.f32 %v2196, 1.0
        %v2261 = vadd.f32 %v2197, 1.0
        %v2262 = vadd.f32 %v2198, 1.0
        %v2263 = vadd.f32 %v2199, 1.0
        %v2264 = vadd.f32 %v2200, 1.0
        %v2265 = vadd.f32 %v2201, 1.0
        %v2266 = vadd.f32 %v2202, 1.0
        %v2267 = vadd.f32 %v2203, 1.0
        %v2268 = vadd.f32 %v2204, 1.0
        %v2269 = vadd.f32 %v2205, 1.0
        %v2270 = vadd.f32 %v2206, 1.0
        %v2271 = vadd.f32 %v2207, 1.0
        %v2272 = vadd.f32 %v2208, 1.0
        %v2273 = vadd.f32 %v2209, 1.0
        %v2274 = vadd.f32 %v2210, 1.0
        %v2275 = vadd.f32 %v2211, 1.0
        %v2276 = vadd.f32 %v2212, 1.0
        %v2277 = vadd.f32 %v2213, 1.0
        %v2278 = vadd.f32 %v2214, 1.0
        %v2279 = vadd.f32 %v2215, 1.0
        %v2280 = vadd.f32 %v2216, 1.0
        %v2281 = vadd.f32 %v2217, 1.0
        %v2282 = vadd.f32 %v2218, 1.0
        %v2283 = vadd.f32 %v2219, 1.0
        %v2284 = vadd.f32 %v2220, 1.0
        %v2285 = vadd.f32 %v2221, 1.0
        %v2286 = vadd.f32 %v2222, 1.0
        %v2287 = vadd.f32 %v2223, 1.0
        %v2288 = vadd.f32 %v2224, 1.0
        %v2289 = vadd.f32 %v2225, 1.0
        %v2290 = vadd.f32 %v2226, 1.0
        %v2291 = vadd.f32 %v2227, 1.0
        %v2292 = vadd.f32 %v2228, 1.0
        %v2293 = vadd.f32 %v2229, 1.0
        %v2294 = vadd.f32 %v2230, 1.0
        %v2295 = vadd.f32 %v2231, 1.0
        %v2296 = vadd.f32 %v2232, 1.0
        %v2297 = vadd.f32 %v2233, 1.0
        %v2298 = vadd.f32 %v2234, 1.0
        %v2299 = vadd.f32 %v2235, 1.0
        %v2300 = vadd.f32 %v2236, 1.0
        %v2301 = vadd.f32 %v2237, 1.0
        %v2302 = vadd.f32 %v2238, 1.0
        %v2303 = vadd.f32 %v2239, 1.0
        %v2304 = vmul.f32 %v2112, %v2240
        %v2305 = vmul.f32 %v2113, %v2241
        %v2306 = vmul.f32 %v2114, %v2242
        %v2307 = vmul.f32 %v2115, %v2243
        %v2308 = vmul.f32 %v2116, %v2244
        %v2309 = vmul.f32 %v2117, %v2245
        %v2310 = vmul.f32 %v2118, %v2246
        %v2311 = vmul.f32 %v2119, %v2247
        %v2312 = vmul.f32 %v2120, %v2248
        %v2313 = vmul.f32 %v2121, %v2249
        %v2314 = vmul.f32 %v2122, %v2250
        %v2315 = vmul.f32 %v2123, %v2251
        %v2316 = vmul.f32 %v2124, %v2252
        %v2317 = vmul.f32 %v2125, %v2253
        %v2318 = vmul.f32 %v2126, %v2254
        %v2319 = vmul.f32 %v2127, %v2255
        %v2320 = vmul.f32 %v2128, %v2256
        %v2321 = vmul.f32 %v2129, %v2257
        %v2322 = vmul.f32 %v2130, %v2258
        %v2323 = vmul.f32 %v2131, %v2259
        %v2324 = vmul.f32 %v2132, %v2260
        %v2325 = vmul.f32 %v2133, %v2261
        %v2326 = vmul.f32 %v2134, %v2262
        %v2327 = vmul.f32 %v2135, %v2263
        %v2328 = vmul.f32 %v2136, %v2264
        %v2329 = vmul.f32 %v2137, %v2265
        %v2330 = vmul.f32 %v2138, %v2266
        %v2331 = vmul.f32 %v2139, %v2267
        %v2332 = vmul.f32 %v2140, %v2268
        %v2333 = vmul.f32 %v2141, %v2269
        %v2334 = vmul.f32 %v2142, %v2270
        %v2335 = vmul.f32 %v2143, %v2271
        %v2336 = vmul.f32 %v2144, %v2272
        %v2337 = vmul.f32 %v2145, %v2273
        %v2338 = vmul.f32 %v2146, %v2274
        %v2339 = vmul.f32 %v2147, %v2275
        %v2340 = vmul.f32 %v2148, %v2276
        %v2341 = vmul.f32 %v2149, %v2277
        %v2342 = vmul.f32 %v2150, %v2278
        %v2343 = vmul.f32 %v2151, %v2279
        %v2344 = vmul.f32 %v2152, %v2280
        %v2345 = vmul.f32 %v2153, %v2281
        %v2346 = vmul.f32 %v2154, %v2282
        %v2347 = vmul.f32 %v2155, %v2283
        %v2348 = vmul.f32 %v2156, %v2284
        %v2349 = vmul.f32 %v2157, %v2285
        %v2350 = vmul.f32 %v2158, %v2286
        %v2351 = vmul.f32 %v2159, %v2287
        %v2352 = vmul.f32 %v2160, %v2288
        %v2353 = vmul.f32 %v2161, %v2289
        %v2354 = vmul.f32 %v2162, %v2290
        %v2355 = vmul.f32 %v2163, %v2291
        %v2356 = vmul.f32 %v2164, %v2292
        %v2357 = vmul.f32 %v2165, %v2293
        %v2358 = vmul.f32 %v2166, %v2294
        %v2359 = vmul.f32 %v2167, %v2295
        %v2360 = vmul.f32 %v2168, %v2296
        %v2361 = vmul.f32 %v2169, %v2297
        %v2362 = vmul.f32 %v2170, %v2298
        %v2363 = vmul.f32 %v2171, %v2299
        %v2364 = vmul.f32 %v2172, %v2300
        %v2365 = vmul.f32 %v2173, %v2301
        %v2366 = vmul.f32 %v2174, %v2302
        %v2367 = vmul.f32 %v2175, %v2303
        %v2368 = vadd.f32 %v2304, %v1592
        %v2369 = vadd.f32 %v2305, %v1594
        %v2370 = vadd.f32 %v2306, %v1596
        %v2371 = vadd.f32 %v2307, %v1598
        %v2372 = vadd.f32 %v2308, %v1600
        %v2373 = vadd.f32 %v2309, %v1602
        %v2374 = vadd.f32 %v2310, %v1604
        %v2375 = vadd.f32 %v2311, %v1606
        %v2376 = vadd.f32 %v2312, %v1608
        %v2377 = vadd.f32 %v2313, %v1610
        %v2378 = vadd.f32 %v2314, %v1612
        %v2379 = vadd.f32 %v2315, %v1614
        %v2380 = vadd.f32 %v2316, %v1616
        %v2381 = vadd.f32 %v2317, %v1618
        %v2382 = vadd.f32 %v2318, %v1620
        %v2383 = vadd.f32 %v2319, %v1622
        %v2384 = vadd.f32 %v2320, %v1624
        %v2385 = vadd.f32 %v2321, %v1626
        %v2386 = vadd.f32 %v2322, %v1628
        %v2387 = vadd.f32 %v2323, %v1630
        %v2388 = vadd.f32 %v2324, %v1632
        %v2389 = vadd.f32 %v2325, %v1634
        %v2390 = vadd.f32 %v2326, %v1636
        %v2391 = vadd.f32 %v2327, %v1638
        %v2392 = vadd.f32 %v2328, %v1640
        %v2393 = vadd.f32 %v2329, %v1642
        %v2394 = vadd.f32 %v2330, %v1644
        %v2395 = vadd.f32 %v2331, %v1646
        %v2396 = vadd.f32 %v2332, %v1648
        %v2397 = vadd.f32 %v2333, %v1650
        %v2398 = vadd.f32 %v2334, %v1652
        %v2399 = vadd.f32 %v2335, %v1654
        %v2400 = vadd.f32 %v2336, %v1656
        %v2401 = vadd.f32 %v2337, %v1658
        %v2402 = vadd.f32 %v2338, %v1660
        %v2403 = vadd.f32 %v2339, %v1662
        %v2404 = vadd.f32 %v2340, %v1664
        %v2405 = vadd.f32 %v2341, %v1666
        %v2406 = vadd.f32 %v2342, %v1668
        %v2407 = vadd.f32 %v2343, %v1670
        %v2408 = vadd.f32 %v2344, %v1672
        %v2409 = vadd.f32 %v2345, %v1674
        %v2410 = vadd.f32 %v2346, %v1676
        %v2411 = vadd.f32 %v2347, %v1678
        %v2412 = vadd.f32 %v2348, %v1680
        %v2413 = vadd.f32 %v2349, %v1682
        %v2414 = vadd.f32 %v2350, %v1684
        %v2415 = vadd.f32 %v2351, %v1686
        %v2416 = vadd.f32 %v2352, %v1688
        %v2417 = vadd.f32 %v2353, %v1690
        %v2418 = vadd.f32 %v2354, %v1692
        %v2419 = vadd.f32 %v2355, %v1694
        %v2420 = vadd.f32 %v2356, %v1696
        %v2421 = vadd.f32 %v2357, %v1698
        %v2422 = vadd.f32 %v2358, %v1700
        %v2423 = vadd.f32 %v2359, %v1702
        %v2424 = vadd.f32 %v2360, %v1704
        %v2425 = vadd.f32 %v2361, %v1706
        %v2426 = vadd.f32 %v2362, %v1708
        %v2427 = vadd.f32 %v2363, %v1710
        %v2428 = vadd.f32 %v2364, %v1712
        %v2429 = vadd.f32 %v2365, %v1714
        %v2430 = vadd.f32 %v2366, %v1716
        %v2431 = vadd.f32 %v2367, %v1718
        %v2432 = vpack.c.bf16 %v2369, %v2368
        %v2433 = vpack.c.bf16 %v2371, %v2370
        %v2434 = vpack.c.bf16 %v2373, %v2372
        %v2435 = vpack.c.bf16 %v2375, %v2374
        %v2436 = vpack.c.bf16 %v2377, %v2376
        %v2437 = vpack.c.bf16 %v2379, %v2378
        %v2438 = vpack.c.bf16 %v2381, %v2380
        %v2439 = vpack.c.bf16 %v2383, %v2382
        %v2440 = vpack.c.bf16 %v2385, %v2384
        %v2441 = vpack.c.bf16 %v2387, %v2386
        %v2442 = vpack.c.bf16 %v2389, %v2388
        %v2443 = vpack.c.bf16 %v2391, %v2390
        %v2444 = vpack.c.bf16 %v2393, %v2392
        %v2445 = vpack.c.bf16 %v2395, %v2394
        %v2446 = vpack.c.bf16 %v2397, %v2396
        %v2447 = vpack.c.bf16 %v2399, %v2398
        %v2448 = vpack.c.bf16 %v2401, %v2400
        %v2449 = vpack.c.bf16 %v2403, %v2402
        %v2450 = vpack.c.bf16 %v2405, %v2404
        %v2451 = vpack.c.bf16 %v2407, %v2406
        %v2452 = vpack.c.bf16 %v2409, %v2408
        %v2453 = vpack.c.bf16 %v2411, %v2410
        %v2454 = vpack.c.bf16 %v2413, %v2412
        %v2455 = vpack.c.bf16 %v2415, %v2414
        %v2456 = vpack.c.bf16 %v2417, %v2416
        %v2457 = vpack.c.bf16 %v2419, %v2418
        %v2458 = vpack.c.bf16 %v2421, %v2420
        %v2459 = vpack.c.bf16 %v2423, %v2422
        %v2460 = vpack.c.bf16 %v2425, %v2424
        %v2461 = vpack.c.bf16 %v2427, %v2426
        %v2462 = vpack.c.bf16 %v2429, %v2428
        %v2463 = vpack.c.bf16 %v2431, %v2430
        %v2464 = vld [vmem:[#allocation10] sm:$0xf]
        %v2465 = vld [vmem:[#allocation10 + $0x4] sm:$0xf]
        %v2466 = vld [vmem:[#allocation10 + $0x8] sm:$0xf]
        %v2467 = vld [vmem:[#allocation10 + $0xc] sm:$0xf]
        %v2468 = vld [vmem:[#allocation10 + $0x10] sm:$0xf]
        %v2469 = vld [vmem:[#allocation10 + $0x14] sm:$0xf]
        %v2470 = vld [vmem:[#allocation10 + $0x18] sm:$0xf]
        %v2471 = vld [vmem:[#allocation10 + $0x1c] sm:$0xf]
        %v2472 = vld [vmem:[#allocation10 + $0x20] sm:$0xf]
        %v2473 = vld [vmem:[#allocation10 + $0x24] sm:$0xf]
        %v2474 = vld [vmem:[#allocation10 + $0x28] sm:$0xf]
        %v2475 = vld [vmem:[#allocation10 + $0x2c] sm:$0xf]
        %v2476 = vld [vmem:[#allocation10 + $0x30] sm:$0xf]
        %v2477 = vld [vmem:[#allocation10 + $0x34] sm:$0xf]
        %v2478 = vld [vmem:[#allocation10 + $0x38] sm:$0xf]
        %v2479 = vld [vmem:[#allocation10 + $0x3c] sm:$0xf]
        %v2480 = vld [vmem:[%s7] sm:$0x1]
        %v2482 = vlaneseq
        %v2483 = vshrl.u32 %v2482, 7
        %v2484 = vsub.s32 0, %v2483
        %v2485 = vrot.slane %v2480, %v2484
        %v2503 = vunpack.c.l.b16 %v2464
        %v2504 = vunpack.c.l.b16 %v2465
        %v2505 = vunpack.c.l.b16 %v2466
        %v2506 = vunpack.c.l.b16 %v2467
        %v2507 = vunpack.c.l.b16 %v2468
        %v2508 = vunpack.c.l.b16 %v2469
        %v2509 = vunpack.c.l.b16 %v2470
        %v2510 = vunpack.c.l.b16 %v2471
        %v2511 = vunpack.c.l.b16 %v2472
        %v2512 = vunpack.c.l.b16 %v2473
        %v2513 = vunpack.c.l.b16 %v2474
        %v2514 = vunpack.c.l.b16 %v2475
        %v2515 = vunpack.c.l.b16 %v2476
        %v2516 = vunpack.c.l.b16 %v2477
        %v2517 = vunpack.c.l.b16 %v2478
        %v2518 = vunpack.c.l.b16 %v2479
        %v2519 = vpack.c.b16 %v2504, %v2503
        %v2520 = vpack.c.b16 %v2506, %v2505
        %v2521 = vpack.c.b16 %v2508, %v2507
        %v2522 = vpack.c.b16 %v2510, %v2509
        %v2523 = vpack.c.b16 %v2512, %v2511
        %v2524 = vpack.c.b16 %v2514, %v2513
        %v2525 = vpack.c.b16 %v2516, %v2515
        %v2526 = vpack.c.b16 %v2518, %v2517
        %2535 = vmatprep.subr.bf16.mxu0 0
        %2536 = vmatpush1.bf16.msra.mxu0 %v2519
        %2537 = vmatprep.subr.bf16.mxu0 0
        %2538 = vmatpush1.bf16.msra.mxu0 %v2520
        %2539 = vmatprep.subr.bf16.mxu0 0
        %2540 = vmatpush1.bf16.msra.mxu0 %v2521
        %2541 = vmatprep.subr.bf16.mxu0 0
        %2542 = vmatpush1.bf16.msra.mxu0 %v2522
        %2543 = vmatprep.subr.bf16.mxu0 0
        %2544 = vmatpush1.bf16.msra.mxu0 %v2523
        %2545 = vmatprep.subr.bf16.mxu0 0
        %2546 = vmatpush1.bf16.msra.mxu0 %v2524
        %2547 = vmatprep.subr.bf16.mxu0 0
        %2548 = vmatpush1.bf16.msra.mxu0 %v2525
        %2549 = vmatprep.subr.bf16.mxu0 0
        %2550 = vmatpush1.bf16.msra.mxu0 %v2526
        %2551 = vmatprep.subr.bf16.mxu0 0
        %2552 = vmatpush1.bf16.msra.mxu0 0
        %2553 = vmatprep.subr.bf16.mxu0 0
        %2554 = vmatpush1.bf16.msra.mxu0 0
        %2555 = vmatprep.subr.bf16.mxu0 0
        %2556 = vmatpush1.bf16.msra.mxu0 0
        %2557 = vmatprep.subr.bf16.mxu0 0
        %2558 = vmatpush1.bf16.msra.mxu0 0
        %2559 = vmatprep.subr.bf16.mxu0 0
        %2560 = vmatpush1.bf16.msra.mxu0 0
        %2561 = vmatprep.subr.bf16.mxu0 0
        %2562 = vmatpush1.bf16.msra.mxu0 0
        %2563 = vmatprep.subr.bf16.mxu0 0
        %2564 = vmatpush1.bf16.msra.mxu0 0
        %2565 = vmatprep.subr.bf16.mxu0 0
        %2566 = vmatpush1.bf16.msra.mxu0 0
        %2567 = vmatprep.mubr.bf16.mxu0 0
        %2568 = vmatmul.mubr.bf16.gmra.mrb[0].mxu0 %v2432
        %v2569 = vpop.f32.mrb[0].mxu0
        %v2570 = vadd.f32 %v2485, %v2569
        %v2571 = vpop.f32.mrb[0].mxu0
        %v2572 = vpop.f32.mrb[0].mxu0
        %v2573 = vadd.f32 %v2485, %v2572
        %v2574 = vpop.f32.mrb[0].mxu0
        %2575 = vmatprep.mubr.bf16.mxu0 0
        %2576 = vmatmul.mubr.bf16.gmra.mrb[0].mxu0 %v2433
        %v2577 = vpop.f32.mrb[0].mxu0
        %v2578 = vadd.f32 %v2485, %v2577
        %v2579 = vpop.f32.mrb[0].mxu0
        %v2580 = vpop.f32.mrb[0].mxu0
        %v2581 = vadd.f32 %v2485, %v2580
        %v2582 = vpop.f32.mrb[0].mxu0
        %2583 = vmatprep.mubr.bf16.mxu0 0
        %2584 = vmatmul.mubr.bf16.gmra.mrb[0].mxu0 %v2434
        %v2585 = vpop.f32.mrb[0].mxu0
        %v2586 = vadd.f32 %v2485, %v2585
        %v2587 = vpop.f32.mrb[0].mxu0
        %v2588 = vpop.f32.mrb[0].mxu0
        %v2589 = vadd.f32 %v2485, %v2588
        %v2590 = vpop.f32.mrb[0].mxu0
        %2591 = vmatprep.mubr.bf16.mxu0 0
        %2592 = vmatmul.mubr.bf16.gmra.mrb[0].mxu0 %v2435
        %v2593 = vpop.f32.mrb[0].mxu0
        %v2594 = vadd.f32 %v2485, %v2593
        %v2595 = vpop.f32.mrb[0].mxu0
        %v2596 = vpop.f32.mrb[0].mxu0
        %v2597 = vadd.f32 %v2485, %v2596
        %v2598 = vpop.f32.mrb[0].mxu0
        %2599 = vmatprep.mubr.bf16.mxu0 0
        %2600 = vmatmul.mubr.bf16.gmra.mrb[0].mxu0 %v2436
        %v2601 = vpop.f32.mrb[0].mxu0
        %v2602 = vadd.f32 %v2485, %v2601
        %v2603 = vpop.f32.mrb[0].mxu0
        %v2604 = vpop.f32.mrb[0].mxu0
        %v2605 = vadd.f32 %v2485, %v2604
        %v2606 = vpop.f32.mrb[0].mxu0
        %2607 = vmatprep.mubr.bf16.mxu0 0
        %2608 = vmatmul.mubr.bf16.gmra.mrb[0].mxu0 %v2437
        %v2609 = vpop.f32.mrb[0].mxu0
        %v2610 = vadd.f32 %v2485, %v2609
        %v2611 = vpop.f32.mrb[0].mxu0
        %v2612 = vpop.f32.mrb[0].mxu0
        %v2613 = vadd.f32 %v2485, %v2612
        %v2614 = vpop.f32.mrb[0].mxu0
        %2615 = vmatprep.mubr.bf16.mxu0 0
        %2616 = vmatmul.mubr.bf16.gmra.mrb[0].mxu0 %v2438
        %v2617 = vpop.f32.mrb[0].mxu0
        %v2618 = vadd.f32 %v2485, %v2617
        %v2619 = vpop.f32.mrb[0].mxu0
        %v2620 = vpop.f32.mrb[0].mxu0
        %v2621 = vadd.f32 %v2485, %v2620
        %v2622 = vpop.f32.mrb[0].mxu0
        %2623 = vmatprep.mubr.bf16.mxu0 0
        %2624 = vmatmul.mubr.bf16.gmra.mrb[0].mxu0 %v2439
        %v2625 = vpop.f32.mrb[0].mxu0
        %v2626 = vadd.f32 %v2485, %v2625
        %v2627 = vpop.f32.mrb[0].mxu0
        %v2628 = vpop.f32.mrb[0].mxu0
        %v2629 = vadd.f32 %v2485, %v2628
        %v2630 = vpop.f32.mrb[0].mxu0
        %2631 = vmatprep.mubr.bf16.mxu0 0
        %2632 = vmatmul.mubr.bf16.gmra.mrb[0].mxu0 %v2440
        %v2633 = vpop.f32.mrb[0].mxu0
        %v2634 = vadd.f32 %v2485, %v2633
        %v2635 = vpop.f32.mrb[0].mxu0
        %v2636 = vpop.f32.mrb[0].mxu0
        %v2637 = vadd.f32 %v2485, %v2636
        %v2638 = vpop.f32.mrb[0].mxu0
        %2639 = vmatprep.mubr.bf16.mxu0 0
        %2640 = vmatmul.mubr.bf16.gmra.mrb[0].mxu0 %v2441
        %v2641 = vpop.f32.mrb[0].mxu0
        %v2642 = vadd.f32 %v2485, %v2641
        %v2643 = vpop.f32.mrb[0].mxu0
        %v2644 = vpop.f32.mrb[0].mxu0
        %v2645 = vadd.f32 %v2485, %v2644
        %v2646 = vpop.f32.mrb[0].mxu0
        %2647 = vmatprep.mubr.bf16.mxu0 0
        %2648 = vmatmul.mubr.bf16.gmra.mrb[0].mxu0 %v2442
        %v2649 = vpop.f32.mrb[0].mxu0
        %v2650 = vadd.f32 %v2485, %v2649
        %v2651 = vpop.f32.mrb[0].mxu0
        %v2652 = vpop.f32.mrb[0].mxu0
        %v2653 = vadd.f32 %v2485, %v2652
        %v2654 = vpop.f32.mrb[0].mxu0
        %2655 = vmatprep.mubr.bf16.mxu0 0
        %2656 = vmatmul.mubr.bf16.gmra.mrb[0].mxu0 %v2443
        %v2657 = vpop.f32.mrb[0].mxu0
        %v2658 = vadd.f32 %v2485, %v2657
        %v2659 = vpop.f32.mrb[0].mxu0
        %v2660 = vpop.f32.mrb[0].mxu0
        %v2661 = vadd.f32 %v2485, %v2660
        %v2662 = vpop.f32.mrb[0].mxu0
        %2663 = vmatprep.mubr.bf16.mxu0 0
        %2664 = vmatmul.mubr.bf16.gmra.mrb[0].mxu0 %v2444
        %v2665 = vpop.f32.mrb[0].mxu0
        %v2666 = vadd.f32 %v2485, %v2665
        %v2667 = vpop.f32.mrb[0].mxu0
        %v2668 = vpop.f32.mrb[0].mxu0
        %v2669 = vadd.f32 %v2485, %v2668
        %v2670 = vpop.f32.mrb[0].mxu0
        %2671 = vmatprep.mubr.bf16.mxu0 0
        %2672 = vmatmul.mubr.bf16.gmra.mrb[0].mxu0 %v2445
        %v2673 = vpop.f32.mrb[0].mxu0
        %v2674 = vadd.f32 %v2485, %v2673
        %v2675 = vpop.f32.mrb[0].mxu0
        %v2676 = vpop.f32.mrb[0].mxu0
        %v2677 = vadd.f32 %v2485, %v2676
        %v2678 = vpop.f32.mrb[0].mxu0
        %2679 = vmatprep.mubr.bf16.mxu0 0
        %2680 = vmatmul.mubr.bf16.gmra.mrb[0].mxu0 %v2446
        %v2681 = vpop.f32.mrb[0].mxu0
        %v2682 = vadd.f32 %v2485, %v2681
        %v2683 = vpop.f32.mrb[0].mxu0
        %v2684 = vpop.f32.mrb[0].mxu0
        %v2685 = vadd.f32 %v2485, %v2684
        %v2686 = vpop.f32.mrb[0].mxu0
        %2687 = vmatprep.mubr.bf16.mxu0 0
        %2688 = vmatmul.mubr.bf16.gmra.mrb[0].mxu0 %v2447
        %v2689 = vpop.f32.mrb[0].mxu0
        %v2690 = vadd.f32 %v2485, %v2689
        %v2691 = vpop.f32.mrb[0].mxu0
        %v2692 = vpop.f32.mrb[0].mxu0
        %v2693 = vadd.f32 %v2485, %v2692
        %v2694 = vpop.f32.mrb[0].mxu0
        %2695 = vmatprep.mubr.bf16.mxu0 0
        %2696 = vmatmul.mubr.bf16.gmra.mrb[0].mxu0 %v2448
        %v2697 = vpop.f32.mrb[0].mxu0
        %v2698 = vadd.f32 %v2485, %v2697
        %v2699 = vpop.f32.mrb[0].mxu0
        %v2700 = vpop.f32.mrb[0].mxu0
        %v2701 = vadd.f32 %v2485, %v2700
        %v2702 = vpop.f32.mrb[0].mxu0
        %2703 = vmatprep.mubr.bf16.mxu0 0
        %2704 = vmatmul.mubr.bf16.gmra.mrb[0].mxu0 %v2449
        %v2705 = vpop.f32.mrb[0].mxu0
        %v2706 = vadd.f32 %v2485, %v2705
        %v2707 = vpop.f32.mrb[0].mxu0
        %v2708 = vpop.f32.mrb[0].mxu0
        %v2709 = vadd.f32 %v2485, %v2708
        %v2710 = vpop.f32.mrb[0].mxu0
        %2711 = vmatprep.mubr.bf16.mxu0 0
        %2712 = vmatmul.mubr.bf16.gmra.mrb[0].mxu0 %v2450
        %v2713 = vpop.f32.mrb[0].mxu0
        %v2714 = vadd.f32 %v2485, %v2713
        %v2715 = vpop.f32.mrb[0].mxu0
        %v2716 = vpop.f32.mrb[0].mxu0
        %v2717 = vadd.f32 %v2485, %v2716
        %v2718 = vpop.f32.mrb[0].mxu0
        %2719 = vmatprep.mubr.bf16.mxu0 0
        %2720 = vmatmul.mubr.bf16.gmra.mrb[0].mxu0 %v2451
        %v2721 = vpop.f32.mrb[0].mxu0
        %v2722 = vadd.f32 %v2485, %v2721
        %v2723 = vpop.f32.mrb[0].mxu0
        %v2724 = vpop.f32.mrb[0].mxu0
        %v2725 = vadd.f32 %v2485, %v2724
        %v2726 = vpop.f32.mrb[0].mxu0
        %2727 = vmatprep.mubr.bf16.mxu0 0
        %2728 = vmatmul.mubr.bf16.gmra.mrb[0].mxu0 %v2452
        %v2729 = vpop.f32.mrb[0].mxu0
        %v2730 = vadd.f32 %v2485, %v2729
        %v2731 = vpop.f32.mrb[0].mxu0
        %v2732 = vpop.f32.mrb[0].mxu0
        %v2733 = vadd.f32 %v2485, %v2732
        %v2734 = vpop.f32.mrb[0].mxu0
        %2735 = vmatprep.mubr.bf16.mxu0 0
        %2736 = vmatmul.mubr.bf16.gmra.mrb[0].mxu0 %v2453
        %v2737 = vpop.f32.mrb[0].mxu0
        %v2738 = vadd.f32 %v2485, %v2737
        %v2739 = vpop.f32.mrb[0].mxu0
        %v2740 = vpop.f32.mrb[0].mxu0
        %v2741 = vadd.f32 %v2485, %v2740
        %v2742 = vpop.f32.mrb[0].mxu0
        %2743 = vmatprep.mubr.bf16.mxu0 0
        %2744 = vmatmul.mubr.bf16.gmra.mrb[0].mxu0 %v2454
        %v2745 = vpop.f32.mrb[0].mxu0
        %v2746 = vadd.f32 %v2485, %v2745
        %v2747 = vpop.f32.mrb[0].mxu0
        %v2748 = vpop.f32.mrb[0].mxu0
        %v2749 = vadd.f32 %v2485, %v2748
        %v2750 = vpop.f32.mrb[0].mxu0
        %2751 = vmatprep.mubr.bf16.mxu0 0
        %2752 = vmatmul.mubr.bf16.gmra.mrb[0].mxu0 %v2455
        %v2753 = vpop.f32.mrb[0].mxu0
        %v2754 = vadd.f32 %v2485, %v2753
        %v2755 = vpop.f32.mrb[0].mxu0
        %v2756 = vpop.f32.mrb[0].mxu0
        %v2757 = vadd.f32 %v2485, %v2756
        %v2758 = vpop.f32.mrb[0].mxu0
        %2759 = vmatprep.mubr.bf16.mxu0 0
        %2760 = vmatmul.mubr.bf16.gmra.mrb[0].mxu0 %v2456
        %v2761 = vpop.f32.mrb[0].mxu0
        %v2762 = vadd.f32 %v2485, %v2761
        %v2763 = vpop.f32.mrb[0].mxu0
        %v2764 = vpop.f32.mrb[0].mxu0
        %v2765 = vadd.f32 %v2485, %v2764
        %v2766 = vpop.f32.mrb[0].mxu0
        %2767 = vmatprep.mubr.bf16.mxu0 0
        %2768 = vmatmul.mubr.bf16.gmra.mrb[0].mxu0 %v2457
        %v2769 = vpop.f32.mrb[0].mxu0
        %v2770 = vadd.f32 %v2485, %v2769
        %v2771 = vpop.f32.mrb[0].mxu0
        %v2772 = vpop.f32.mrb[0].mxu0
        %v2773 = vadd.f32 %v2485, %v2772
        %v2774 = vpop.f32.mrb[0].mxu0
        %2775 = vmatprep.mubr.bf16.mxu0 0
        %2776 = vmatmul.mubr.bf16.gmra.mrb[0].mxu0 %v2458
        %v2777 = vpop.f32.mrb[0].mxu0
        %v2778 = vadd.f32 %v2485, %v2777
        %v2779 = vpop.f32.mrb[0].mxu0
        %v2780 = vpop.f32.mrb[0].mxu0
        %v2781 = vadd.f32 %v2485, %v2780
        %v2782 = vpop.f32.mrb[0].mxu0
        %2783 = vmatprep.mubr.bf16.mxu0 0
        %2784 = vmatmul.mubr.bf16.gmra.mrb[0].mxu0 %v2459
        %v2785 = vpop.f32.mrb[0].mxu0
        %v2786 = vadd.f32 %v2485, %v2785
        %v2787 = vpop.f32.mrb[0].mxu0
        %v2788 = vpop.f32.mrb[0].mxu0
        %v2789 = vadd.f32 %v2485, %v2788
        %v2790 = vpop.f32.mrb[0].mxu0
        %2791 = vmatprep.mubr.bf16.mxu0 0
        %2792 = vmatmul.mubr.bf16.gmra.mrb[0].mxu0 %v2460
        %v2793 = vpop.f32.mrb[0].mxu0
        %v2794 = vadd.f32 %v2485, %v2793
        %v2795 = vpop.f32.mrb[0].mxu0
        %v2796 = vpop.f32.mrb[0].mxu0
        %v2797 = vadd.f32 %v2485, %v2796
        %v2798 = vpop.f32.mrb[0].mxu0
        %2799 = vmatprep.mubr.bf16.mxu0 0
        %2800 = vmatmul.mubr.bf16.gmra.mrb[0].mxu0 %v2461
        %v2801 = vpop.f32.mrb[0].mxu0
        %v2802 = vadd.f32 %v2485, %v2801
        %v2803 = vpop.f32.mrb[0].mxu0
        %v2804 = vpop.f32.mrb[0].mxu0
        %v2805 = vadd.f32 %v2485, %v2804
        %v2806 = vpop.f32.mrb[0].mxu0
        %2807 = vmatprep.mubr.bf16.mxu0 0
        %2808 = vmatmul.mubr.bf16.gmra.mrb[0].mxu0 %v2462
        %v2809 = vpop.f32.mrb[0].mxu0
        %v2810 = vadd.f32 %v2485, %v2809
        %v2811 = vpop.f32.mrb[0].mxu0
        %v2812 = vpop.f32.mrb[0].mxu0
        %v2813 = vadd.f32 %v2485, %v2812
        %v2814 = vpop.f32.mrb[0].mxu0
        %2815 = vmatprep.mubr.bf16.mxu0 0
        %2816 = vmatmul.mubr.bf16.gmra.mrb[0].mxu0 %v2463
        %v2817 = vpop.f32.mrb[0].mxu0
        %v2818 = vadd.f32 %v2485, %v2817
        %v2819 = vpop.f32.mrb[0].mxu0
        %v2820 = vpop.f32.mrb[0].mxu0
        %v2821 = vadd.f32 %v2485, %v2820
        %v2822 = vpop.f32.mrb[0].mxu0
        %2823 = vdwg.mxu0
        %v2824 = vmul.f32 %v2570, 0.5
        %v2825 = vmul.f32 %v2573, 0.5
        %v2826 = vmul.f32 %v2578, 0.5
        %v2827 = vmul.f32 %v2581, 0.5
        %v2828 = vmul.f32 %v2586, 0.5
        %v2829 = vmul.f32 %v2589, 0.5
        %v2830 = vmul.f32 %v2594, 0.5
        %v2831 = vmul.f32 %v2597, 0.5
        %v2832 = vmul.f32 %v2602, 0.5
        %v2833 = vmul.f32 %v2605, 0.5
        %v2834 = vmul.f32 %v2610, 0.5
        %v2835 = vmul.f32 %v2613, 0.5
        %v2836 = vmul.f32 %v2618, 0.5
        %v2837 = vmul.f32 %v2621, 0.5
        %v2838 = vmul.f32 %v2626, 0.5
        %v2839 = vmul.f32 %v2629, 0.5
        %v2840 = vmul.f32 %v2634, 0.5
        %v2841 = vmul.f32 %v2637, 0.5
        %v2842 = vmul.f32 %v2642, 0.5
        %v2843 = vmul.f32 %v2645, 0.5
        %v2844 = vmul.f32 %v2650, 0.5
        %v2845 = vmul.f32 %v2653, 0.5
        %v2846 = vmul.f32 %v2658, 0.5
        %v2847 = vmul.f32 %v2661, 0.5
        %v2848 = vmul.f32 %v2666, 0.5
        %v2849 = vmul.f32 %v2669, 0.5
        %v2850 = vmul.f32 %v2674, 0.5
        %v2851 = vmul.f32 %v2677, 0.5
        %v2852 = vmul.f32 %v2682, 0.5
        %v2853 = vmul.f32 %v2685, 0.5
        %v2854 = vmul.f32 %v2690, 0.5
        %v2855 = vmul.f32 %v2693, 0.5
        %v2856 = vmul.f32 %v2698, 0.5
        %v2857 = vmul.f32 %v2701, 0.5
        %v2858 = vmul.f32 %v2706, 0.5
        %v2859 = vmul.f32 %v2709, 0.5
        %v2860 = vmul.f32 %v2714, 0.5
        %v2861 = vmul.f32 %v2717, 0.5
        %v2862 = vmul.f32 %v2722, 0.5
        %v2863 = vmul.f32 %v2725, 0.5
        %v2864 = vmul.f32 %v2730, 0.5
        %v2865 = vmul.f32 %v2733, 0.5
        %v2866 = vmul.f32 %v2738, 0.5
        %v2867 = vmul.f32 %v2741, 0.5
        %v2868 = vmul.f32 %v2746, 0.5
        %v2869 = vmul.f32 %v2749, 0.5
        %v2870 = vmul.f32 %v2754, 0.5
        %v2871 = vmul.f32 %v2757, 0.5
        %v2872 = vmul.f32 %v2762, 0.5
        %v2873 = vmul.f32 %v2765, 0.5
        %v2874 = vmul.f32 %v2770, 0.5
        %v2875 = vmul.f32 %v2773, 0.5
        %v2876 = vmul.f32 %v2778, 0.5
        %v2877 = vmul.f32 %v2781, 0.5
        %v2878 = vmul.f32 %v2786, 0.5
        %v2879 = vmul.f32 %v2789, 0.5
        %v2880 = vmul.f32 %v2794, 0.5
        %v2881 = vmul.f32 %v2797, 0.5
        %v2882 = vmul.f32 %v2802, 0.5
        %v2883 = vmul.f32 %v2805, 0.5
        %v2884 = vmul.f32 %v2810, 0.5
        %v2885 = vmul.f32 %v2813, 0.5
        %v2886 = vmul.f32 %v2818, 0.5
        %v2887 = vmul.f32 %v2821, 0.5
        %v2888 = vtanh.pop %v2824
        %v2889 = vtanh.pop %v2825
        %v2890 = vtanh.pop %v2826
        %v2891 = vtanh.pop %v2827
        %v2892 = vtanh.pop %v2828
        %v2893 = vtanh.pop %v2829
        %v2894 = vtanh.pop %v2830
        %v2895 = vtanh.pop %v2831
        %v2896 = vtanh.pop %v2832
        %v2897 = vtanh.pop %v2833
        %v2898 = vtanh.pop %v2834
        %v2899 = vtanh.pop %v2835
        %v2900 = vtanh.pop %v2836
        %v2901 = vtanh.pop %v2837
        %v2902 = vtanh.pop %v2838
        %v2903 = vtanh.pop %v2839
        %v2904 = vtanh.pop %v2840
        %v2905 = vtanh.pop %v2841
        %v2906 = vtanh.pop %v2842
        %v2907 = vtanh.pop %v2843
        %v2908 = vtanh.pop %v2844
        %v2909 = vtanh.pop %v2845
        %v2910 = vtanh.pop %v2846
        %v2911 = vtanh.pop %v2847
        %v2912 = vtanh.pop %v2848
        %v2913 = vtanh.pop %v2849
        %v2914 = vtanh.pop %v2850
        %v2915 = vtanh.pop %v2851
        %v2916 = vtanh.pop %v2852
        %v2917 = vtanh.pop %v2853
        %v2918 = vtanh.pop %v2854
        %v2919 = vtanh.pop %v2855
        %v2920 = vtanh.pop %v2856
        %v2921 = vtanh.pop %v2857
        %v2922 = vtanh.pop %v2858
        %v2923 = vtanh.pop %v2859
        %v2924 = vtanh.pop %v2860
        %v2925 = vtanh.pop %v2861
        %v2926 = vtanh.pop %v2862
        %v2927 = vtanh.pop %v2863
        %v2928 = vtanh.pop %v2864
        %v2929 = vtanh.pop %v2865
        %v2930 = vtanh.pop %v2866
        %v2931 = vtanh.pop %v2867
        %v2932 = vtanh.pop %v2868
        %v2933 = vtanh.pop %v2869
        %v2934 = vtanh.pop %v2870
        %v2935 = vtanh.pop %v2871
        %v2936 = vtanh.pop %v2872
        %v2937 = vtanh.pop %v2873
        %v2938 = vtanh.pop %v2874
        %v2939 = vtanh.pop %v2875
        %v2940 = vtanh.pop %v2876
        %v2941 = vtanh.pop %v2877
        %v2942 = vtanh.pop %v2878
        %v2943 = vtanh.pop %v2879
        %v2944 = vtanh.pop %v2880
        %v2945 = vtanh.pop %v2881
        %v2946 = vtanh.pop %v2882
        %v2947 = vtanh.pop %v2883
        %v2948 = vtanh.pop %v2884
        %v2949 = vtanh.pop %v2885
        %v2950 = vtanh.pop %v2886
        %v2951 = vtanh.pop %v2887
        %v2952 = vadd.f32 %v2888, 1.0
        %v2953 = vadd.f32 %v2889, 1.0
        %v2954 = vadd.f32 %v2890, 1.0
        %v2955 = vadd.f32 %v2891, 1.0
        %v2956 = vadd.f32 %v2892, 1.0
        %v2957 = vadd.f32 %v2893, 1.0
        %v2958 = vadd.f32 %v2894, 1.0
        %v2959 = vadd.f32 %v2895, 1.0
        %v2960 = vadd.f32 %v2896, 1.0
        %v2961 = vadd.f32 %v2897, 1.0
        %v2962 = vadd.f32 %v2898, 1.0
        %v2963 = vadd.f32 %v2899, 1.0
        %v2964 = vadd.f32 %v2900, 1.0
        %v2965 = vadd.f32 %v2901, 1.0
        %v2966 = vadd.f32 %v2902, 1.0
        %v2967 = vadd.f32 %v2903, 1.0
        %v2968 = vadd.f32 %v2904, 1.0
        %v2969 = vadd.f32 %v2905, 1.0
        %v2970 = vadd.f32 %v2906, 1.0
        %v2971 = vadd.f32 %v2907, 1.0
        %v2972 = vadd.f32 %v2908, 1.0
        %v2973 = vadd.f32 %v2909, 1.0
        %v2974 = vadd.f32 %v2910, 1.0
        %v2975 = vadd.f32 %v2911, 1.0
        %v2976 = vadd.f32 %v2912, 1.0
        %v2977 = vadd.f32 %v2913, 1.0
        %v2978 = vadd.f32 %v2914, 1.0
        %v2979 = vadd.f32 %v2915, 1.0
        %v2980 = vadd.f32 %v2916, 1.0
        %v2981 = vadd.f32 %v2917, 1.0
        %v2982 = vadd.f32 %v2918, 1.0
        %v2983 = vadd.f32 %v2919, 1.0
        %v2984 = vadd.f32 %v2920, 1.0
        %v2985 = vadd.f32 %v2921, 1.0
        %v2986 = vadd.f32 %v2922, 1.0
        %v2987 = vadd.f32 %v2923, 1.0
        %v2988 = vadd.f32 %v2924, 1.0
        %v2989 = vadd.f32 %v2925, 1.0
        %v2990 = vadd.f32 %v2926, 1.0
        %v2991 = vadd.f32 %v2927, 1.0
        %v2992 = vadd.f32 %v2928, 1.0
        %v2993 = vadd.f32 %v2929, 1.0
        %v2994 = vadd.f32 %v2930, 1.0
        %v2995 = vadd.f32 %v2931, 1.0
        %v2996 = vadd.f32 %v2932, 1.0
        %v2997 = vadd.f32 %v2933, 1.0
        %v2998 = vadd.f32 %v2934, 1.0
        %v2999 = vadd.f32 %v2935, 1.0
        %v3000 = vadd.f32 %v2936, 1.0
        %v3001 = vadd.f32 %v2937, 1.0
        %v3002 = vadd.f32 %v2938, 1.0
        %v3003 = vadd.f32 %v2939, 1.0
        %v3004 = vadd.f32 %v2940, 1.0
        %v3005 = vadd.f32 %v2941, 1.0
        %v3006 = vadd.f32 %v2942, 1.0
        %v3007 = vadd.f32 %v2943, 1.0
        %v3008 = vadd.f32 %v2944, 1.0
        %v3009 = vadd.f32 %v2945, 1.0
        %v3010 = vadd.f32 %v2946, 1.0
        %v3011 = vadd.f32 %v2947, 1.0
        %v3012 = vadd.f32 %v2948, 1.0
        %v3013 = vadd.f32 %v2949, 1.0
        %v3014 = vadd.f32 %v2950, 1.0
        %v3015 = vadd.f32 %v2951, 1.0
        %v3016 = vmul.f32 %v2824, %v2952
        %v3017 = vmul.f32 %v2825, %v2953
        %v3018 = vmul.f32 %v2826, %v2954
        %v3019 = vmul.f32 %v2827, %v2955
        %v3020 = vmul.f32 %v2828, %v2956
        %v3021 = vmul.f32 %v2829, %v2957
        %v3022 = vmul.f32 %v2830, %v2958
        %v3023 = vmul.f32 %v2831, %v2959
        %v3024 = vmul.f32 %v2832, %v2960
        %v3025 = vmul.f32 %v2833, %v2961
        %v3026 = vmul.f32 %v2834, %v2962
        %v3027 = vmul.f32 %v2835, %v2963
        %v3028 = vmul.f32 %v2836, %v2964
        %v3029 = vmul.f32 %v2837, %v2965
        %v3030 = vmul.f32 %v2838, %v2966
        %v3031 = vmul.f32 %v2839, %v2967
        %v3032 = vmul.f32 %v2840, %v2968
        %v3033 = vmul.f32 %v2841, %v2969
        %v3034 = vmul.f32 %v2842, %v2970
        %v3035 = vmul.f32 %v2843, %v2971
        %v3036 = vmul.f32 %v2844, %v2972
        %v3037 = vmul.f32 %v2845, %v2973
        %v3038 = vmul.f32 %v2846, %v2974
        %v3039 = vmul.f32 %v2847, %v2975
        %v3040 = vmul.f32 %v2848, %v2976
        %v3041 = vmul.f32 %v2849, %v2977
        %v3042 = vmul.f32 %v2850, %v2978
        %v3043 = vmul.f32 %v2851, %v2979
        %v3044 = vmul.f32 %v2852, %v2980
        %v3045 = vmul.f32 %v2853, %v2981
        %v3046 = vmul.f32 %v2854, %v2982
        %v3047 = vmul.f32 %v2855, %v2983
        %v3048 = vmul.f32 %v2856, %v2984
        %v3049 = vmul.f32 %v2857, %v2985
        %v3050 = vmul.f32 %v2858, %v2986
        %v3051 = vmul.f32 %v2859, %v2987
        %v3052 = vmul.f32 %v2860, %v2988
        %v3053 = vmul.f32 %v2861, %v2989
        %v3054 = vmul.f32 %v2862, %v2990
        %v3055 = vmul.f32 %v2863, %v2991
        %v3056 = vmul.f32 %v2864, %v2992
        %v3057 = vmul.f32 %v2865, %v2993
        %v3058 = vmul.f32 %v2866, %v2994
        %v3059 = vmul.f32 %v2867, %v2995
        %v3060 = vmul.f32 %v2868, %v2996
        %v3061 = vmul.f32 %v2869, %v2997
        %v3062 = vmul.f32 %v2870, %v2998
        %v3063 = vmul.f32 %v2871, %v2999
        %v3064 = vmul.f32 %v2872, %v3000
        %v3065 = vmul.f32 %v2873, %v3001
        %v3066 = vmul.f32 %v2874, %v3002
        %v3067 = vmul.f32 %v2875, %v3003
        %v3068 = vmul.f32 %v2876, %v3004
        %v3069 = vmul.f32 %v2877, %v3005
        %v3070 = vmul.f32 %v2878, %v3006
        %v3071 = vmul.f32 %v2879, %v3007
        %v3072 = vmul.f32 %v2880, %v3008
        %v3073 = vmul.f32 %v2881, %v3009
        %v3074 = vmul.f32 %v2882, %v3010
        %v3075 = vmul.f32 %v2883, %v3011
        %v3076 = vmul.f32 %v2884, %v3012
        %v3077 = vmul.f32 %v2885, %v3013
        %v3078 = vmul.f32 %v2886, %v3014
        %v3079 = vmul.f32 %v2887, %v3015
        %3080 = vst [vmem:[%s574] sm:$0xff] %v3016
        %3081 = vst [vmem:[%s574 + $0x8] sm:$0xff] %v3017
        %3082 = vst [vmem:[%s574 + $0x10] sm:$0xff] %v3018
        %3083 = vst [vmem:[%s574 + $0x18] sm:$0xff] %v3019
        %3084 = vst [vmem:[%s574 + $0x20] sm:$0xff] %v3020
        %3085 = vst [vmem:[%s574 + $0x28] sm:$0xff] %v3021
        %3086 = vst [vmem:[%s574 + $0x30] sm:$0xff] %v3022
        %3087 = vst [vmem:[%s574 + $0x38] sm:$0xff] %v3023
        %3088 = vst [vmem:[%s574 + $0x40] sm:$0xff] %v3024
        %3089 = vst [vmem:[%s574 + $0x48] sm:$0xff] %v3025
        %3090 = vst [vmem:[%s574 + $0x50] sm:$0xff] %v3026
        %3091 = vst [vmem:[%s574 + $0x58] sm:$0xff] %v3027
        %3092 = vst [vmem:[%s574 + $0x60] sm:$0xff] %v3028
        %3093 = vst [vmem:[%s574 + $0x68] sm:$0xff] %v3029
        %3094 = vst [vmem:[%s574 + $0x70] sm:$0xff] %v3030
        %3095 = vst [vmem:[%s574 + $0x78] sm:$0xff] %v3031
        %3096 = vst [vmem:[%s574 + $0x80] sm:$0xff] %v3032
        %3097 = vst [vmem:[%s574 + $0x88] sm:$0xff] %v3033
        %3098 = vst [vmem:[%s574 + $0x90] sm:$0xff] %v3034
        %3099 = vst [vmem:[%s574 + $0x98] sm:$0xff] %v3035
        %3100 = vst [vmem:[%s574 + $0xa0] sm:$0xff] %v3036
        %3101 = vst [vmem:[%s574 + $0xa8] sm:$0xff] %v3037
        %3102 = vst [vmem:[%s574 + $0xb0] sm:$0xff] %v3038
        %3103 = vst [vmem:[%s574 + $0xb8] sm:$0xff] %v3039
        %3104 = vst [vmem:[%s574 + $0xc0] sm:$0xff] %v3040
        %3105 = vst [vmem:[%s574 + $0xc8] sm:$0xff] %v3041
        %3106 = vst [vmem:[%s574 + $0xd0] sm:$0xff] %v3042
        %3107 = vst [vmem:[%s574 + $0xd8] sm:$0xff] %v3043
        %3108 = vst [vmem:[%s574 + $0xe0] sm:$0xff] %v3044
        %3109 = vst [vmem:[%s574 + $0xe8] sm:$0xff] %v3045
        %3110 = vst [vmem:[%s574 + $0xf0] sm:$0xff] %v3046
        %3111 = vst [vmem:[%s574 + $0xf8] sm:$0xff] %v3047
        %3112 = vst [vmem:[%s574 + $0x100] sm:$0xff] %v3048
        %3113 = vst [vmem:[%s574 + $0x108] sm:$0xff] %v3049
        %3114 = vst [vmem:[%s574 + $0x110] sm:$0xff] %v3050
        %3115 = vst [vmem:[%s574 + $0x118] sm:$0xff] %v3051
        %3116 = vst [vmem:[%s574 + $0x120] sm:$0xff] %v3052
        %3117 = vst [vmem:[%s574 + $0x128] sm:$0xff] %v3053
        %3118 = vst [vmem:[%s574 + $0x130] sm:$0xff] %v3054
        %3119 = vst [vmem:[%s574 + $0x138] sm:$0xff] %v3055
        %3120 = vst [vmem:[%s574 + $0x140] sm:$0xff] %v3056
        %3121 = vst [vmem:[%s574 + $0x148] sm:$0xff] %v3057
        %3122 = vst [vmem:[%s574 + $0x150] sm:$0xff] %v3058
        %3123 = vst [vmem:[%s574 + $0x158] sm:$0xff] %v3059
        %3124 = vst [vmem:[%s574 + $0x160] sm:$0xff] %v3060
        %3125 = vst [vmem:[%s574 + $0x168] sm:$0xff] %v3061
        %3126 = vst [vmem:[%s574 + $0x170] sm:$0xff] %v3062
        %3127 = vst [vmem:[%s574 + $0x178] sm:$0xff] %v3063
        %3128 = vst [vmem:[%s574 + $0x180] sm:$0xff] %v3064
        %3129 = vst [vmem:[%s574 + $0x188] sm:$0xff] %v3065
        %3130 = vst [vmem:[%s574 + $0x190] sm:$0xff] %v3066
        %3131 = vst [vmem:[%s574 + $0x198] sm:$0xff] %v3067
        %3132 = vst [vmem:[%s574 + $0x1a0] sm:$0xff] %v3068
        %3133 = vst [vmem:[%s574 + $0x1a8] sm:$0xff] %v3069
        %3134 = vst [vmem:[%s574 + $0x1b0] sm:$0xff] %v3070
        %3135 = vst [vmem:[%s574 + $0x1b8] sm:$0xff] %v3071
        %3136 = vst [vmem:[%s574 + $0x1c0] sm:$0xff] %v3072
        %3137 = vst [vmem:[%s574 + $0x1c8] sm:$0xff] %v3073
        %3138 = vst [vmem:[%s574 + $0x1d0] sm:$0xff] %v3074
        %3139 = vst [vmem:[%s574 + $0x1d8] sm:$0xff] %v3075
        %3140 = vst [vmem:[%s574 + $0x1e0] sm:$0xff] %v3076
        %3141 = vst [vmem:[%s574 + $0x1e8] sm:$0xff] %v3077
        %3142 = vst [vmem:[%s574 + $0x1f0] sm:$0xff] %v3078
        %3143 = vst [vmem:[%s574 + $0x1f8] sm:$0xff] %v3079
        %v3144 = vpack.c.bf16 %v3017, %v3016
        %v3145 = vpack.c.bf16 %v3019, %v3018
        %v3146 = vpack.c.bf16 %v3021, %v3020
        %v3147 = vpack.c.bf16 %v3023, %v3022
        %v3148 = vpack.c.bf16 %v3025, %v3024
        %v3149 = vpack.c.bf16 %v3027, %v3026
        %v3150 = vpack.c.bf16 %v3029, %v3028
        %v3151 = vpack.c.bf16 %v3031, %v3030
        %v3152 = vpack.c.bf16 %v3033, %v3032
        %v3153 = vpack.c.bf16 %v3035, %v3034
        %v3154 = vpack.c.bf16 %v3037, %v3036
        %v3155 = vpack.c.bf16 %v3039, %v3038
        %v3156 = vpack.c.bf16 %v3041, %v3040
        %v3157 = vpack.c.bf16 %v3043, %v3042
        %v3158 = vpack.c.bf16 %v3045, %v3044
        %v3159 = vpack.c.bf16 %v3047, %v3046
        %v3160 = vpack.c.bf16 %v3049, %v3048
        %v3161 = vpack.c.bf16 %v3051, %v3050
        %v3162 = vpack.c.bf16 %v3053, %v3052
        %v3163 = vpack.c.bf16 %v3055, %v3054
        %v3164 = vpack.c.bf16 %v3057, %v3056
        %v3165 = vpack.c.bf16 %v3059, %v3058
        %v3166 = vpack.c.bf16 %v3061, %v3060
        %v3167 = vpack.c.bf16 %v3063, %v3062
        %v3168 = vpack.c.bf16 %v3065, %v3064
        %v3169 = vpack.c.bf16 %v3067, %v3066
        %v3170 = vpack.c.bf16 %v3069, %v3068
        %v3171 = vpack.c.bf16 %v3071, %v3070
        %v3172 = vpack.c.bf16 %v3073, %v3072
        %v3173 = vpack.c.bf16 %v3075, %v3074
        %v3174 = vpack.c.bf16 %v3077, %v3076
        %v3175 = vpack.c.bf16 %v3079, %v3078
        %v3176 = vld [vmem:[#allocation11] sm:$0xf]
        %v3177 = vld [vmem:[#allocation11 + $0x4] sm:$0xf]
        %v3178 = vld [vmem:[#allocation11 + $0x8] sm:$0xf]
        %v3179 = vld [vmem:[#allocation11 + $0xc] sm:$0xf]
        %v3180 = vld [vmem:[#allocation11 + $0x10] sm:$0xf]
        %v3181 = vld [vmem:[#allocation11 + $0x14] sm:$0xf]
        %v3182 = vld [vmem:[#allocation11 + $0x18] sm:$0xf]
        %v3183 = vld [vmem:[#allocation11 + $0x1c] sm:$0xf]
        %v3184 = vld [vmem:[#allocation11 + $0x20] sm:$0xf]
        %v3185 = vld [vmem:[#allocation11 + $0x24] sm:$0xf]
        %v3186 = vld [vmem:[#allocation11 + $0x28] sm:$0xf]
        %v3187 = vld [vmem:[#allocation11 + $0x2c] sm:$0xf]
        %v3188 = vld [vmem:[#allocation11 + $0x30] sm:$0xf]
        %v3189 = vld [vmem:[#allocation11 + $0x34] sm:$0xf]
        %v3190 = vld [vmem:[#allocation11 + $0x38] sm:$0xf]
        %v3191 = vld [vmem:[#allocation11 + $0x3c] sm:$0xf]
        %v3192 = vld [vmem:[%s9] sm:$0x1]
        %v3194 = vlaneseq
        %v3195 = vshrl.u32 %v3194, 7
        %v3196 = vsub.s32 0, %v3195
        %v3197 = vrot.slane %v3192, %v3196
        %v3215 = vunpack.c.l.b16 %v3176
        %v3216 = vunpack.c.l.b16 %v3177
        %v3217 = vunpack.c.l.b16 %v3178
        %v3218 = vunpack.c.l.b16 %v3179
        %v3219 = vunpack.c.l.b16 %v3180
        %v3220 = vunpack.c.l.b16 %v3181
        %v3221 = vunpack.c.l.b16 %v3182
        %v3222 = vunpack.c.l.b16 %v3183
        %v3223 = vunpack.c.l.b16 %v3184
        %v3224 = vunpack.c.l.b16 %v3185
        %v3225 = vunpack.c.l.b16 %v3186
        %v3226 = vunpack.c.l.b16 %v3187
        %v3227 = vunpack.c.l.b16 %v3188
        %v3228 = vunpack.c.l.b16 %v3189
        %v3229 = vunpack.c.l.b16 %v3190
        %v3230 = vunpack.c.l.b16 %v3191
        %v3231 = vpack.c.b16 %v3216, %v3215
        %v3232 = vpack.c.b16 %v3218, %v3217
        %v3233 = vpack.c.b16 %v3220, %v3219
        %v3234 = vpack.c.b16 %v3222, %v3221
        %v3235 = vpack.c.b16 %v3224, %v3223
        %v3236 = vpack.c.b16 %v3226, %v3225
        %v3237 = vpack.c.b16 %v3228, %v3227
        %v3238 = vpack.c.b16 %v3230, %v3229
        %3247 = vmatprep.subr.bf16.mxu0 0
        %3248 = vmatpush1.bf16.msra.mxu0 %v3231
        %3249 = vmatprep.subr.bf16.mxu0 0
        %3250 = vmatpush1.bf16.msra.mxu0 %v3232
        %3251 = vmatprep.subr.bf16.mxu0 0
        %3252 = vmatpush1.bf16.msra.mxu0 %v3233
        %3253 = vmatprep.subr.bf16.mxu0 0
        %3254 = vmatpush1.bf16.msra.mxu0 %v3234
        %3255 = vmatprep.subr.bf16.mxu0 0
        %3256 = vmatpush1.bf16.msra.mxu0 %v3235
        %3257 = vmatprep.subr.bf16.mxu0 0
        %3258 = vmatpush1.bf16.msra.mxu0 %v3236
        %3259 = vmatprep.subr.bf16.mxu0 0
        %3260 = vmatpush1.bf16.msra.mxu0 %v3237
        %3261 = vmatprep.subr.bf16.mxu0 0
        %3262 = vmatpush1.bf16.msra.mxu0 %v3238
        %3263 = vmatprep.subr.bf16.mxu0 0
        %3264 = vmatpush1.bf16.msra.mxu0 0
        %3265 = vmatprep.subr.bf16.mxu0 0
        %3266 = vmatpush1.bf16.msra.mxu0 0
        %3267 = vmatprep.subr.bf16.mxu0 0
        %3268 = vmatpush1.bf16.msra.mxu0 0
        %3269 = vmatprep.subr.bf16.mxu0 0
        %3270 = vmatpush1.bf16.msra.mxu0 0
        %3271 = vmatprep.subr.bf16.mxu0 0
        %3272 = vmatpush1.bf16.msra.mxu0 0
        %3273 = vmatprep.subr.bf16.mxu0 0
        %3274 = vmatpush1.bf16.msra.mxu0 0
        %3275 = vmatprep.subr.bf16.mxu0 0
        %3276 = vmatpush1.bf16.msra.mxu0 0
        %3277 = vmatprep.subr.bf16.mxu0 0
        %3278 = vmatpush1.bf16.msra.mxu0 0
        %3279 = vmatprep.mubr.bf16.mxu0 0
        %3280 = vmatmul.mubr.bf16.gmra.mrb[0].mxu0 %v3144
        %v3281 = vpop.f32.mrb[0].mxu0
        %v3282 = vadd.f32 %v3197, %v3281
        %v3283 = vpop.f32.mrb[0].mxu0
        %v3284 = vpop.f32.mrb[0].mxu0
        %v3285 = vadd.f32 %v3197, %v3284
        %v3286 = vpop.f32.mrb[0].mxu0
        %3287 = vmatprep.mubr.bf16.mxu0 0
        %3288 = vmatmul.mubr.bf16.gmra.mrb[0].mxu0 %v3145
        %v3289 = vpop.f32.mrb[0].mxu0
        %v3290 = vadd.f32 %v3197, %v3289
        %v3291 = vpop.f32.mrb[0].mxu0
        %v3292 = vpop.f32.mrb[0].mxu0
        %v3293 = vadd.f32 %v3197, %v3292
        %v3294 = vpop.f32.mrb[0].mxu0
        %3295 = vmatprep.mubr.bf16.mxu0 0
        %3296 = vmatmul.mubr.bf16.gmra.mrb[0].mxu0 %v3146
        %v3297 = vpop.f32.mrb[0].mxu0
        %v3298 = vadd.f32 %v3197, %v3297
        %v3299 = vpop.f32.mrb[0].mxu0
        %v3300 = vpop.f32.mrb[0].mxu0
        %v3301 = vadd.f32 %v3197, %v3300
        %v3302 = vpop.f32.mrb[0].mxu0
        %3303 = vmatprep.mubr.bf16.mxu0 0
        %3304 = vmatmul.mubr.bf16.gmra.mrb[0].mxu0 %v3147
        %v3305 = vpop.f32.mrb[0].mxu0
        %v3306 = vadd.f32 %v3197, %v3305
        %v3307 = vpop.f32.mrb[0].mxu0
        %v3308 = vpop.f32.mrb[0].mxu0
        %v3309 = vadd.f32 %v3197, %v3308
        %v3310 = vpop.f32.mrb[0].mxu0
        %3311 = vmatprep.mubr.bf16.mxu0 0
        %3312 = vmatmul.mubr.bf16.gmra.mrb[0].mxu0 %v3148
        %v3313 = vpop.f32.mrb[0].mxu0
        %v3314 = vadd.f32 %v3197, %v3313
        %v3315 = vpop.f32.mrb[0].mxu0
        %v3316 = vpop.f32.mrb[0].mxu0
        %v3317 = vadd.f32 %v3197, %v3316
        %v3318 = vpop.f32.mrb[0].mxu0
        %3319 = vmatprep.mubr.bf16.mxu0 0
        %3320 = vmatmul.mubr.bf16.gmra.mrb[0].mxu0 %v3149
        %v3321 = vpop.f32.mrb[0].mxu0
        %v3322 = vadd.f32 %v3197, %v3321
        %v3323 = vpop.f32.mrb[0].mxu0
        %v3324 = vpop.f32.mrb[0].mxu0
        %v3325 = vadd.f32 %v3197, %v3324
        %v3326 = vpop.f32.mrb[0].mxu0
        %3327 = vmatprep.mubr.bf16.mxu0 0
        %3328 = vmatmul.mubr.bf16.gmra.mrb[0].mxu0 %v3150
        %v3329 = vpop.f32.mrb[0].mxu0
        %v3330 = vadd.f32 %v3197, %v3329
        %v3331 = vpop.f32.mrb[0].mxu0
        %v3332 = vpop.f32.mrb[0].mxu0
        %v3333 = vadd.f32 %v3197, %v3332
        %v3334 = vpop.f32.mrb[0].mxu0
        %3335 = vmatprep.mubr.bf16.mxu0 0
        %3336 = vmatmul.mubr.bf16.gmra.mrb[0].mxu0 %v3151
        %v3337 = vpop.f32.mrb[0].mxu0
        %v3338 = vadd.f32 %v3197, %v3337
        %v3339 = vpop.f32.mrb[0].mxu0
        %v3340 = vpop.f32.mrb[0].mxu0
        %v3341 = vadd.f32 %v3197, %v3340
        %v3342 = vpop.f32.mrb[0].mxu0
        %3343 = vmatprep.mubr.bf16.mxu0 0
        %3344 = vmatmul.mubr.bf16.gmra.mrb[0].mxu0 %v3152
        %v3345 = vpop.f32.mrb[0].mxu0
        %v3346 = vadd.f32 %v3197, %v3345
        %v3347 = vpop.f32.mrb[0].mxu0
        %v3348 = vpop.f32.mrb[0].mxu0
        %v3349 = vadd.f32 %v3197, %v3348
        %v3350 = vpop.f32.mrb[0].mxu0
        %3351 = vmatprep.mubr.bf16.mxu0 0
        %3352 = vmatmul.mubr.bf16.gmra.mrb[0].mxu0 %v3153
        %v3353 = vpop.f32.mrb[0].mxu0
        %v3354 = vadd.f32 %v3197, %v3353
        %v3355 = vpop.f32.mrb[0].mxu0
        %v3356 = vpop.f32.mrb[0].mxu0
        %v3357 = vadd.f32 %v3197, %v3356
        %v3358 = vpop.f32.mrb[0].mxu0
        %3359 = vmatprep.mubr.bf16.mxu0 0
        %3360 = vmatmul.mubr.bf16.gmra.mrb[0].mxu0 %v3154
        %v3361 = vpop.f32.mrb[0].mxu0
        %v3362 = vadd.f32 %v3197, %v3361
        %v3363 = vpop.f32.mrb[0].mxu0
        %v3364 = vpop.f32.mrb[0].mxu0
        %v3365 = vadd.f32 %v3197, %v3364
        %v3366 = vpop.f32.mrb[0].mxu0
        %3367 = vmatprep.mubr.bf16.mxu0 0
        %3368 = vmatmul.mubr.bf16.gmra.mrb[0].mxu0 %v3155
        %v3369 = vpop.f32.mrb[0].mxu0
        %v3370 = vadd.f32 %v3197, %v3369
        %v3371 = vpop.f32.mrb[0].mxu0
        %v3372 = vpop.f32.mrb[0].mxu0
        %v3373 = vadd.f32 %v3197, %v3372
        %v3374 = vpop.f32.mrb[0].mxu0
        %3375 = vmatprep.mubr.bf16.mxu0 0
        %3376 = vmatmul.mubr.bf16.gmra.mrb[0].mxu0 %v3156
        %v3377 = vpop.f32.mrb[0].mxu0
        %v3378 = vadd.f32 %v3197, %v3377
        %v3379 = vpop.f32.mrb[0].mxu0
        %v3380 = vpop.f32.mrb[0].mxu0
        %v3381 = vadd.f32 %v3197, %v3380
        %v3382 = vpop.f32.mrb[0].mxu0
        %3383 = vmatprep.mubr.bf16.mxu0 0
        %3384 = vmatmul.mubr.bf16.gmra.mrb[0].mxu0 %v3157
        %v3385 = vpop.f32.mrb[0].mxu0
        %v3386 = vadd.f32 %v3197, %v3385
        %v3387 = vpop.f32.mrb[0].mxu0
        %v3388 = vpop.f32.mrb[0].mxu0
        %v3389 = vadd.f32 %v3197, %v3388
        %v3390 = vpop.f32.mrb[0].mxu0
        %3391 = vmatprep.mubr.bf16.mxu0 0
        %3392 = vmatmul.mubr.bf16.gmra.mrb[0].mxu0 %v3158
        %v3393 = vpop.f32.mrb[0].mxu0
        %v3394 = vadd.f32 %v3197, %v3393
        %v3395 = vpop.f32.mrb[0].mxu0
        %v3396 = vpop.f32.mrb[0].mxu0
        %v3397 = vadd.f32 %v3197, %v3396
        %v3398 = vpop.f32.mrb[0].mxu0
        %3399 = vmatprep.mubr.bf16.mxu0 0
        %3400 = vmatmul.mubr.bf16.gmra.mrb[0].mxu0 %v3159
        %v3401 = vpop.f32.mrb[0].mxu0
        %v3402 = vadd.f32 %v3197, %v3401
        %v3403 = vpop.f32.mrb[0].mxu0
        %v3404 = vpop.f32.mrb[0].mxu0
        %v3405 = vadd.f32 %v3197, %v3404
        %v3406 = vpop.f32.mrb[0].mxu0
        %3407 = vmatprep.mubr.bf16.mxu0 0
        %3408 = vmatmul.mubr.bf16.gmra.mrb[0].mxu0 %v3160
        %v3409 = vpop.f32.mrb[0].mxu0
        %v3410 = vadd.f32 %v3197, %v3409
        %v3411 = vpop.f32.mrb[0].mxu0
        %v3412 = vpop.f32.mrb[0].mxu0
        %v3413 = vadd.f32 %v3197, %v3412
        %v3414 = vpop.f32.mrb[0].mxu0
        %3415 = vmatprep.mubr.bf16.mxu0 0
        %3416 = vmatmul.mubr.bf16.gmra.mrb[0].mxu0 %v3161
        %v3417 = vpop.f32.mrb[0].mxu0
        %v3418 = vadd.f32 %v3197, %v3417
        %v3419 = vpop.f32.mrb[0].mxu0
        %v3420 = vpop.f32.mrb[0].mxu0
        %v3421 = vadd.f32 %v3197, %v3420
        %v3422 = vpop.f32.mrb[0].mxu0
        %3423 = vmatprep.mubr.bf16.mxu0 0
        %3424 = vmatmul.mubr.bf16.gmra.mrb[0].mxu0 %v3162
        %v3425 = vpop.f32.mrb[0].mxu0
        %v3426 = vadd.f32 %v3197, %v3425
        %v3427 = vpop.f32.mrb[0].mxu0
        %v3428 = vpop.f32.mrb[0].mxu0
        %v3429 = vadd.f32 %v3197, %v3428
        %v3430 = vpop.f32.mrb[0].mxu0
        %3431 = vmatprep.mubr.bf16.mxu0 0
        %3432 = vmatmul.mubr.bf16.gmra.mrb[0].mxu0 %v3163
        %v3433 = vpop.f32.mrb[0].mxu0
        %v3434 = vadd.f32 %v3197, %v3433
        %v3435 = vpop.f32.mrb[0].mxu0
        %v3436 = vpop.f32.mrb[0].mxu0
        %v3437 = vadd.f32 %v3197, %v3436
        %v3438 = vpop.f32.mrb[0].mxu0
        %3439 = vmatprep.mubr.bf16.mxu0 0
        %3440 = vmatmul.mubr.bf16.gmra.mrb[0].mxu0 %v3164
        %v3441 = vpop.f32.mrb[0].mxu0
        %v3442 = vadd.f32 %v3197, %v3441
        %v3443 = vpop.f32.mrb[0].mxu0
        %v3444 = vpop.f32.mrb[0].mxu0
        %v3445 = vadd.f32 %v3197, %v3444
        %v3446 = vpop.f32.mrb[0].mxu0
        %3447 = vmatprep.mubr.bf16.mxu0 0
        %3448 = vmatmul.mubr.bf16.gmra.mrb[0].mxu0 %v3165
        %v3449 = vpop.f32.mrb[0].mxu0
        %v3450 = vadd.f32 %v3197, %v3449
        %v3451 = vpop.f32.mrb[0].mxu0
        %v3452 = vpop.f32.mrb[0].mxu0
        %v3453 = vadd.f32 %v3197, %v3452
        %v3454 = vpop.f32.mrb[0].mxu0
        %3455 = vmatprep.mubr.bf16.mxu0 0
        %3456 = vmatmul.mubr.bf16.gmra.mrb[0].mxu0 %v3166
        %v3457 = vpop.f32.mrb[0].mxu0
        %v3458 = vadd.f32 %v3197, %v3457
        %v3459 = vpop.f32.mrb[0].mxu0
        %v3460 = vpop.f32.mrb[0].mxu0
        %v3461 = vadd.f32 %v3197, %v3460
        %v3462 = vpop.f32.mrb[0].mxu0
        %3463 = vmatprep.mubr.bf16.mxu0 0
        %3464 = vmatmul.mubr.bf16.gmra.mrb[0].mxu0 %v3167
        %v3465 = vpop.f32.mrb[0].mxu0
        %v3466 = vadd.f32 %v3197, %v3465
        %v3467 = vpop.f32.mrb[0].mxu0
        %v3468 = vpop.f32.mrb[0].mxu0
        %v3469 = vadd.f32 %v3197, %v3468
        %v3470 = vpop.f32.mrb[0].mxu0
        %3471 = vmatprep.mubr.bf16.mxu0 0
        %3472 = vmatmul.mubr.bf16.gmra.mrb[0].mxu0 %v3168
        %v3473 = vpop.f32.mrb[0].mxu0
        %v3474 = vadd.f32 %v3197, %v3473
        %v3475 = vpop.f32.mrb[0].mxu0
        %v3476 = vpop.f32.mrb[0].mxu0
        %v3477 = vadd.f32 %v3197, %v3476
        %v3478 = vpop.f32.mrb[0].mxu0
        %3479 = vmatprep.mubr.bf16.mxu0 0
        %3480 = vmatmul.mubr.bf16.gmra.mrb[0].mxu0 %v3169
        %v3481 = vpop.f32.mrb[0].mxu0
        %v3482 = vadd.f32 %v3197, %v3481
        %v3483 = vpop.f32.mrb[0].mxu0
        %v3484 = vpop.f32.mrb[0].mxu0
        %v3485 = vadd.f32 %v3197, %v3484
        %v3486 = vpop.f32.mrb[0].mxu0
        %3487 = vmatprep.mubr.bf16.mxu0 0
        %3488 = vmatmul.mubr.bf16.gmra.mrb[0].mxu0 %v3170
        %v3489 = vpop.f32.mrb[0].mxu0
        %v3490 = vadd.f32 %v3197, %v3489
        %v3491 = vpop.f32.mrb[0].mxu0
        %v3492 = vpop.f32.mrb[0].mxu0
        %v3493 = vadd.f32 %v3197, %v3492
        %v3494 = vpop.f32.mrb[0].mxu0
        %3495 = vmatprep.mubr.bf16.mxu0 0
        %3496 = vmatmul.mubr.bf16.gmra.mrb[0].mxu0 %v3171
        %v3497 = vpop.f32.mrb[0].mxu0
        %v3498 = vadd.f32 %v3197, %v3497
        %v3499 = vpop.f32.mrb[0].mxu0
        %v3500 = vpop.f32.mrb[0].mxu0
        %v3501 = vadd.f32 %v3197, %v3500
        %v3502 = vpop.f32.mrb[0].mxu0
        %3503 = vmatprep.mubr.bf16.mxu0 0
        %3504 = vmatmul.mubr.bf16.gmra.mrb[0].mxu0 %v3172
        %v3505 = vpop.f32.mrb[0].mxu0
        %v3506 = vadd.f32 %v3197, %v3505
        %v3507 = vpop.f32.mrb[0].mxu0
        %v3508 = vpop.f32.mrb[0].mxu0
        %v3509 = vadd.f32 %v3197, %v3508
        %v3510 = vpop.f32.mrb[0].mxu0
        %3511 = vmatprep.mubr.bf16.mxu0 0
        %3512 = vmatmul.mubr.bf16.gmra.mrb[0].mxu0 %v3173
        %v3513 = vpop.f32.mrb[0].mxu0
        %v3514 = vadd.f32 %v3197, %v3513
        %v3515 = vpop.f32.mrb[0].mxu0
        %v3516 = vpop.f32.mrb[0].mxu0
        %v3517 = vadd.f32 %v3197, %v3516
        %v3518 = vpop.f32.mrb[0].mxu0
        %3519 = vmatprep.mubr.bf16.mxu0 0
        %3520 = vmatmul.mubr.bf16.gmra.mrb[0].mxu0 %v3174
        %v3521 = vpop.f32.mrb[0].mxu0
        %v3522 = vadd.f32 %v3197, %v3521
        %v3523 = vpop.f32.mrb[0].mxu0
        %v3524 = vpop.f32.mrb[0].mxu0
        %v3525 = vadd.f32 %v3197, %v3524
        %v3526 = vpop.f32.mrb[0].mxu0
        %3527 = vmatprep.mubr.bf16.mxu0 0
        %3528 = vmatmul.mubr.bf16.gmra.mrb[0].mxu0 %v3175
        %v3529 = vpop.f32.mrb[0].mxu0
        %v3530 = vadd.f32 %v3197, %v3529
        %v3531 = vpop.f32.mrb[0].mxu0
        %v3532 = vpop.f32.mrb[0].mxu0
        %v3533 = vadd.f32 %v3197, %v3532
        %v3534 = vpop.f32.mrb[0].mxu0
        %3535 = vdwg.mxu0
        %v3536 = vmul.f32 %v3282, 0.5
        %v3537 = vmul.f32 %v3285, 0.5
        %v3538 = vmul.f32 %v3290, 0.5
        %v3539 = vmul.f32 %v3293, 0.5
        %v3540 = vmul.f32 %v3298, 0.5
        %v3541 = vmul.f32 %v3301, 0.5
        %v3542 = vmul.f32 %v3306, 0.5
        %v3543 = vmul.f32 %v3309, 0.5
        %v3544 = vmul.f32 %v3314, 0.5
        %v3545 = vmul.f32 %v3317, 0.5
        %v3546 = vmul.f32 %v3322, 0.5
        %v3547 = vmul.f32 %v3325, 0.5
        %v3548 = vmul.f32 %v3330, 0.5
        %v3549 = vmul.f32 %v3333, 0.5
        %v3550 = vmul.f32 %v3338, 0.5
        %v3551 = vmul.f32 %v3341, 0.5
        %v3552 = vmul.f32 %v3346, 0.5
        %v3553 = vmul.f32 %v3349, 0.5
        %v3554 = vmul.f32 %v3354, 0.5
        %v3555 = vmul.f32 %v3357, 0.5
        %v3556 = vmul.f32 %v3362, 0.5
        %v3557 = vmul.f32 %v3365, 0.5
        %v3558 = vmul.f32 %v3370, 0.5
        %v3559 = vmul.f32 %v3373, 0.5
        %v3560 = vmul.f32 %v3378, 0.5
        %v3561 = vmul.f32 %v3381, 0.5
        %v3562 = vmul.f32 %v3386, 0.5
        %v3563 = vmul.f32 %v3389, 0.5
        %v3564 = vmul.f32 %v3394, 0.5
        %v3565 = vmul.f32 %v3397, 0.5
        %v3566 = vmul.f32 %v3402, 0.5
        %v3567 = vmul.f32 %v3405, 0.5
        %v3568 = vmul.f32 %v3410, 0.5
        %v3569 = vmul.f32 %v3413, 0.5
        %v3570 = vmul.f32 %v3418, 0.5
        %v3571 = vmul.f32 %v3421, 0.5
        %v3572 = vmul.f32 %v3426, 0.5
        %v3573 = vmul.f32 %v3429, 0.5
        %v3574 = vmul.f32 %v3434, 0.5
        %v3575 = vmul.f32 %v3437, 0.5
        %v3576 = vmul.f32 %v3442, 0.5
        %v3577 = vmul.f32 %v3445, 0.5
        %v3578 = vmul.f32 %v3450, 0.5
        %v3579 = vmul.f32 %v3453, 0.5
        %v3580 = vmul.f32 %v3458, 0.5
        %v3581 = vmul.f32 %v3461, 0.5
        %v3582 = vmul.f32 %v3466, 0.5
        %v3583 = vmul.f32 %v3469, 0.5
        %v3584 = vmul.f32 %v3474, 0.5
        %v3585 = vmul.f32 %v3477, 0.5
        %v3586 = vmul.f32 %v3482, 0.5
        %v3587 = vmul.f32 %v3485, 0.5
        %v3588 = vmul.f32 %v3490, 0.5
        %v3589 = vmul.f32 %v3493, 0.5
        %v3590 = vmul.f32 %v3498, 0.5
        %v3591 = vmul.f32 %v3501, 0.5
        %v3592 = vmul.f32 %v3506, 0.5
        %v3593 = vmul.f32 %v3509, 0.5
        %v3594 = vmul.f32 %v3514, 0.5
        %v3595 = vmul.f32 %v3517, 0.5
        %v3596 = vmul.f32 %v3522, 0.5
        %v3597 = vmul.f32 %v3525, 0.5
        %v3598 = vmul.f32 %v3530, 0.5
        %v3599 = vmul.f32 %v3533, 0.5
        %v3600 = vtanh.pop %v3536
        %v3601 = vtanh.pop %v3537
        %v3602 = vtanh.pop %v3538
        %v3603 = vtanh.pop %v3539
        %v3604 = vtanh.pop %v3540
        %v3605 = vtanh.pop %v3541
        %v3606 = vtanh.pop %v3542
        %v3607 = vtanh.pop %v3543
        %v3608 = vtanh.pop %v3544
        %v3609 = vtanh.pop %v3545
        %v3610 = vtanh.pop %v3546
        %v3611 = vtanh.pop %v3547
        %v3612 = vtanh.pop %v3548
        %v3613 = vtanh.pop %v3549
        %v3614 = vtanh.pop %v3550
        %v3615 = vtanh.pop %v3551
        %v3616 = vtanh.pop %v3552
        %v3617 = vtanh.pop %v3553
        %v3618 = vtanh.pop %v3554
        %v3619 = vtanh.pop %v3555
        %v3620 = vtanh.pop %v3556
        %v3621 = vtanh.pop %v3557
        %v3622 = vtanh.pop %v3558
        %v3623 = vtanh.pop %v3559
        %v3624 = vtanh.pop %v3560
        %v3625 = vtanh.pop %v3561
        %v3626 = vtanh.pop %v3562
        %v3627 = vtanh.pop %v3563
        %v3628 = vtanh.pop %v3564
        %v3629 = vtanh.pop %v3565
        %v3630 = vtanh.pop %v3566
        %v3631 = vtanh.pop %v3567
        %v3632 = vtanh.pop %v3568
        %v3633 = vtanh.pop %v3569
        %v3634 = vtanh.pop %v3570
        %v3635 = vtanh.pop %v3571
        %v3636 = vtanh.pop %v3572
        %v3637 = vtanh.pop %v3573
        %v3638 = vtanh.pop %v3574
        %v3639 = vtanh.pop %v3575
        %v3640 = vtanh.pop %v3576
        %v3641 = vtanh.pop %v3577
        %v3642 = vtanh.pop %v3578
        %v3643 = vtanh.pop %v3579
        %v3644 = vtanh.pop %v3580
        %v3645 = vtanh.pop %v3581
        %v3646 = vtanh.pop %v3582
        %v3647 = vtanh.pop %v3583
        %v3648 = vtanh.pop %v3584
        %v3649 = vtanh.pop %v3585
        %v3650 = vtanh.pop %v3586
        %v3651 = vtanh.pop %v3587
        %v3652 = vtanh.pop %v3588
        %v3653 = vtanh.pop %v3589
        %v3654 = vtanh.pop %v3590
        %v3655 = vtanh.pop %v3591
        %v3656 = vtanh.pop %v3592
        %v3657 = vtanh.pop %v3593
        %v3658 = vtanh.pop %v3594
        %v3659 = vtanh.pop %v3595
        %v3660 = vtanh.pop %v3596
        %v3661 = vtanh.pop %v3597
        %v3662 = vtanh.pop %v3598
        %v3663 = vtanh.pop %v3599
        %v3664 = vadd.f32 %v3600, 1.0
        %v3665 = vadd.f32 %v3601, 1.0
        %v3666 = vadd.f32 %v3602, 1.0
        %v3667 = vadd.f32 %v3603, 1.0
        %v3668 = vadd.f32 %v3604, 1.0
        %v3669 = vadd.f32 %v3605, 1.0
        %v3670 = vadd.f32 %v3606, 1.0
        %v3671 = vadd.f32 %v3607, 1.0
        %v3672 = vadd.f32 %v3608, 1.0
        %v3673 = vadd.f32 %v3609, 1.0
        %v3674 = vadd.f32 %v3610, 1.0
        %v3675 = vadd.f32 %v3611, 1.0
        %v3676 = vadd.f32 %v3612, 1.0
        %v3677 = vadd.f32 %v3613, 1.0
        %v3678 = vadd.f32 %v3614, 1.0
        %v3679 = vadd.f32 %v3615, 1.0
        %v3680 = vadd.f32 %v3616, 1.0
        %v3681 = vadd.f32 %v3617, 1.0
        %v3682 = vadd.f32 %v3618, 1.0
        %v3683 = vadd.f32 %v3619, 1.0
        %v3684 = vadd.f32 %v3620, 1.0
        %v3685 = vadd.f32 %v3621, 1.0
        %v3686 = vadd.f32 %v3622, 1.0
        %v3687 = vadd.f32 %v3623, 1.0
        %v3688 = vadd.f32 %v3624, 1.0
        %v3689 = vadd.f32 %v3625, 1.0
        %v3690 = vadd.f32 %v3626, 1.0
        %v3691 = vadd.f32 %v3627, 1.0
        %v3692 = vadd.f32 %v3628, 1.0
        %v3693 = vadd.f32 %v3629, 1.0
        %v3694 = vadd.f32 %v3630, 1.0
        %v3695 = vadd.f32 %v3631, 1.0
        %v3696 = vadd.f32 %v3632, 1.0
        %v3697 = vadd.f32 %v3633, 1.0
        %v3698 = vadd.f32 %v3634, 1.0
        %v3699 = vadd.f32 %v3635, 1.0
        %v3700 = vadd.f32 %v3636, 1.0
        %v3701 = vadd.f32 %v3637, 1.0
        %v3702 = vadd.f32 %v3638, 1.0
        %v3703 = vadd.f32 %v3639, 1.0
        %v3704 = vadd.f32 %v3640, 1.0
        %v3705 = vadd.f32 %v3641, 1.0
        %v3706 = vadd.f32 %v3642, 1.0
        %v3707 = vadd.f32 %v3643, 1.0
        %v3708 = vadd.f32 %v3644, 1.0
        %v3709 = vadd.f32 %v3645, 1.0
        %v3710 = vadd.f32 %v3646, 1.0
        %v3711 = vadd.f32 %v3647, 1.0
        %v3712 = vadd.f32 %v3648, 1.0
        %v3713 = vadd.f32 %v3649, 1.0
        %v3714 = vadd.f32 %v3650, 1.0
        %v3715 = vadd.f32 %v3651, 1.0
        %v3716 = vadd.f32 %v3652, 1.0
        %v3717 = vadd.f32 %v3653, 1.0
        %v3718 = vadd.f32 %v3654, 1.0
        %v3719 = vadd.f32 %v3655, 1.0
        %v3720 = vadd.f32 %v3656, 1.0
        %v3721 = vadd.f32 %v3657, 1.0
        %v3722 = vadd.f32 %v3658, 1.0
        %v3723 = vadd.f32 %v3659, 1.0
        %v3724 = vadd.f32 %v3660, 1.0
        %v3725 = vadd.f32 %v3661, 1.0
        %v3726 = vadd.f32 %v3662, 1.0
        %v3727 = vadd.f32 %v3663, 1.0
        %v3728 = vmul.f32 %v3536, %v3664
        %v3729 = vmul.f32 %v3537, %v3665
        %v3730 = vmul.f32 %v3538, %v3666
        %v3731 = vmul.f32 %v3539, %v3667
        %v3732 = vmul.f32 %v3540, %v3668
        %v3733 = vmul.f32 %v3541, %v3669
        %v3734 = vmul.f32 %v3542, %v3670
        %v3735 = vmul.f32 %v3543, %v3671
        %v3736 = vmul.f32 %v3544, %v3672
        %v3737 = vmul.f32 %v3545, %v3673
        %v3738 = vmul.f32 %v3546, %v3674
        %v3739 = vmul.f32 %v3547, %v3675
        %v3740 = vmul.f32 %v3548, %v3676
        %v3741 = vmul.f32 %v3549, %v3677
        %v3742 = vmul.f32 %v3550, %v3678
        %v3743 = vmul.f32 %v3551, %v3679
        %v3744 = vmul.f32 %v3552, %v3680
        %v3745 = vmul.f32 %v3553, %v3681
        %v3746 = vmul.f32 %v3554, %v3682
        %v3747 = vmul.f32 %v3555, %v3683
        %v3748 = vmul.f32 %v3556, %v3684
        %v3749 = vmul.f32 %v3557, %v3685
        %v3750 = vmul.f32 %v3558, %v3686
        %v3751 = vmul.f32 %v3559, %v3687
        %v3752 = vmul.f32 %v3560, %v3688
        %v3753 = vmul.f32 %v3561, %v3689
        %v3754 = vmul.f32 %v3562, %v3690
        %v3755 = vmul.f32 %v3563, %v3691
        %v3756 = vmul.f32 %v3564, %v3692
        %v3757 = vmul.f32 %v3565, %v3693
        %v3758 = vmul.f32 %v3566, %v3694
        %v3759 = vmul.f32 %v3567, %v3695
        %v3760 = vmul.f32 %v3568, %v3696
        %v3761 = vmul.f32 %v3569, %v3697
        %v3762 = vmul.f32 %v3570, %v3698
        %v3763 = vmul.f32 %v3571, %v3699
        %v3764 = vmul.f32 %v3572, %v3700
        %v3765 = vmul.f32 %v3573, %v3701
        %v3766 = vmul.f32 %v3574, %v3702
        %v3767 = vmul.f32 %v3575, %v3703
        %v3768 = vmul.f32 %v3576, %v3704
        %v3769 = vmul.f32 %v3577, %v3705
        %v3770 = vmul.f32 %v3578, %v3706
        %v3771 = vmul.f32 %v3579, %v3707
        %v3772 = vmul.f32 %v3580, %v3708
        %v3773 = vmul.f32 %v3581, %v3709
        %v3774 = vmul.f32 %v3582, %v3710
        %v3775 = vmul.f32 %v3583, %v3711
        %v3776 = vmul.f32 %v3584, %v3712
        %v3777 = vmul.f32 %v3585, %v3713
        %v3778 = vmul.f32 %v3586, %v3714
        %v3779 = vmul.f32 %v3587, %v3715
        %v3780 = vmul.f32 %v3588, %v3716
        %v3781 = vmul.f32 %v3589, %v3717
        %v3782 = vmul.f32 %v3590, %v3718
        %v3783 = vmul.f32 %v3591, %v3719
        %v3784 = vmul.f32 %v3592, %v3720
        %v3785 = vmul.f32 %v3593, %v3721
        %v3786 = vmul.f32 %v3594, %v3722
        %v3787 = vmul.f32 %v3595, %v3723
        %v3788 = vmul.f32 %v3596, %v3724
        %v3789 = vmul.f32 %v3597, %v3725
        %v3790 = vmul.f32 %v3598, %v3726
        %v3791 = vmul.f32 %v3599, %v3727
        %v3792 = vadd.f32 %v3728, %v1593
        %v3793 = vadd.f32 %v3729, %v1595
        %v3794 = vadd.f32 %v3730, %v1597
        %v3795 = vadd.f32 %v3731, %v1599
        %v3796 = vadd.f32 %v3732, %v1601
        %v3797 = vadd.f32 %v3733, %v1603
        %v3798 = vadd.f32 %v3734, %v1605
        %v3799 = vadd.f32 %v3735, %v1607
        %v3800 = vadd.f32 %v3736, %v1609
        %v3801 = vadd.f32 %v3737, %v1611
        %v3802 = vadd.f32 %v3738, %v1613
        %v3803 = vadd.f32 %v3739, %v1615
        %v3804 = vadd.f32 %v3740, %v1617
        %v3805 = vadd.f32 %v3741, %v1619
        %v3806 = vadd.f32 %v3742, %v1621
        %v3807 = vadd.f32 %v3743, %v1623
        %v3808 = vadd.f32 %v3744, %v1625
        %v3809 = vadd.f32 %v3745, %v1627
        %v3810 = vadd.f32 %v3746, %v1629
        %v3811 = vadd.f32 %v3747, %v1631
        %v3812 = vadd.f32 %v3748, %v1633
        %v3813 = vadd.f32 %v3749, %v1635
        %v3814 = vadd.f32 %v3750, %v1637
        %v3815 = vadd.f32 %v3751, %v1639
        %v3816 = vadd.f32 %v3752, %v1641
        %v3817 = vadd.f32 %v3753, %v1643
        %v3818 = vadd.f32 %v3754, %v1645
        %v3819 = vadd.f32 %v3755, %v1647
        %v3820 = vadd.f32 %v3756, %v1649
        %v3821 = vadd.f32 %v3757, %v1651
        %v3822 = vadd.f32 %v3758, %v1653
        %v3823 = vadd.f32 %v3759, %v1655
        %v3824 = vadd.f32 %v3760, %v1657
        %v3825 = vadd.f32 %v3761, %v1659
        %v3826 = vadd.f32 %v3762, %v1661
        %v3827 = vadd.f32 %v3763, %v1663
        %v3828 = vadd.f32 %v3764, %v1665
        %v3829 = vadd.f32 %v3765, %v1667
        %v3830 = vadd.f32 %v3766, %v1669
        %v3831 = vadd.f32 %v3767, %v1671
        %v3832 = vadd.f32 %v3768, %v1673
        %v3833 = vadd.f32 %v3769, %v1675
        %v3834 = vadd.f32 %v3770, %v1677
        %v3835 = vadd.f32 %v3771, %v1679
        %v3836 = vadd.f32 %v3772, %v1681
        %v3837 = vadd.f32 %v3773, %v1683
        %v3838 = vadd.f32 %v3774, %v1685
        %v3839 = vadd.f32 %v3775, %v1687
        %v3840 = vadd.f32 %v3776, %v1689
        %v3841 = vadd.f32 %v3777, %v1691
        %v3842 = vadd.f32 %v3778, %v1693
        %v3843 = vadd.f32 %v3779, %v1695
        %v3844 = vadd.f32 %v3780, %v1697
        %v3845 = vadd.f32 %v3781, %v1699
        %v3846 = vadd.f32 %v3782, %v1701
        %v3847 = vadd.f32 %v3783, %v1703
        %v3848 = vadd.f32 %v3784, %v1705
        %v3849 = vadd.f32 %v3785, %v1707
        %v3850 = vadd.f32 %v3786, %v1709
        %v3851 = vadd.f32 %v3787, %v1711
        %v3852 = vadd.f32 %v3788, %v1713
        %v3853 = vadd.f32 %v3789, %v1715
        %v3854 = vadd.f32 %v3790, %v1717
        %v3855 = vadd.f32 %v3791, %v1719
        %v3856 = vpack.c.bf16 %v3793, %v3792
        %v3857 = vpack.c.bf16 %v3795, %v3794
        %v3858 = vpack.c.bf16 %v3797, %v3796
        %v3859 = vpack.c.bf16 %v3799, %v3798
        %v3860 = vpack.c.bf16 %v3801, %v3800
        %v3861 = vpack.c.bf16 %v3803, %v3802
        %v3862 = vpack.c.bf16 %v3805, %v3804
        %v3863 = vpack.c.bf16 %v3807, %v3806
        %v3864 = vpack.c.bf16 %v3809, %v3808
        %v3865 = vpack.c.bf16 %v3811, %v3810
        %v3866 = vpack.c.bf16 %v3813, %v3812
        %v3867 = vpack.c.bf16 %v3815, %v3814
        %v3868 = vpack.c.bf16 %v3817, %v3816
        %v3869 = vpack.c.bf16 %v3819, %v3818
        %v3870 = vpack.c.bf16 %v3821, %v3820
        %v3871 = vpack.c.bf16 %v3823, %v3822
        %v3872 = vpack.c.bf16 %v3825, %v3824
        %v3873 = vpack.c.bf16 %v3827, %v3826
        %v3874 = vpack.c.bf16 %v3829, %v3828
        %v3875 = vpack.c.bf16 %v3831, %v3830
        %v3876 = vpack.c.bf16 %v3833, %v3832
        %v3877 = vpack.c.bf16 %v3835, %v3834
        %v3878 = vpack.c.bf16 %v3837, %v3836
        %v3879 = vpack.c.bf16 %v3839, %v3838
        %v3880 = vpack.c.bf16 %v3841, %v3840
        %v3881 = vpack.c.bf16 %v3843, %v3842
        %v3882 = vpack.c.bf16 %v3845, %v3844
        %v3883 = vpack.c.bf16 %v3847, %v3846
        %v3884 = vpack.c.bf16 %v3849, %v3848
        %v3885 = vpack.c.bf16 %v3851, %v3850
        %v3886 = vpack.c.bf16 %v3853, %v3852
        %v3887 = vpack.c.bf16 %v3855, %v3854
        %v3888 = vld [vmem:[#allocation13] sm:$0xf]
        %v3889 = vld [vmem:[#allocation13 + $0x4] sm:$0xf]
        %v3890 = vld [vmem:[#allocation13 + $0x8] sm:$0xf]
        %v3891 = vld [vmem:[#allocation13 + $0xc] sm:$0xf]
        %v3892 = vld [vmem:[#allocation13 + $0x10] sm:$0xf]
        %v3893 = vld [vmem:[#allocation13 + $0x14] sm:$0xf]
        %v3894 = vld [vmem:[#allocation13 + $0x18] sm:$0xf]
        %v3895 = vld [vmem:[#allocation13 + $0x1c] sm:$0xf]
        %v3896 = vld [vmem:[#allocation13 + $0x20] sm:$0xf]
        %v3897 = vld [vmem:[#allocation13 + $0x24] sm:$0xf]
        %v3898 = vld [vmem:[#allocation13 + $0x28] sm:$0xf]
        %v3899 = vld [vmem:[#allocation13 + $0x2c] sm:$0xf]
        %v3900 = vld [vmem:[#allocation13 + $0x30] sm:$0xf]
        %v3901 = vld [vmem:[#allocation13 + $0x34] sm:$0xf]
        %v3902 = vld [vmem:[#allocation13 + $0x38] sm:$0xf]
        %v3903 = vld [vmem:[#allocation13 + $0x3c] sm:$0xf]
        %v3904 = vld [vmem:[%s11] sm:$0x1]
        %v3906 = vlaneseq
        %v3907 = vshrl.u32 %v3906, 7
        %v3908 = vsub.s32 0, %v3907
        %v3909 = vrot.slane %v3904, %v3908
        %v3927 = vunpack.c.l.b16 %v3888
        %v3928 = vunpack.c.l.b16 %v3889
        %v3929 = vunpack.c.l.b16 %v3890
        %v3930 = vunpack.c.l.b16 %v3891
        %v3931 = vunpack.c.l.b16 %v3892
        %v3932 = vunpack.c.l.b16 %v3893
        %v3933 = vunpack.c.l.b16 %v3894
        %v3934 = vunpack.c.l.b16 %v3895
        %v3935 = vunpack.c.l.b16 %v3896
        %v3936 = vunpack.c.l.b16 %v3897
        %v3937 = vunpack.c.l.b16 %v3898
        %v3938 = vunpack.c.l.b16 %v3899
        %v3939 = vunpack.c.l.b16 %v3900
        %v3940 = vunpack.c.l.b16 %v3901
        %v3941 = vunpack.c.l.b16 %v3902
        %v3942 = vunpack.c.l.b16 %v3903
        %v3943 = vpack.c.b16 %v3928, %v3927
        %v3944 = vpack.c.b16 %v3930, %v3929
        %v3945 = vpack.c.b16 %v3932, %v3931
        %v3946 = vpack.c.b16 %v3934, %v3933
        %v3947 = vpack.c.b16 %v3936, %v3935
        %v3948 = vpack.c.b16 %v3938, %v3937
        %v3949 = vpack.c.b16 %v3940, %v3939
        %v3950 = vpack.c.b16 %v3942, %v3941
        %3959 = vmatprep.subr.bf16.mxu0 0
        %3960 = vmatpush1.bf16.msra.mxu0 %v3943
        %3961 = vmatprep.subr.bf16.mxu0 0
        %3962 = vmatpush1.bf16.msra.mxu0 %v3944
        %3963 = vmatprep.subr.bf16.mxu0 0
        %3964 = vmatpush1.bf16.msra.mxu0 %v3945
        %3965 = vmatprep.subr.bf16.mxu0 0
        %3966 = vmatpush1.bf16.msra.mxu0 %v3946
        %3967 = vmatprep.subr.bf16.mxu0 0
        %3968 = vmatpush1.bf16.msra.mxu0 %v3947
        %3969 = vmatprep.subr.bf16.mxu0 0
        %3970 = vmatpush1.bf16.msra.mxu0 %v3948
        %3971 = vmatprep.subr.bf16.mxu0 0
        %3972 = vmatpush1.bf16.msra.mxu0 %v3949
        %3973 = vmatprep.subr.bf16.mxu0 0
        %3974 = vmatpush1.bf16.msra.mxu0 %v3950
        %3975 = vmatprep.subr.bf16.mxu0 0
        %3976 = vmatpush1.bf16.msra.mxu0 0
        %3977 = vmatprep.subr.bf16.mxu0 0
        %3978 = vmatpush1.bf16.msra.mxu0 0
        %3979 = vmatprep.subr.bf16.mxu0 0
        %3980 = vmatpush1.bf16.msra.mxu0 0
        %3981 = vmatprep.subr.bf16.mxu0 0
        %3982 = vmatpush1.bf16.msra.mxu0 0
        %3983 = vmatprep.subr.bf16.mxu0 0
        %3984 = vmatpush1.bf16.msra.mxu0 0
        %3985 = vmatprep.subr.bf16.mxu0 0
        %3986 = vmatpush1.bf16.msra.mxu0 0
        %3987 = vmatprep.subr.bf16.mxu0 0
        %3988 = vmatpush1.bf16.msra.mxu0 0
        %3989 = vmatprep.subr.bf16.mxu0 0
        %3990 = vmatpush1.bf16.msra.mxu0 0
        %3991 = vmatprep.mubr.bf16.mxu0 0
        %3992 = vmatmul.mubr.bf16.gmra.mrb[0].mxu0 %v3856
        %v3993 = vpop.f32.mrb[0].mxu0
        %v3994 = vadd.f32 %v3909, %v3993
        %v3995 = vpop.f32.mrb[0].mxu0
        %v3996 = vpop.f32.mrb[0].mxu0
        %v3997 = vadd.f32 %v3909, %v3996
        %v3998 = vpop.f32.mrb[0].mxu0
        %3999 = vmatprep.mubr.bf16.mxu0 0
        %4000 = vmatmul.mubr.bf16.gmra.mrb[0].mxu0 %v3857
        %v4001 = vpop.f32.mrb[0].mxu0
        %v4002 = vadd.f32 %v3909, %v4001
        %v4003 = vpop.f32.mrb[0].mxu0
        %v4004 = vpop.f32.mrb[0].mxu0
        %v4005 = vadd.f32 %v3909, %v4004
        %v4006 = vpop.f32.mrb[0].mxu0
        %4007 = vmatprep.mubr.bf16.mxu0 0
        %4008 = vmatmul.mubr.bf16.gmra.mrb[0].mxu0 %v3858
        %v4009 = vpop.f32.mrb[0].mxu0
        %v4010 = vadd.f32 %v3909, %v4009
        %v4011 = vpop.f32.mrb[0].mxu0
        %v4012 = vpop.f32.mrb[0].mxu0
        %v4013 = vadd.f32 %v3909, %v4012
        %v4014 = vpop.f32.mrb[0].mxu0
        %4015 = vmatprep.mubr.bf16.mxu0 0
        %4016 = vmatmul.mubr.bf16.gmra.mrb[0].mxu0 %v3859
        %v4017 = vpop.f32.mrb[0].mxu0
        %v4018 = vadd.f32 %v3909, %v4017
        %v4019 = vpop.f32.mrb[0].mxu0
        %v4020 = vpop.f32.mrb[0].mxu0
        %v4021 = vadd.f32 %v3909, %v4020
        %v4022 = vpop.f32.mrb[0].mxu0
        %4023 = vmatprep.mubr.bf16.mxu0 0
        %4024 = vmatmul.mubr.bf16.gmra.mrb[0].mxu0 %v3860
        %v4025 = vpop.f32.mrb[0].mxu0
        %v4026 = vadd.f32 %v3909, %v4025
        %v4027 = vpop.f32.mrb[0].mxu0
        %v4028 = vpop.f32.mrb[0].mxu0
        %v4029 = vadd.f32 %v3909, %v4028
        %v4030 = vpop.f32.mrb[0].mxu0
        %4031 = vmatprep.mubr.bf16.mxu0 0
        %4032 = vmatmul.mubr.bf16.gmra.mrb[0].mxu0 %v3861
        %v4033 = vpop.f32.mrb[0].mxu0
        %v4034 = vadd.f32 %v3909, %v4033
        %v4035 = vpop.f32.mrb[0].mxu0
        %v4036 = vpop.f32.mrb[0].mxu0
        %v4037 = vadd.f32 %v3909, %v4036
        %v4038 = vpop.f32.mrb[0].mxu0
        %4039 = vmatprep.mubr.bf16.mxu0 0
        %4040 = vmatmul.mubr.bf16.gmra.mrb[0].mxu0 %v3862
        %v4041 = vpop.f32.mrb[0].mxu0
        %v4042 = vadd.f32 %v3909, %v4041
        %v4043 = vpop.f32.mrb[0].mxu0
        %v4044 = vpop.f32.mrb[0].mxu0
        %v4045 = vadd.f32 %v3909, %v4044
        %v4046 = vpop.f32.mrb[0].mxu0
        %4047 = vmatprep.mubr.bf16.mxu0 0
        %4048 = vmatmul.mubr.bf16.gmra.mrb[0].mxu0 %v3863
        %v4049 = vpop.f32.mrb[0].mxu0
        %v4050 = vadd.f32 %v3909, %v4049
        %v4051 = vpop.f32.mrb[0].mxu0
        %v4052 = vpop.f32.mrb[0].mxu0
        %v4053 = vadd.f32 %v3909, %v4052
        %v4054 = vpop.f32.mrb[0].mxu0
        %4055 = vmatprep.mubr.bf16.mxu0 0
        %4056 = vmatmul.mubr.bf16.gmra.mrb[0].mxu0 %v3864
        %v4057 = vpop.f32.mrb[0].mxu0
        %v4058 = vadd.f32 %v3909, %v4057
        %v4059 = vpop.f32.mrb[0].mxu0
        %v4060 = vpop.f32.mrb[0].mxu0
        %v4061 = vadd.f32 %v3909, %v4060
        %v4062 = vpop.f32.mrb[0].mxu0
        %4063 = vmatprep.mubr.bf16.mxu0 0
        %4064 = vmatmul.mubr.bf16.gmra.mrb[0].mxu0 %v3865
        %v4065 = vpop.f32.mrb[0].mxu0
        %v4066 = vadd.f32 %v3909, %v4065
        %v4067 = vpop.f32.mrb[0].mxu0
        %v4068 = vpop.f32.mrb[0].mxu0
        %v4069 = vadd.f32 %v3909, %v4068
        %v4070 = vpop.f32.mrb[0].mxu0
        %4071 = vmatprep.mubr.bf16.mxu0 0
        %4072 = vmatmul.mubr.bf16.gmra.mrb[0].mxu0 %v3866
        %v4073 = vpop.f32.mrb[0].mxu0
        %v4074 = vadd.f32 %v3909, %v4073
        %v4075 = vpop.f32.mrb[0].mxu0
        %v4076 = vpop.f32.mrb[0].mxu0
        %v4077 = vadd.f32 %v3909, %v4076
        %v4078 = vpop.f32.mrb[0].mxu0
        %4079 = vmatprep.mubr.bf16.mxu0 0
        %4080 = vmatmul.mubr.bf16.gmra.mrb[0].mxu0 %v3867
        %v4081 = vpop.f32.mrb[0].mxu0
        %v4082 = vadd.f32 %v3909, %v4081
        %v4083 = vpop.f32.mrb[0].mxu0
        %v4084 = vpop.f32.mrb[0].mxu0
        %v4085 = vadd.f32 %v3909, %v4084
        %v4086 = vpop.f32.mrb[0].mxu0
        %4087 = vmatprep.mubr.bf16.mxu0 0
        %4088 = vmatmul.mubr.bf16.gmra.mrb[0].mxu0 %v3868
        %v4089 = vpop.f32.mrb[0].mxu0
        %v4090 = vadd.f32 %v3909, %v4089
        %v4091 = vpop.f32.mrb[0].mxu0
        %v4092 = vpop.f32.mrb[0].mxu0
        %v4093 = vadd.f32 %v3909, %v4092
        %v4094 = vpop.f32.mrb[0].mxu0
        %4095 = vmatprep.mubr.bf16.mxu0 0
        %4096 = vmatmul.mubr.bf16.gmra.mrb[0].mxu0 %v3869
        %v4097 = vpop.f32.mrb[0].mxu0
        %v4098 = vadd.f32 %v3909, %v4097
        %v4099 = vpop.f32.mrb[0].mxu0
        %v4100 = vpop.f32.mrb[0].mxu0
        %v4101 = vadd.f32 %v3909, %v4100
        %v4102 = vpop.f32.mrb[0].mxu0
        %4103 = vmatprep.mubr.bf16.mxu0 0
        %4104 = vmatmul.mubr.bf16.gmra.mrb[0].mxu0 %v3870
        %v4105 = vpop.f32.mrb[0].mxu0
        %v4106 = vadd.f32 %v3909, %v4105
        %v4107 = vpop.f32.mrb[0].mxu0
        %v4108 = vpop.f32.mrb[0].mxu0
        %v4109 = vadd.f32 %v3909, %v4108
        %v4110 = vpop.f32.mrb[0].mxu0
        %4111 = vmatprep.mubr.bf16.mxu0 0
        %4112 = vmatmul.mubr.bf16.gmra.mrb[0].mxu0 %v3871
        %v4113 = vpop.f32.mrb[0].mxu0
        %v4114 = vadd.f32 %v3909, %v4113
        %v4115 = vpop.f32.mrb[0].mxu0
        %v4116 = vpop.f32.mrb[0].mxu0
        %v4117 = vadd.f32 %v3909, %v4116
        %v4118 = vpop.f32.mrb[0].mxu0
        %4119 = vmatprep.mubr.bf16.mxu0 0
        %4120 = vmatmul.mubr.bf16.gmra.mrb[0].mxu0 %v3872
        %v4121 = vpop.f32.mrb[0].mxu0
        %v4122 = vadd.f32 %v3909, %v4121
        %v4123 = vpop.f32.mrb[0].mxu0
        %v4124 = vpop.f32.mrb[0].mxu0
        %v4125 = vadd.f32 %v3909, %v4124
        %v4126 = vpop.f32.mrb[0].mxu0
        %4127 = vmatprep.mubr.bf16.mxu0 0
        %4128 = vmatmul.mubr.bf16.gmra.mrb[0].mxu0 %v3873
        %v4129 = vpop.f32.mrb[0].mxu0
        %v4130 = vadd.f32 %v3909, %v4129
        %v4131 = vpop.f32.mrb[0].mxu0
        %v4132 = vpop.f32.mrb[0].mxu0
        %v4133 = vadd.f32 %v3909, %v4132
        %v4134 = vpop.f32.mrb[0].mxu0
        %4135 = vmatprep.mubr.bf16.mxu0 0
        %4136 = vmatmul.mubr.bf16.gmra.mrb[0].mxu0 %v3874
        %v4137 = vpop.f32.mrb[0].mxu0
        %v4138 = vadd.f32 %v3909, %v4137
        %v4139 = vpop.f32.mrb[0].mxu0
        %v4140 = vpop.f32.mrb[0].mxu0
        %v4141 = vadd.f32 %v3909, %v4140
        %v4142 = vpop.f32.mrb[0].mxu0
        %4143 = vmatprep.mubr.bf16.mxu0 0
        %4144 = vmatmul.mubr.bf16.gmra.mrb[0].mxu0 %v3875
        %v4145 = vpop.f32.mrb[0].mxu0
        %v4146 = vadd.f32 %v3909, %v4145
        %v4147 = vpop.f32.mrb[0].mxu0
        %v4148 = vpop.f32.mrb[0].mxu0
        %v4149 = vadd.f32 %v3909, %v4148
        %v4150 = vpop.f32.mrb[0].mxu0
        %4151 = vmatprep.mubr.bf16.mxu0 0
        %4152 = vmatmul.mubr.bf16.gmra.mrb[0].mxu0 %v3876
        %v4153 = vpop.f32.mrb[0].mxu0
        %v4154 = vadd.f32 %v3909, %v4153
        %v4155 = vpop.f32.mrb[0].mxu0
        %v4156 = vpop.f32.mrb[0].mxu0
        %v4157 = vadd.f32 %v3909, %v4156
        %v4158 = vpop.f32.mrb[0].mxu0
        %4159 = vmatprep.mubr.bf16.mxu0 0
        %4160 = vmatmul.mubr.bf16.gmra.mrb[0].mxu0 %v3877
        %v4161 = vpop.f32.mrb[0].mxu0
        %v4162 = vadd.f32 %v3909, %v4161
        %v4163 = vpop.f32.mrb[0].mxu0
        %v4164 = vpop.f32.mrb[0].mxu0
        %v4165 = vadd.f32 %v3909, %v4164
        %v4166 = vpop.f32.mrb[0].mxu0
        %4167 = vmatprep.mubr.bf16.mxu0 0
        %4168 = vmatmul.mubr.bf16.gmra.mrb[0].mxu0 %v3878
        %v4169 = vpop.f32.mrb[0].mxu0
        %v4170 = vadd.f32 %v3909, %v4169
        %v4171 = vpop.f32.mrb[0].mxu0
        %v4172 = vpop.f32.mrb[0].mxu0
        %v4173 = vadd.f32 %v3909, %v4172
        %v4174 = vpop.f32.mrb[0].mxu0
        %4175 = vmatprep.mubr.bf16.mxu0 0
        %4176 = vmatmul.mubr.bf16.gmra.mrb[0].mxu0 %v3879
        %v4177 = vpop.f32.mrb[0].mxu0
        %v4178 = vadd.f32 %v3909, %v4177
        %v4179 = vpop.f32.mrb[0].mxu0
        %v4180 = vpop.f32.mrb[0].mxu0
        %v4181 = vadd.f32 %v3909, %v4180
        %v4182 = vpop.f32.mrb[0].mxu0
        %4183 = vmatprep.mubr.bf16.mxu0 0
        %4184 = vmatmul.mubr.bf16.gmra.mrb[0].mxu0 %v3880
        %v4185 = vpop.f32.mrb[0].mxu0
        %v4186 = vadd.f32 %v3909, %v4185
        %v4187 = vpop.f32.mrb[0].mxu0
        %v4188 = vpop.f32.mrb[0].mxu0
        %v4189 = vadd.f32 %v3909, %v4188
        %v4190 = vpop.f32.mrb[0].mxu0
        %4191 = vmatprep.mubr.bf16.mxu0 0
        %4192 = vmatmul.mubr.bf16.gmra.mrb[0].mxu0 %v3881
        %v4193 = vpop.f32.mrb[0].mxu0
        %v4194 = vadd.f32 %v3909, %v4193
        %v4195 = vpop.f32.mrb[0].mxu0
        %v4196 = vpop.f32.mrb[0].mxu0
        %v4197 = vadd.f32 %v3909, %v4196
        %v4198 = vpop.f32.mrb[0].mxu0
        %4199 = vmatprep.mubr.bf16.mxu0 0
        %4200 = vmatmul.mubr.bf16.gmra.mrb[0].mxu0 %v3882
        %v4201 = vpop.f32.mrb[0].mxu0
        %v4202 = vadd.f32 %v3909, %v4201
        %v4203 = vpop.f32.mrb[0].mxu0
        %v4204 = vpop.f32.mrb[0].mxu0
        %v4205 = vadd.f32 %v3909, %v4204
        %v4206 = vpop.f32.mrb[0].mxu0
        %4207 = vmatprep.mubr.bf16.mxu0 0
        %4208 = vmatmul.mubr.bf16.gmra.mrb[0].mxu0 %v3883
        %v4209 = vpop.f32.mrb[0].mxu0
        %v4210 = vadd.f32 %v3909, %v4209
        %v4211 = vpop.f32.mrb[0].mxu0
        %v4212 = vpop.f32.mrb[0].mxu0
        %v4213 = vadd.f32 %v3909, %v4212
        %v4214 = vpop.f32.mrb[0].mxu0
        %4215 = vmatprep.mubr.bf16.mxu0 0
        %4216 = vmatmul.mubr.bf16.gmra.mrb[0].mxu0 %v3884
        %v4217 = vpop.f32.mrb[0].mxu0
        %v4218 = vadd.f32 %v3909, %v4217
        %v4219 = vpop.f32.mrb[0].mxu0
        %v4220 = vpop.f32.mrb[0].mxu0
        %v4221 = vadd.f32 %v3909, %v4220
        %v4222 = vpop.f32.mrb[0].mxu0
        %4223 = vmatprep.mubr.bf16.mxu0 0
        %4224 = vmatmul.mubr.bf16.gmra.mrb[0].mxu0 %v3885
        %v4225 = vpop.f32.mrb[0].mxu0
        %v4226 = vadd.f32 %v3909, %v4225
        %v4227 = vpop.f32.mrb[0].mxu0
        %v4228 = vpop.f32.mrb[0].mxu0
        %v4229 = vadd.f32 %v3909, %v4228
        %v4230 = vpop.f32.mrb[0].mxu0
        %4231 = vmatprep.mubr.bf16.mxu0 0
        %4232 = vmatmul.mubr.bf16.gmra.mrb[0].mxu0 %v3886
        %v4233 = vpop.f32.mrb[0].mxu0
        %v4234 = vadd.f32 %v3909, %v4233
        %v4235 = vpop.f32.mrb[0].mxu0
        %v4236 = vpop.f32.mrb[0].mxu0
        %v4237 = vadd.f32 %v3909, %v4236
        %v4238 = vpop.f32.mrb[0].mxu0
        %4239 = vmatprep.mubr.bf16.mxu0 0
        %4240 = vmatmul.mubr.bf16.gmra.mrb[0].mxu0 %v3887
        %v4241 = vpop.f32.mrb[0].mxu0
        %v4242 = vadd.f32 %v3909, %v4241
        %v4243 = vpop.f32.mrb[0].mxu0
        %v4244 = vpop.f32.mrb[0].mxu0
        %v4245 = vadd.f32 %v3909, %v4244
        %v4246 = vpop.f32.mrb[0].mxu0
        %4247 = vdwg.mxu0
        %v4248 = vmul.f32 %v3994, 0.5
        %v4249 = vmul.f32 %v3997, 0.5
        %v4250 = vmul.f32 %v4002, 0.5
        %v4251 = vmul.f32 %v4005, 0.5
        %v4252 = vmul.f32 %v4010, 0.5
        %v4253 = vmul.f32 %v4013, 0.5
        %v4254 = vmul.f32 %v4018, 0.5
        %v4255 = vmul.f32 %v4021, 0.5
        %v4256 = vmul.f32 %v4026, 0.5
        %v4257 = vmul.f32 %v4029, 0.5
        %v4258 = vmul.f32 %v4034, 0.5
        %v4259 = vmul.f32 %v4037, 0.5
        %v4260 = vmul.f32 %v4042, 0.5
        %v4261 = vmul.f32 %v4045, 0.5
        %v4262 = vmul.f32 %v4050, 0.5
        %v4263 = vmul.f32 %v4053, 0.5
        %v4264 = vmul.f32 %v4058, 0.5
        %v4265 = vmul.f32 %v4061, 0.5
        %v4266 = vmul.f32 %v4066, 0.5
        %v4267 = vmul.f32 %v4069, 0.5
        %v4268 = vmul.f32 %v4074, 0.5
        %v4269 = vmul.f32 %v4077, 0.5
        %v4270 = vmul.f32 %v4082, 0.5
        %v4271 = vmul.f32 %v4085, 0.5
        %v4272 = vmul.f32 %v4090, 0.5
        %v4273 = vmul.f32 %v4093, 0.5
        %v4274 = vmul.f32 %v4098, 0.5
        %v4275 = vmul.f32 %v4101, 0.5
        %v4276 = vmul.f32 %v4106, 0.5
        %v4277 = vmul.f32 %v4109, 0.5
        %v4278 = vmul.f32 %v4114, 0.5
        %v4279 = vmul.f32 %v4117, 0.5
        %v4280 = vmul.f32 %v4122, 0.5
        %v4281 = vmul.f32 %v4125, 0.5
        %v4282 = vmul.f32 %v4130, 0.5
        %v4283 = vmul.f32 %v4133, 0.5
        %v4284 = vmul.f32 %v4138, 0.5
        %v4285 = vmul.f32 %v4141, 0.5
        %v4286 = vmul.f32 %v4146, 0.5
        %v4287 = vmul.f32 %v4149, 0.5
        %v4288 = vmul.f32 %v4154, 0.5
        %v4289 = vmul.f32 %v4157, 0.5
        %v4290 = vmul.f32 %v4162, 0.5
        %v4291 = vmul.f32 %v4165, 0.5
        %v4292 = vmul.f32 %v4170, 0.5
        %v4293 = vmul.f32 %v4173, 0.5
        %v4294 = vmul.f32 %v4178, 0.5
        %v4295 = vmul.f32 %v4181, 0.5
        %v4296 = vmul.f32 %v4186, 0.5
        %v4297 = vmul.f32 %v4189, 0.5
        %v4298 = vmul.f32 %v4194, 0.5
        %v4299 = vmul.f32 %v4197, 0.5
        %v4300 = vmul.f32 %v4202, 0.5
        %v4301 = vmul.f32 %v4205, 0.5
        %v4302 = vmul.f32 %v4210, 0.5
        %v4303 = vmul.f32 %v4213, 0.5
        %v4304 = vmul.f32 %v4218, 0.5
        %v4305 = vmul.f32 %v4221, 0.5
        %v4306 = vmul.f32 %v4226, 0.5
        %v4307 = vmul.f32 %v4229, 0.5
        %v4308 = vmul.f32 %v4234, 0.5
        %v4309 = vmul.f32 %v4237, 0.5
        %v4310 = vmul.f32 %v4242, 0.5
        %v4311 = vmul.f32 %v4245, 0.5
        %v4312 = vtanh.pop %v4248
        %v4313 = vtanh.pop %v4249
        %v4314 = vtanh.pop %v4250
        %v4315 = vtanh.pop %v4251
        %v4316 = vtanh.pop %v4252
        %v4317 = vtanh.pop %v4253
        %v4318 = vtanh.pop %v4254
        %v4319 = vtanh.pop %v4255
        %v4320 = vtanh.pop %v4256
        %v4321 = vtanh.pop %v4257
        %v4322 = vtanh.pop %v4258
        %v4323 = vtanh.pop %v4259
        %v4324 = vtanh.pop %v4260
        %v4325 = vtanh.pop %v4261
        %v4326 = vtanh.pop %v4262
        %v4327 = vtanh.pop %v4263
        %v4328 = vtanh.pop %v4264
        %v4329 = vtanh.pop %v4265
        %v4330 = vtanh.pop %v4266
        %v4331 = vtanh.pop %v4267
        %v4332 = vtanh.pop %v4268
        %v4333 = vtanh.pop %v4269
        %v4334 = vtanh.pop %v4270
        %v4335 = vtanh.pop %v4271
        %v4336 = vtanh.pop %v4272
        %v4337 = vtanh.pop %v4273
        %v4338 = vtanh.pop %v4274
        %v4339 = vtanh.pop %v4275
        %v4340 = vtanh.pop %v4276
        %v4341 = vtanh.pop %v4277
        %v4342 = vtanh.pop %v4278
        %v4343 = vtanh.pop %v4279
        %v4344 = vtanh.pop %v4280
        %v4345 = vtanh.pop %v4281
        %v4346 = vtanh.pop %v4282
        %v4347 = vtanh.pop %v4283
        %v4348 = vtanh.pop %v4284
        %v4349 = vtanh.pop %v4285
        %v4350 = vtanh.pop %v4286
        %v4351 = vtanh.pop %v4287
        %v4352 = vtanh.pop %v4288
        %v4353 = vtanh.pop %v4289
        %v4354 = vtanh.pop %v4290
        %v4355 = vtanh.pop %v4291
        %v4356 = vtanh.pop %v4292
        %v4357 = vtanh.pop %v4293
        %v4358 = vtanh.pop %v4294
        %v4359 = vtanh.pop %v4295
        %v4360 = vtanh.pop %v4296
        %v4361 = vtanh.pop %v4297
        %v4362 = vtanh.pop %v4298
        %v4363 = vtanh.pop %v4299
        %v4364 = vtanh.pop %v4300
        %v4365 = vtanh.pop %v4301
        %v4366 = vtanh.pop %v4302
        %v4367 = vtanh.pop %v4303
        %v4368 = vtanh.pop %v4304
        %v4369 = vtanh.pop %v4305
        %v4370 = vtanh.pop %v4306
        %v4371 = vtanh.pop %v4307
        %v4372 = vtanh.pop %v4308
        %v4373 = vtanh.pop %v4309
        %v4374 = vtanh.pop %v4310
        %v4375 = vtanh.pop %v4311
        %v4376 = vadd.f32 %v4312, 1.0
        %v4377 = vadd.f32 %v4313, 1.0
        %v4378 = vadd.f32 %v4314, 1.0
        %v4379 = vadd.f32 %v4315, 1.0
        %v4380 = vadd.f32 %v4316, 1.0
        %v4381 = vadd.f32 %v4317, 1.0
        %v4382 = vadd.f32 %v4318, 1.0
        %v4383 = vadd.f32 %v4319, 1.0
        %v4384 = vadd.f32 %v4320, 1.0
        %v4385 = vadd.f32 %v4321, 1.0
        %v4386 = vadd.f32 %v4322, 1.0
        %v4387 = vadd.f32 %v4323, 1.0
        %v4388 = vadd.f32 %v4324, 1.0
        %v4389 = vadd.f32 %v4325, 1.0
        %v4390 = vadd.f32 %v4326, 1.0
        %v4391 = vadd.f32 %v4327, 1.0
        %v4392 = vadd.f32 %v4328, 1.0
        %v4393 = vadd.f32 %v4329, 1.0
        %v4394 = vadd.f32 %v4330, 1.0
        %v4395 = vadd.f32 %v4331, 1.0
        %v4396 = vadd.f32 %v4332, 1.0
        %v4397 = vadd.f32 %v4333, 1.0
        %v4398 = vadd.f32 %v4334, 1.0
        %v4399 = vadd.f32 %v4335, 1.0
        %v4400 = vadd.f32 %v4336, 1.0
        %v4401 = vadd.f32 %v4337, 1.0
        %v4402 = vadd.f32 %v4338, 1.0
        %v4403 = vadd.f32 %v4339, 1.0
        %v4404 = vadd.f32 %v4340, 1.0
        %v4405 = vadd.f32 %v4341, 1.0
        %v4406 = vadd.f32 %v4342, 1.0
        %v4407 = vadd.f32 %v4343, 1.0
        %v4408 = vadd.f32 %v4344, 1.0
        %v4409 = vadd.f32 %v4345, 1.0
        %v4410 = vadd.f32 %v4346, 1.0
        %v4411 = vadd.f32 %v4347, 1.0
        %v4412 = vadd.f32 %v4348, 1.0
        %v4413 = vadd.f32 %v4349, 1.0
        %v4414 = vadd.f32 %v4350, 1.0
        %v4415 = vadd.f32 %v4351, 1.0
        %v4416 = vadd.f32 %v4352, 1.0
        %v4417 = vadd.f32 %v4353, 1.0
        %v4418 = vadd.f32 %v4354, 1.0
        %v4419 = vadd.f32 %v4355, 1.0
        %v4420 = vadd.f32 %v4356, 1.0
        %v4421 = vadd.f32 %v4357, 1.0
        %v4422 = vadd.f32 %v4358, 1.0
        %v4423 = vadd.f32 %v4359, 1.0
        %v4424 = vadd.f32 %v4360, 1.0
        %v4425 = vadd.f32 %v4361, 1.0
        %v4426 = vadd.f32 %v4362, 1.0
        %v4427 = vadd.f32 %v4363, 1.0
        %v4428 = vadd.f32 %v4364, 1.0
        %v4429 = vadd.f32 %v4365, 1.0
        %v4430 = vadd.f32 %v4366, 1.0
        %v4431 = vadd.f32 %v4367, 1.0
        %v4432 = vadd.f32 %v4368, 1.0
        %v4433 = vadd.f32 %v4369, 1.0
        %v4434 = vadd.f32 %v4370, 1.0
        %v4435 = vadd.f32 %v4371, 1.0
        %v4436 = vadd.f32 %v4372, 1.0
        %v4437 = vadd.f32 %v4373, 1.0
        %v4438 = vadd.f32 %v4374, 1.0
        %v4439 = vadd.f32 %v4375, 1.0
        %v4440 = vmul.f32 %v4248, %v4376
        %v4441 = vmul.f32 %v4249, %v4377
        %v4442 = vmul.f32 %v4250, %v4378
        %v4443 = vmul.f32 %v4251, %v4379
        %v4444 = vmul.f32 %v4252, %v4380
        %v4445 = vmul.f32 %v4253, %v4381
        %v4446 = vmul.f32 %v4254, %v4382
        %v4447 = vmul.f32 %v4255, %v4383
        %v4448 = vmul.f32 %v4256, %v4384
        %v4449 = vmul.f32 %v4257, %v4385
        %v4450 = vmul.f32 %v4258, %v4386
        %v4451 = vmul.f32 %v4259, %v4387
        %v4452 = vmul.f32 %v4260, %v4388
        %v4453 = vmul.f32 %v4261, %v4389
        %v4454 = vmul.f32 %v4262, %v4390
        %v4455 = vmul.f32 %v4263, %v4391
        %v4456 = vmul.f32 %v4264, %v4392
        %v4457 = vmul.f32 %v4265, %v4393
        %v4458 = vmul.f32 %v4266, %v4394
        %v4459 = vmul.f32 %v4267, %v4395
        %v4460 = vmul.f32 %v4268, %v4396
        %v4461 = vmul.f32 %v4269, %v4397
        %v4462 = vmul.f32 %v4270, %v4398
        %v4463 = vmul.f32 %v4271, %v4399
        %v4464 = vmul.f32 %v4272, %v4400
        %v4465 = vmul.f32 %v4273, %v4401
        %v4466 = vmul.f32 %v4274, %v4402
        %v4467 = vmul.f32 %v4275, %v4403
        %v4468 = vmul.f32 %v4276, %v4404
        %v4469 = vmul.f32 %v4277, %v4405
        %v4470 = vmul.f32 %v4278, %v4406
        %v4471 = vmul.f32 %v4279, %v4407
        %v4472 = vmul.f32 %v4280, %v4408
        %v4473 = vmul.f32 %v4281, %v4409
        %v4474 = vmul.f32 %v4282, %v4410
        %v4475 = vmul.f32 %v4283, %v4411
        %v4476 = vmul.f32 %v4284, %v4412
        %v4477 = vmul.f32 %v4285, %v4413
        %v4478 = vmul.f32 %v4286, %v4414
        %v4479 = vmul.f32 %v4287, %v4415
        %v4480 = vmul.f32 %v4288, %v4416
        %v4481 = vmul.f32 %v4289, %v4417
        %v4482 = vmul.f32 %v4290, %v4418
        %v4483 = vmul.f32 %v4291, %v4419
        %v4484 = vmul.f32 %v4292, %v4420
        %v4485 = vmul.f32 %v4293, %v4421
        %v4486 = vmul.f32 %v4294, %v4422
        %v4487 = vmul.f32 %v4295, %v4423
        %v4488 = vmul.f32 %v4296, %v4424
        %v4489 = vmul.f32 %v4297, %v4425
        %v4490 = vmul.f32 %v4298, %v4426
        %v4491 = vmul.f32 %v4299, %v4427
        %v4492 = vmul.f32 %v4300, %v4428
        %v4493 = vmul.f32 %v4301, %v4429
        %v4494 = vmul.f32 %v4302, %v4430
        %v4495 = vmul.f32 %v4303, %v4431
        %v4496 = vmul.f32 %v4304, %v4432
        %v4497 = vmul.f32 %v4305, %v4433
        %v4498 = vmul.f32 %v4306, %v4434
        %v4499 = vmul.f32 %v4307, %v4435
        %v4500 = vmul.f32 %v4308, %v4436
        %v4501 = vmul.f32 %v4309, %v4437
        %v4502 = vmul.f32 %v4310, %v4438
        %v4503 = vmul.f32 %v4311, %v4439
        %4504 = vst [vmem:[%s581] sm:$0xff] %v4440
        %4505 = vst [vmem:[%s581 + $0x8] sm:$0xff] %v4441
        %4506 = vst [vmem:[%s581 + $0x10] sm:$0xff] %v4442
        %4507 = vst [vmem:[%s581 + $0x18] sm:$0xff] %v4443
        %4508 = vst [vmem:[%s581 + $0x20] sm:$0xff] %v4444
        %4509 = vst [vmem:[%s581 + $0x28] sm:$0xff] %v4445
        %4510 = vst [vmem:[%s581 + $0x30] sm:$0xff] %v4446
        %4511 = vst [vmem:[%s581 + $0x38] sm:$0xff] %v4447
        %4512 = vst [vmem:[%s581 + $0x40] sm:$0xff] %v4448
        %4513 = vst [vmem:[%s581 + $0x48] sm:$0xff] %v4449
        %4514 = vst [vmem:[%s581 + $0x50] sm:$0xff] %v4450
        %4515 = vst [vmem:[%s581 + $0x58] sm:$0xff] %v4451
        %4516 = vst [vmem:[%s581 + $0x60] sm:$0xff] %v4452
        %4517 = vst [vmem:[%s581 + $0x68] sm:$0xff] %v4453
        %4518 = vst [vmem:[%s581 + $0x70] sm:$0xff] %v4454
        %4519 = vst [vmem:[%s581 + $0x78] sm:$0xff] %v4455
        %4520 = vst [vmem:[%s581 + $0x80] sm:$0xff] %v4456
        %4521 = vst [vmem:[%s581 + $0x88] sm:$0xff] %v4457
        %4522 = vst [vmem:[%s581 + $0x90] sm:$0xff] %v4458
        %4523 = vst [vmem:[%s581 + $0x98] sm:$0xff] %v4459
        %4524 = vst [vmem:[%s581 + $0xa0] sm:$0xff] %v4460
        %4525 = vst [vmem:[%s581 + $0xa8] sm:$0xff] %v4461
        %4526 = vst [vmem:[%s581 + $0xb0] sm:$0xff] %v4462
        %4527 = vst [vmem:[%s581 + $0xb8] sm:$0xff] %v4463
        %4528 = vst [vmem:[%s581 + $0xc0] sm:$0xff] %v4464
        %4529 = vst [vmem:[%s581 + $0xc8] sm:$0xff] %v4465
        %4530 = vst [vmem:[%s581 + $0xd0] sm:$0xff] %v4466
        %4531 = vst [vmem:[%s581 + $0xd8] sm:$0xff] %v4467
        %4532 = vst [vmem:[%s581 + $0xe0] sm:$0xff] %v4468
        %4533 = vst [vmem:[%s581 + $0xe8] sm:$0xff] %v4469
        %4534 = vst [vmem:[%s581 + $0xf0] sm:$0xff] %v4470
        %4535 = vst [vmem:[%s581 + $0xf8] sm:$0xff] %v4471
        %4536 = vst [vmem:[%s581 + $0x100] sm:$0xff] %v4472
        %4537 = vst [vmem:[%s581 + $0x108] sm:$0xff] %v4473
        %4538 = vst [vmem:[%s581 + $0x110] sm:$0xff] %v4474
        %4539 = vst [vmem:[%s581 + $0x118] sm:$0xff] %v4475
        %4540 = vst [vmem:[%s581 + $0x120] sm:$0xff] %v4476
        %4541 = vst [vmem:[%s581 + $0x128] sm:$0xff] %v4477
        %4542 = vst [vmem:[%s581 + $0x130] sm:$0xff] %v4478
        %4543 = vst [vmem:[%s581 + $0x138] sm:$0xff] %v4479
        %4544 = vst [vmem:[%s581 + $0x140] sm:$0xff] %v4480
        %4545 = vst [vmem:[%s581 + $0x148] sm:$0xff] %v4481
        %4546 = vst [vmem:[%s581 + $0x150] sm:$0xff] %v4482
        %4547 = vst [vmem:[%s581 + $0x158] sm:$0xff] %v4483
        %4548 = vst [vmem:[%s581 + $0x160] sm:$0xff] %v4484
        %4549 = vst [vmem:[%s581 + $0x168] sm:$0xff] %v4485
        %4550 = vst [vmem:[%s581 + $0x170] sm:$0xff] %v4486
        %4551 = vst [vmem:[%s581 + $0x178] sm:$0xff] %v4487
        %4552 = vst [vmem:[%s581 + $0x180] sm:$0xff] %v4488
        %4553 = vst [vmem:[%s581 + $0x188] sm:$0xff] %v4489
        %4554 = vst [vmem:[%s581 + $0x190] sm:$0xff] %v4490
        %4555 = vst [vmem:[%s581 + $0x198] sm:$0xff] %v4491
        %4556 = vst [vmem:[%s581 + $0x1a0] sm:$0xff] %v4492
        %4557 = vst [vmem:[%s581 + $0x1a8] sm:$0xff] %v4493
        %4558 = vst [vmem:[%s581 + $0x1b0] sm:$0xff] %v4494
        %4559 = vst [vmem:[%s581 + $0x1b8] sm:$0xff] %v4495
        %4560 = vst [vmem:[%s581 + $0x1c0] sm:$0xff] %v4496
        %4561 = vst [vmem:[%s581 + $0x1c8] sm:$0xff] %v4497
        %4562 = vst [vmem:[%s581 + $0x1d0] sm:$0xff] %v4498
        %4563 = vst [vmem:[%s581 + $0x1d8] sm:$0xff] %v4499
        %4564 = vst [vmem:[%s581 + $0x1e0] sm:$0xff] %v4500
        %4565 = vst [vmem:[%s581 + $0x1e8] sm:$0xff] %v4501
        %4566 = vst [vmem:[%s581 + $0x1f0] sm:$0xff] %v4502
        %4567 = vst [vmem:[%s581 + $0x1f8] sm:$0xff] %v4503
        %s4568 = sand.u32 %s309, 1
        %s4569 = scalar_lea.sflag [#allocation4], %s4568
        %s4570 = sand.u32 %s309, 1
        %s4571 = smul.addr %s4570, 512
        %s4572 = scalar_lea.vmem [#allocation14], %s4571
        %s4573 = sand.u32 %s335, 1
        %s4574 = scalar_lea.sflag [#allocation16], %s4573
        %s4575 = sand.u32 %s335, 1
        %s4576 = smul.addr %s4575, 512
        %s4577 = scalar_lea.vmem [#allocation15], %s4576
        // Predicated region
        $region97: #{tpu_custom_call.1} parent=67 // pred_check
          %p4578 = pneg %p319
        $region98: #{tpu_custom_call.1} parent=67 // pred_check_branch
          %4580 = sbr.rel (%p4578) target = $region100
        $region99: #{tpu_custom_call.1} parent=67 // pred_region
          %s4581 = smul.u32 64, %s39
          %s4583 = ssub.s32 8192, 8192
          %4584 = vsyncadd %s4569, %s4583
          %s4585 = smul.addr %s4581, 128
          %s4586 = scalar_lea.hbm %s12, %s4585
          %s4587 = sshll.u32 %s4572, 4
          %s4588 = int_to_ptr.vmem [resolvable:$true] %s4587
          %4593 = dma.vmem_to_hbm [thread:$0]  %s4588, 8192, %s4586, %s4569, 128, 128, 8
        $region100: #{tpu_custom_call.1} parent=67 // pred_fallthru
          _
        // Predicated region
        $region101: #{tpu_custom_call.1} parent=67 // pred_check
          %p4594 = pneg %p345
        $region102: #{tpu_custom_call.1} parent=67 // pred_check_branch
          %4596 = sbr.rel (%p4594) target = $region104
        $region103: #{tpu_custom_call.1} parent=67 // pred_region
          %s4597 = smul.u32 64, %s39
          %s4599 = ssub.s32 8192, 8192
          %4600 = vsyncadd %s4574, %s4599
          %s4601 = smul.addr %s4597, 128
          %s4602 = scalar_lea.hbm %s13, %s4601
          %s4603 = sshll.u32 %s4577, 4
          %s4604 = int_to_ptr.vmem [resolvable:$true] %s4603
          %4609 = dma.vmem_to_hbm [thread:$0]  %s4604, 8192, %s4602, %s4574, 128, 128, 8
        $region104: #{tpu_custom_call.1} parent=67 // pred_fallthru
          _
      $region68: #{tpu_custom_call.1} parent=5 // pred_fallthru
        _
      %p4610 = scmp.le.s32.totalorder 2, %s34
      // Predicated region
      $region105: #{tpu_custom_call.1} parent=5 // pred_check
        %p4611 = pneg %p4610
      $region106: #{tpu_custom_call.1} parent=5 // pred_check_branch
        %4613 = sbr.rel (%p4611) target = $region108
      $region107: #{tpu_custom_call.1} parent=5 // pred_region
        %s4614 = ssub.s32 %s34, 2
        // Predicated region
        $region109: #{tpu_custom_call.1} parent=107 // pred_check
          %p4615 = pneg %p325
        $region110: #{tpu_custom_call.1} parent=107 // pred_check_branch
          %4617 = sbr.rel (%p4615) target = $region112
        $region111: #{tpu_custom_call.1} parent=107 // pred_region
          %s4618 = sand.u32 %s310, 1
          %s4619 = scalar_lea.sflag [#allocation4], %s4618
          %s4620 = sand.u32 %s310, 1
          %s4621 = smul.addr %s4620, 512
          %s4622 = scalar_lea.vmem [#allocation14], %s4621
          %4623 = dma.done %s4619, 8192
        $region112: #{tpu_custom_call.1} parent=107 // pred_fallthru
          _
        // Predicated region
        $region113: #{tpu_custom_call.1} parent=107 // pred_check
          %p4624 = pneg %p351
        $region114: #{tpu_custom_call.1} parent=107 // pred_check_branch
          %4626 = sbr.rel (%p4624) target = $region116
        $region115: #{tpu_custom_call.1} parent=107 // pred_region
          %s4627 = sand.u32 %s336, 1
          %s4628 = scalar_lea.sflag [#allocation16], %s4627
          %s4629 = sand.u32 %s336, 1
          %s4630 = smul.addr %s4629, 512
          %s4631 = scalar_lea.vmem [#allocation15], %s4630
          %4632 = dma.done %s4628, 8192
        $region116: #{tpu_custom_call.1} parent=107 // pred_fallthru
          _
      $region108: #{tpu_custom_call.1} parent=5 // pred_fallthru
        _
    $region6: #{tpu_custom_call.1} parent=1 // loop_footer
      %s38 = sadd.s32 1, %s34
    $region7: #{tpu_custom_call.1} parent=1 // loop_footer_branch
      %33 = sbr.rel target = $region3
    $region8: #{tpu_custom_call.1} parent=1 // loop_exit
      _
    %4633 = vsyncpa [#allocation3], 1
    %s4634 = scalar_lea.sflag [#allocation3], 1
    %4635 = vsyncpa %s4634, 1
    %4636 = vsyncpa [#allocation6], 1
    %s4637 = scalar_lea.sflag [#allocation6], 1
    %4638 = vsyncpa %s4637, 1
    %4639 = vsyncpa [#allocation9], 1
    %4640 = vsyncpa [#allocation12], 1
    %4641 = vsyncpa [#allocation4], 1
    %s4642 = scalar_lea.sflag [#allocation4], 1
    %4643 = vsyncpa %s4642, 1
    %4644 = vsyncpa [#allocation16], 1
    %s4645 = scalar_lea.sflag [#allocation16], 1
    %4646 = vsyncpa %s4645, 1

</llo_original>
